<compile_context>
chip_gen: v6e
topology: v6e:2x2x1
jax: 0.10.0
libtpu: 0.0.40
codegen_flags: <defaults>
</compile_context>

<pallas_src>
import functools

import numpy as np
import jax
import jax.numpy as jnp
from jax.experimental import pallas as pl
from jax.experimental.pallas import tpu as pltpu


# Fused BiLSTM gate-column layout (gate-type-major, fwd/bwd interleaved per S-wide block):
#   [ i_f i_b | f_f f_b | o_f o_b | g_f g_b ]        (PyTorch gate ids: i=0, f=1, g=2, o=3)
# With this layout the sigmoid gates occupy one contiguous 6S slab, the tanh gate a 2S slab, and
# i/f/o/g/c/h all share the same [fwd | bwd] 2S column layout, so the cell update is 2S-wide
# element ops plus a single (2S, 8S) recurrent matmul per step.
_GATE_ORDER = ((0, 0), (0, 1), (1, 0), (1, 1), (3, 0), (3, 1), (2, 0), (2, 1))  # (gate, dir)


# ---------------------------------------------------------------- in-kernel helpers
def _fused_bilstm(x_flat, bb, t, hidden, wih, whh, b, fwd_mask, out_f_ref, out_b_ref):
    """Fused bidirectional single-layer LSTM.

    x_flat: (t*bb, Din) rows in time-major order (r = s*bb + batch).
    wih: (Din, 8S), whh: (2S, 8S) block-diagonal, b: (1, 8S), all in _GATE_ORDER layout.
    fwd_mask: (1, 8S) bool, True on forward-direction gate columns.
    Writes per-direction outputs into out_f_ref / out_b_ref, each (t*bb, S), and returns the
    torch-style concatenated output (t*bb, 2S).
    """
    S = hidden
    f32 = jnp.float32
    gi = jnp.dot(x_flat, wih, preferred_element_type=f32) + b        # (t*bb, 8S), off the chain
    h = jnp.zeros((bb, 2 * S), f32)                                   # [h_f | h_b]
    c = jnp.zeros((bb, 2 * S), f32)                                   # [c_f | c_b]
    for s in range(t):
        # Forward gates consume x[s]; backward gates consume x[t-1-s].  Both slices are static
        # and depend only on gi, so their assembly stays off the recurrent critical path.
        g_in = jnp.where(fwd_mask,
                         gi[s * bb:(s + 1) * bb, :],
                         gi[(t - 1 - s) * bb:(t - s) * bb, :])        # (bb, 8S)
        gates = g_in + jnp.dot(h, whh, preferred_element_type=f32)    # ONE recurrent matmul
        sig = jax.nn.sigmoid(gates[:, :6 * S])                        # i|f|o, both directions
        g_g = jnp.tanh(gates[:, 6 * S:8 * S])
        c = sig[:, 2 * S:4 * S] * c + sig[:, 0:2 * S] * g_g
        h = sig[:, 4 * S:6 * S] * jnp.tanh(c)
        out_f_ref[s * bb:(s + 1) * bb, :] = h[:, 0:S]                 # fwd output at time s
        out_b_ref[(t - 1 - s) * bb:(t - s) * bb, :] = h[:, S:2 * S]   # bwd output at time t-1-s
    return jnp.concatenate([out_f_ref[...], out_b_ref[...]], axis=1)  # (t*bb, 2S)


def _seg_attention(x, w, b, hsum_scaled, head_expand, seg_mask, seg_mask_t):
    """virtuosoNet ContextAttention, fully vectorized over heads AND segments.

    x: (R, F); w: (F, F); b: (1, F); hsum_scaled: (F, H) = head-sum matrix pre-scaled by the
    context vector; head_expand: (H, F); seg_mask: (R, C) 0/1 membership (block-diagonal over the
    batch); seg_mask_t: (C, R).  Per head: softmax over each segment's rows of
    <tanh(Linear(x)), ctx>, applied to the RAW x, summed over rows.  Returns (C, F).
    """
    f32 = jnp.float32
    a = jnp.tanh(jnp.dot(x, w, preferred_element_type=f32) + b)                  # (R, F)
    sim = jnp.dot(a, hsum_scaled, preferred_element_type=f32)                    # (R, H)
    sim = sim - jnp.max(sim, axis=0, keepdims=True)       # global shift: softmax-invariant per seg
    ex = jnp.exp(sim)                                                            # (R, H)
    denom = jnp.dot(seg_mask_t, ex, preferred_element_type=f32)                  # (C, H)
    recip = pl.reciprocal(denom + 1e-30, approx=True)     # eps guards any empty (padded) segment
    wgt = ex * jnp.dot(seg_mask, recip, preferred_element_type=f32)              # (R, H)
    wfull = jnp.dot(wgt, head_expand, preferred_element_type=f32)                # (R, F)
    return jnp.dot(seg_mask_t, wfull * x, preferred_element_type=f32)            # (C, F)


# ---------------------------------------------------------------- fused kernel
def _han_perf_encoder_kernel(
        note_ref, y_ref, eps_ref,
        emb_w_ref, emb_b_ref,
        con_wn_ref, con_wp_ref, con_b_ref,
        nl_wih_ref, nl_whh_ref, nl_b_ref, dirmask_ref,
        ma_w_ref, ma_b_ref, ma_hsum_ref, head_expand_ref,
        seg_mask_ref, seg_mask_t_ref,
        pe_wih_ref, pe_whh_ref, pe_b_ref,
        fa_w_ref, fa_b_ref, fa_hsum_ref,
        final_mask_ref, final_mask_t_ref,
        mv_w_ref, mv_b_ref,
        out_ref,
        note_f_scr, note_b_scr, meas_f_scr, meas_b_scr,
        *, hidden, bb, half, num_measures, z_size):
    f32 = jnp.float32
    S = hidden
    fwd_mask = dirmask_ref[...] > 0.0                                  # (1, 8S) bool

    # Time-major flattened rows (r = s*bb + batch); masking_half already applied by the host slice.
    y_flat = y_ref[...].reshape(half * bb, -1)
    note_flat = note_ref[...].reshape(half * bb, -1)

    # performance_embedding_layer (Dropout == identity in eval mode).
    ey = jnp.maximum(
        jnp.dot(y_flat, emb_w_ref[...], preferred_element_type=f32) + emb_b_ref[...], 0.0)

    # cat(total_note_cat, expanded_y) -> performance_contractor (concat folded into split weights).
    contracted = jnp.maximum(
        jnp.dot(note_flat, con_wn_ref[...], preferred_element_type=f32)
        + jnp.dot(ey, con_wp_ref[...], preferred_element_type=f32)
        + con_b_ref[...], 0.0)                                         # (half*bb, S)

    # performance_note_encoder: fused BiLSTM over the (masked) note sequence.
    # TODO(synk): the reference nn.LSTM defaults to batch_first=False; we use the intended HAN
    #             semantics (note axis == time axis), as in the original virtuosoNet usage.
    note_enc = _fused_bilstm(contracted, bb, half, S,
                             nl_wih_ref[...], nl_whh_ref[...], nl_b_ref[...],
                             fwd_mask, note_f_scr, note_b_scr)         # (half*bb, 2S)

    # make_higher_node: per-measure ContextAttention via segment-membership matmuls.
    perform_measure = _seg_attention(
        note_enc, ma_w_ref[...], ma_b_ref[...], ma_hsum_ref[...], head_expand_ref[...],
        seg_mask_ref[...], seg_mask_t_ref[...])                        # (M*bb, 2S), time-major

    # performance_encoder: fused BiLSTM over measure nodes.
    # TODO(synk): num_layers > 1 not implemented (synthetic config uses encoder.layer == 1).
    encoded = _fused_bilstm(perform_measure, bb, num_measures, S,
                            pe_wih_ref[...], pe_whh_ref[...], pe_b_ref[...],
                            fwd_mask, meas_f_scr, meas_b_scr)          # (M*bb, 2S)

    # performance_final_attention: one segment per batch element.
    style = _seg_attention(
        encoded, fa_w_ref[...], fa_b_ref[...], fa_hsum_ref[...], head_expand_ref[...],
        final_mask_ref[...], final_mask_t_ref[...])                    # (bb, 2S)

    # encode_with_net + reparameterize; mean/var heads fused into one matmul, output packed.
    mv = jnp.dot(style, mv_w_ref[...], preferred_element_type=f32) + mv_b_ref[...]   # (bb, 2Z)
    mu = mv[:, :z_size]
    logvar = mv[:, z_size:]
    z = mu + eps_ref[...] * jnp.exp(0.5 * logvar)
    out_ref[...] = jnp.concatenate([z, mv], axis=1)                    # [z | mu | logvar]


# ---------------------------------------------------------------- config / params
class Cfg:
    note_dim = 48            # feature dim of score_embedding['total_note_cat']
    output_size = 8          # net_params.output_size (feature dim of y)
    perf_size = 16           # net_params.performance.size
    enc_input = note_dim + perf_size   # net_params.encoder.input = 64
    enc_size = 32            # net_params.encoder.size
    num_heads = 4            # net_params.num_attention_head
    z_size = 16              # net_params.encoded_vector_size
    lstm_layers = 1          # net_params.encoder.layer


def init_params(key, cfg):
    # Weights stored as (in, out); transpose nn.Linear / nn.LSTM weights ((out, in)) when porting
    # real checkpoints.  LSTM biases are stored pre-summed (b_ih + b_hh), PyTorch gate order.
    def nrm(k, shape, scale=0.1):
        return scale * jax.random.normal(k, shape, jnp.float32)

    ks = iter(jax.random.split(key, 32))
    S, S2, Z = cfg.enc_size, 2 * cfg.enc_size, cfg.z_size
    hs = S2 // cfg.num_heads
    return {
        'emb_w': nrm(next(ks), (cfg.output_size, cfg.perf_size)),
        'emb_b': nrm(next(ks), (1, cfg.perf_size)),
        'con_w_note': nrm(next(ks), (cfg.note_dim, S)),
        'con_w_perf': nrm(next(ks), (cfg.perf_size, S)),
        'con_b': nrm(next(ks), (1, S)),
        'nl_wih_f': nrm(next(ks), (S, 4 * S)), 'nl_whh_f': nrm(next(ks), (S, 4 * S)),
        'nl_b_f': nrm(next(ks), (1, 4 * S)),
        'nl_wih_b': nrm(next(ks), (S, 4 * S)), 'nl_whh_b': nrm(next(ks), (S, 4 * S)),
        'nl_b_b': nrm(next(ks), (1, 4 * S)),
        'ma_w': nrm(next(ks), (S2, S2)), 'ma_b': nrm(next(ks), (1, S2)),
        'ma_ctx': jax.random.uniform(next(ks), (cfg.num_heads, hs), jnp.float32,
                                     minval=-1.0, maxval=1.0),
        'pe_wih_f': nrm(next(ks), (S2, 4 * S)), 'pe_whh_f': nrm(next(ks), (S, 4 * S)),
        'pe_b_f': nrm(next(ks), (1, 4 * S)),
        'pe_wih_b': nrm(next(ks), (S2, 4 * S)), 'pe_whh_b': nrm(next(ks), (S, 4 * S)),
        'pe_b_b': nrm(next(ks), (1, 4 * S)),
        'fa_w': nrm(next(ks), (S2, S2)), 'fa_b': nrm(next(ks), (1, S2)),
        'fa_ctx': jax.random.uniform(next(ks), (cfg.num_heads, hs), jnp.float32,
                                     minval=-1.0, maxval=1.0),
        'mean_w': nrm(next(ks), (S2, Z)), 'mean_b': nrm(next(ks), (1, Z)),
        'var_w': nrm(next(ks), (S2, Z)), 'var_b': nrm(next(ks), (1, Z)),
    }


def _prepare_fused_params(params, cfg):
    """Host-side weight fusion: fused BiLSTM layouts, ctx folded into head-sum, fused mean/var."""
    S, S2, Z, H = cfg.enc_size, 2 * cfg.enc_size, cfg.z_size, cfg.num_heads
    hs = S2 // H

    def fuse_bilstm(prefix):
        wih_f = np.asarray(params[prefix + '_wih_f']); wih_b = np.asarray(params[prefix + '_wih_b'])
        whh_f = np.asarray(params[prefix + '_whh_f']); whh_b = np.asarray(params[prefix + '_whh_b'])
        b_f = np.asarray(params[prefix + '_b_f']); b_b = np.asarray(params[prefix + '_b_b'])

        def gate(w, g):
            return w[:, g * S:(g + 1) * S]

        wih = np.concatenate([gate(wih_f if d == 0 else wih_b, g) for g, d in _GATE_ORDER], axis=1)
        b = np.concatenate([gate(b_f if d == 0 else b_b, g) for g, d in _GATE_ORDER], axis=1)
        whh = np.zeros((S2, 8 * S), np.float32)          # block-diag: rows 0:S <- h_f, S:2S <- h_b
        for k, (g, d) in enumerate(_GATE_ORDER):
            rows = slice(0, S) if d == 0 else slice(S, S2)
            whh[rows, k * S:(k + 1) * S] = gate(whh_f if d == 0 else whh_b, g)
        return jnp.asarray(wih), jnp.asarray(whh), jnp.asarray(b)

    nl_wih, nl_whh, nl_b = fuse_bilstm('nl')
    pe_wih, pe_whh, pe_b = fuse_bilstm('pe')

    dirmask = np.zeros((1, 8 * S), np.float32)           # 1 on forward-direction gate columns
    for k, (_, d) in enumerate(_GATE_ORDER):
        if d == 0:
            dirmask[0, k * S:(k + 1) * S] = 1.0

    head_expand = np.kron(np.eye(H, dtype=np.float32), np.ones((1, hs), np.float32))   # (H, S2)
    head_sum = head_expand.T                                                            # (S2, H)
    ma_hsum = head_sum * np.asarray(params['ma_ctx']).reshape(S2, 1)
    fa_hsum = head_sum * np.asarray(params['fa_ctx']).reshape(S2, 1)

    mv_w = np.concatenate([np.asarray(params['mean_w']), np.asarray(params['var_w'])], axis=1)
    mv_b = np.concatenate([np.asarray(params['mean_b']), np.asarray(params['var_b'])], axis=1)

    return {
        'emb_w': params['emb_w'], 'emb_b': params['emb_b'],
        'con_wn': params['con_w_note'], 'con_wp': params['con_w_perf'], 'con_b': params['con_b'],
        'nl_wih': nl_wih, 'nl_whh': nl_whh, 'nl_b': nl_b,
        'dirmask': jnp.asarray(dirmask),
        'ma_w': params['ma_w'], 'ma_b': params['ma_b'], 'ma_hsum': jnp.asarray(ma_hsum),
        'head_expand': jnp.asarray(head_expand),
        'pe_wih': pe_wih, 'pe_whh': pe_whh, 'pe_b': pe_b,
        'fa_w': params['fa_w'], 'fa_b': params['fa_b'], 'fa_hsum': jnp.asarray(fa_hsum),
        'mv_w': jnp.asarray(mv_w), 'mv_b': jnp.asarray(mv_b),
    }


# ---------------------------------------------------------------- forward (one pallas_call)
def han_perf_encoder_forward(params, cfg, total_note_cat, y, measure_numbers, eps_key,
                             batch_block=None):
    """HanPerfEncoder.forward, return_z=False path -> (perform_z, perform_mu, perform_var).

    batch_block: rows of the batch processed per grid step (default: whole batch in one step;
    on v7x a 2-way split keeps both TensorCores busy for large B — requires batch_block % 8 == 0
    or batch_block == B for BlockSpec alignment).
    """
    # TODO(synk): return_z / sample_multiple_z multi-sample path not implemented (default path).
    B, T, note_dim = total_note_cat.shape
    half = T // 2
    S, S2, Z, H = cfg.enc_size, 2 * cfg.enc_size, cfg.z_size, cfg.num_heads
    Bb = B if batch_block is None else batch_block
    assert B % Bb == 0
    num_blocks = B // Bb

    # masking_half + time-major (time, batch, feat) layout: flattened rows are r = s*Bb + b, so
    # the LSTM recurrence and the scratch stores index whole contiguous sublane row blocks.
    note_tm = jnp.transpose(total_note_cat[:, :half, :], (1, 0, 2))     # (half, B, note_dim)
    y_tm = jnp.transpose(y[:, :half, :], (1, 0, 2))                      # (half, B, out_size)
    eps = jax.random.normal(eps_key, (B, Z), jnp.float32)

    f = _prepare_fused_params(params, cfg)

    # Measure boundaries (host side — mirrors make_higher_node's Python iteration over indices).
    mh = np.asarray(measure_numbers)[:half]
    seg_id = np.concatenate([[0], np.cumsum(np.diff(mh) > 0)]).astype(np.int64)
    M = int(seg_id[-1]) + 1
    base = np.zeros((half, M), np.float32)
    base[np.arange(half), seg_id] = 1.0
    eye_b = np.eye(Bb, dtype=np.float32)
    seg_mask = np.kron(base, eye_b)                              # (half*Bb, M*Bb), time-major
    final_mask = np.kron(np.ones((M, 1), np.float32), eye_b)     # (M*Bb, Bb)
    # TODO(synk): pad M to a fixed MAX_MEASURES (the 1e-30 denom guard already tolerates empty
    #             segments in the attention) to avoid one Mosaic compile per measure layout.

    inputs = (
        note_tm, y_tm, eps,
        f['emb_w'], f['emb_b'],
        f['con_wn'], f['con_wp'], f['con_b'],
        f['nl_wih'], f['nl_whh'], f['nl_b'], f['dirmask'],
        f['ma_w'], f['ma_b'], f['ma_hsum'], f['head_expand'],
        jnp.asarray(seg_mask), jnp.asarray(seg_mask.T),
        f['pe_wih'], f['pe_whh'], f['pe_b'],
        f['fa_w'], f['fa_b'], f['fa_hsum'],
        jnp.asarray(final_mask), jnp.asarray(final_mask.T),
        f['mv_w'], f['mv_b'],
    )

    def shared(a):
        shp = tuple(a.shape)
        return pl.BlockSpec(shp, lambda i: (0,) * len(shp))

    in_specs = [
        pl.BlockSpec((half, Bb, note_dim), lambda i: (0, i, 0)),     # total_note_cat (halved)
        pl.BlockSpec((half, Bb, y.shape[-1]), lambda i: (0, i, 0)),  # y (halved)
        pl.BlockSpec((Bb, Z), lambda i: (i, 0)),                     # eps
    ] + [shared(a) for a in inputs[3:]]

    out_shape = jax.ShapeDtypeStruct((B, 3 * Z), jnp.float32)        # packed [z | mu | logvar]
    out_specs = pl.BlockSpec((Bb, 3 * Z), lambda i: (i, 0))

    kernel = functools.partial(_han_perf_encoder_kernel,
                               hidden=S, bb=Bb, half=half, num_measures=M, z_size=Z)

    R = half * B
    Mt = M * B
    flops = 2 * (R * cfg.output_size * cfg.perf_size
                 + R * (cfg.note_dim + cfg.perf_size) * S
                 + R * (S + S2) * 8 * S                         # note BiLSTM (in-proj + recur)
                 + R * (S2 * S2 + 2 * S2 * H)                   # measure attention
                 + Mt * (S2 + S2) * 8 * S                       # measure BiLSTM
                 + Mt * (S2 * S2 + 2 * S2 * H)                  # final attention
                 + B * S2 * 2 * Z)
    transcendentals = (R + Mt) * (10 * S + S2 + H) + B * Z
    bytes_accessed = 4 * (sum(int(np.prod(a.shape)) for a in inputs) + B * 3 * Z)

    packed = pl.pallas_call(
        kernel,
        grid=(num_blocks,),
        out_shape=out_shape,
        in_specs=in_specs,
        out_specs=out_specs,
        scratch_shapes=[
            pltpu.VMEM((half * Bb, S), jnp.float32),   # note BiLSTM fwd outputs
            pltpu.VMEM((half * Bb, S), jnp.float32),   # note BiLSTM bwd outputs
            pltpu.VMEM((M * Bb, S), jnp.float32),      # measure BiLSTM fwd outputs
            pltpu.VMEM((M * Bb, S), jnp.float32),      # measure BiLSTM bwd outputs
        ],
        compiler_params=pltpu.CompilerParams(dimension_semantics=("parallel",)),
        cost_estimate=pl.CostEstimate(flops=flops, transcendentals=transcendentals,
                                      bytes_accessed=bytes_accessed),
    )(*inputs)

    z = packed[:, :Z]
    mu = packed[:, Z:2 * Z]
    logvar = packed[:, 2 * Z:]
    return z, mu, logvar


# ---------------------------------------------------------------- main
if __name__ == "__main__":
    cfg = Cfg()
    key = jax.random.PRNGKey(0)
    kp, kn, ky, keps = jax.random.split(key, 4)

    B, T = 2, 16
    params = init_params(kp, cfg)
    total_note_cat = jax.random.normal(kn, (B, T, cfg.note_dim), jnp.float32)
    y = jax.random.normal(ky, (B, T, cfg.output_size), jnp.float32)
    note_locations = {
        'beat': np.arange(T, dtype=np.int32),                          # unused (lower_is_note=True)
        'measure': np.repeat(np.arange(T // 4), 4).astype(np.int32),
    }

    z, mu, logvar = han_perf_encoder_forward(
        params, cfg, total_note_cat, y, note_locations['measure'], keps)
    jax.block_until_ready((z, mu, logvar))
    assert z.shape == (B, cfg.z_size)
    assert mu.shape == (B, cfg.z_size)
    assert logvar.shape == (B, cfg.z_size)
    print("KERNEL_OK")
</pallas_src>

<mosaic_0001>
module attributes {stable_mosaic.version = 11 : i64} {
  func.func @_han_perf_encoder_kernel(%arg0: i32, %arg1: memref<8x2x48xf32, #tpu.memory_space<vmem>>, %arg2: memref<8x2x8xf32, #tpu.memory_space<vmem>>, %arg3: memref<2x16xf32, #tpu.memory_space<vmem>>, %arg4: memref<8x16xf32, #tpu.memory_space<vmem>>, %arg5: memref<1x16xf32, #tpu.memory_space<vmem>>, %arg6: memref<48x32xf32, #tpu.memory_space<vmem>>, %arg7: memref<16x32xf32, #tpu.memory_space<vmem>>, %arg8: memref<1x32xf32, #tpu.memory_space<vmem>>, %arg9: memref<32x256xf32, #tpu.memory_space<vmem>>, %arg10: memref<64x256xf32, #tpu.memory_space<vmem>>, %arg11: memref<1x256xf32, #tpu.memory_space<vmem>>, %arg12: memref<1x256xf32, #tpu.memory_space<vmem>>, %arg13: memref<64x64xf32, #tpu.memory_space<vmem>>, %arg14: memref<1x64xf32, #tpu.memory_space<vmem>>, %arg15: memref<64x4xf32, #tpu.memory_space<vmem>>, %arg16: memref<4x64xf32, #tpu.memory_space<vmem>>, %arg17: memref<16x4xf32, #tpu.memory_space<vmem>>, %arg18: memref<4x16xf32, #tpu.memory_space<vmem>>, %arg19: memref<64x256xf32, #tpu.memory_space<vmem>>, %arg20: memref<64x256xf32, #tpu.memory_space<vmem>>, %arg21: memref<1x256xf32, #tpu.memory_space<vmem>>, %arg22: memref<64x64xf32, #tpu.memory_space<vmem>>, %arg23: memref<1x64xf32, #tpu.memory_space<vmem>>, %arg24: memref<64x4xf32, #tpu.memory_space<vmem>>, %arg25: memref<4x2xf32, #tpu.memory_space<vmem>>, %arg26: memref<2x4xf32, #tpu.memory_space<vmem>>, %arg27: memref<64x32xf32, #tpu.memory_space<vmem>>, %arg28: memref<1x32xf32, #tpu.memory_space<vmem>>, %arg29: memref<2x48xf32, #tpu.memory_space<vmem>>, %arg30: memref<16x32xf32, #tpu.memory_space<vmem>>, %arg31: memref<16x32xf32, #tpu.memory_space<vmem>>, %arg32: memref<4x32xf32, #tpu.memory_space<vmem>>, %arg33: memref<4x32xf32, #tpu.memory_space<vmem>>) attributes {dimension_semantics = [#tpu.dimension_semantics<parallel>], iteration_bounds = array<i64: 1>, scalar_prefetch = 0 : i64, scratch_operands = 4 : i64, tpu.core_type = #tpu.core_type<tc>, window_params = [{transform_indices = @transform_0, window_bounds = array<i64: 8, 2, 48>}, {transform_indices = @transform_1, window_bounds = array<i64: 8, 2, 8>}, {transform_indices = @transform_2, window_bounds = array<i64: 2, 16>}, {pipeline_mode = #tpu.pipeline_mode<synchronous>, transform_indices = @transform_3, window_bounds = array<i64: 8, 16>}, {pipeline_mode = #tpu.pipeline_mode<synchronous>, transform_indices = @transform_4, window_bounds = array<i64: 1, 16>}, {pipeline_mode = #tpu.pipeline_mode<synchronous>, transform_indices = @transform_5, window_bounds = array<i64: 48, 32>}, {pipeline_mode = #tpu.pipeline_mode<synchronous>, transform_indices = @transform_6, window_bounds = array<i64: 16, 32>}, {pipeline_mode = #tpu.pipeline_mode<synchronous>, transform_indices = @transform_7, window_bounds = array<i64: 1, 32>}, {pipeline_mode = #tpu.pipeline_mode<synchronous>, transform_indices = @transform_8, window_bounds = array<i64: 32, 256>}, {pipeline_mode = #tpu.pipeline_mode<synchronous>, transform_indices = @transform_9, window_bounds = array<i64: 64, 256>}, {pipeline_mode = #tpu.pipeline_mode<synchronous>, transform_indices = @transform_10, window_bounds = array<i64: 1, 256>}, {pipeline_mode = #tpu.pipeline_mode<synchronous>, transform_indices = @transform_11, window_bounds = array<i64: 1, 256>}, {pipeline_mode = #tpu.pipeline_mode<synchronous>, transform_indices = @transform_12, window_bounds = array<i64: 64, 64>}, {pipeline_mode = #tpu.pipeline_mode<synchronous>, transform_indices = @transform_13, window_bounds = array<i64: 1, 64>}, {pipeline_mode = #tpu.pipeline_mode<synchronous>, transform_indices = @transform_14, window_bounds = array<i64: 64, 4>}, {pipeline_mode = #tpu.pipeline_mode<synchronous>, transform_indices = @transform_15, window_bounds = array<i64: 4, 64>}, {pipeline_mode = #tpu.pipeline_mode<synchronous>, transform_indices = @transform_16, window_bounds = array<i64: 16, 4>}, {pipeline_mode = #tpu.pipeline_mode<synchronous>, transform_indices = @transform_17, window_bounds = array<i64: 4, 16>}, {pipeline_mode = #tpu.pipeline_mode<synchronous>, transform_indices = @transform_18, window_bounds = array<i64: 64, 256>}, {pipeline_mode = #tpu.pipeline_mode<synchronous>, transform_indices = @transform_19, window_bounds = array<i64: 64, 256>}, {pipeline_mode = #tpu.pipeline_mode<synchronous>, transform_indices = @transform_20, window_bounds = array<i64: 1, 256>}, {pipeline_mode = #tpu.pipeline_mode<synchronous>, transform_indices = @transform_21, window_bounds = array<i64: 64, 64>}, {pipeline_mode = #tpu.pipeline_mode<synchronous>, transform_indices = @transform_22, window_bounds = array<i64: 1, 64>}, {pipeline_mode = #tpu.pipeline_mode<synchronous>, transform_indices = @transform_23, window_bounds = array<i64: 64, 4>}, {pipeline_mode = #tpu.pipeline_mode<synchronous>, transform_indices = @transform_24, window_bounds = array<i64: 4, 2>}, {pipeline_mode = #tpu.pipeline_mode<synchronous>, transform_indices = @transform_25, window_bounds = array<i64: 2, 4>}, {pipeline_mode = #tpu.pipeline_mode<synchronous>, transform_indices = @transform_26, window_bounds = array<i64: 64, 32>}, {pipeline_mode = #tpu.pipeline_mode<synchronous>, transform_indices = @transform_27, window_bounds = array<i64: 1, 32>}, {transform_indices = @transform_28, window_bounds = array<i64: 2, 48>}]} {
    %c0 = arith.constant 0 : index
    %c0_0 = arith.constant 0 : index
    %0 = vector.load %arg12[%c0, %c0_0] : memref<1x256xf32, #tpu.memory_space<vmem>>, vector<1x256xf32>
    %cst = arith.constant 0.000000e+00 : f32
    %1 = vector.broadcast %cst : f32 to vector<1x256xf32>
    %2 = arith.cmpf ogt, %0, %1 : vector<1x256xf32>
    %c0_1 = arith.constant 0 : index
    %c0_2 = arith.constant 0 : index
    %c0_3 = arith.constant 0 : index
    %3 = vector.load %arg2[%c0_1, %c0_2, %c0_3] : memref<8x2x8xf32, #tpu.memory_space<vmem>>, vector<8x2x8xf32>
    %4 = vector.shape_cast %3 : vector<8x2x8xf32> to vector<16x8xf32>
    %c0_4 = arith.constant 0 : index
    %c0_5 = arith.constant 0 : index
    %c0_6 = arith.constant 0 : index
    %5 = vector.load %arg1[%c0_4, %c0_5, %c0_6] : memref<8x2x48xf32, #tpu.memory_space<vmem>>, vector<8x2x48xf32>
    %6 = vector.shape_cast %5 : vector<8x2x48xf32> to vector<16x48xf32>
    %c0_7 = arith.constant 0 : index
    %c0_8 = arith.constant 0 : index
    %7 = vector.load %arg4[%c0_7, %c0_8] : memref<8x16xf32, #tpu.memory_space<vmem>>, vector<8x16xf32>
    %cst_9 = arith.constant dense<0.000000e+00> : vector<16x16xf32>
    %8 = tpu.matmul %4, %7, %cst_9 {dimension_numbers = #tpu.dot_dimension_numbers<[1], [0], [0], [1], [0, 0, 1, 1], [], []>} : vector<16x8xf32>, vector<8x16xf32>, vector<16x16xf32> -> vector<16x16xf32>
    %c0_10 = arith.constant 0 : index
    %c0_11 = arith.constant 0 : index
    %9 = vector.load %arg5[%c0_10, %c0_11] : memref<1x16xf32, #tpu.memory_space<vmem>>, vector<1x16xf32>
    %10 = vector.broadcast %9 : vector<1x16xf32> to vector<16x16xf32>
    %11 = arith.addf %8, %10 : vector<16x16xf32>
    %cst_12 = arith.constant 0.000000e+00 : f32
    %12 = vector.broadcast %cst_12 : f32 to vector<16x16xf32>
    %13 = arith.maximumf %11, %12 : vector<16x16xf32>
    %c0_13 = arith.constant 0 : index
    %c0_14 = arith.constant 0 : index
    %14 = vector.load %arg6[%c0_13, %c0_14] : memref<48x32xf32, #tpu.memory_space<vmem>>, vector<48x32xf32>
    %cst_15 = arith.constant dense<0.000000e+00> : vector<16x32xf32>
    %15 = tpu.matmul %6, %14, %cst_15 {dimension_numbers = #tpu.dot_dimension_numbers<[1], [0], [0], [1], [0, 0, 1, 1], [], []>} : vector<16x48xf32>, vector<48x32xf32>, vector<16x32xf32> -> vector<16x32xf32>
    %c0_16 = arith.constant 0 : index
    %c0_17 = arith.constant 0 : index
    %16 = vector.load %arg7[%c0_16, %c0_17] : memref<16x32xf32, #tpu.memory_space<vmem>>, vector<16x32xf32>
    %cst_18 = arith.constant dense<0.000000e+00> : vector<16x32xf32>
    %17 = tpu.matmul %13, %16, %cst_18 {dimension_numbers = #tpu.dot_dimension_numbers<[1], [0], [0], [1], [0, 0, 1, 1], [], []>} : vector<16x16xf32>, vector<16x32xf32>, vector<16x32xf32> -> vector<16x32xf32>
    %18 = arith.addf %15, %17 : vector<16x32xf32>
    %c0_19 = arith.constant 0 : index
    %c0_20 = arith.constant 0 : index
    %19 = vector.load %arg8[%c0_19, %c0_20] : memref<1x32xf32, #tpu.memory_space<vmem>>, vector<1x32xf32>
    %20 = vector.broadcast %19 : vector<1x32xf32> to vector<16x32xf32>
    %21 = arith.addf %18, %20 : vector<16x32xf32>
    %cst_21 = arith.constant 0.000000e+00 : f32
    %22 = vector.broadcast %cst_21 : f32 to vector<16x32xf32>
    %23 = arith.maximumf %21, %22 : vector<16x32xf32>
    %c0_22 = arith.constant 0 : index
    %c0_23 = arith.constant 0 : index
    %24 = vector.load %arg9[%c0_22, %c0_23] : memref<32x256xf32, #tpu.memory_space<vmem>>, vector<32x256xf32>
    %c0_24 = arith.constant 0 : index
    %c0_25 = arith.constant 0 : index
    %25 = vector.load %arg10[%c0_24, %c0_25] : memref<64x256xf32, #tpu.memory_space<vmem>>, vector<64x256xf32>
    %c0_26 = arith.constant 0 : index
    %c0_27 = arith.constant 0 : index
    %26 = vector.load %arg11[%c0_26, %c0_27] : memref<1x256xf32, #tpu.memory_space<vmem>>, vector<1x256xf32>
    %cst_28 = arith.constant dense<0.000000e+00> : vector<16x256xf32>
    %27 = tpu.matmul %23, %24, %cst_28 {dimension_numbers = #tpu.dot_dimension_numbers<[1], [0], [0], [1], [0, 0, 1, 1], [], []>} : vector<16x32xf32>, vector<32x256xf32>, vector<16x256xf32> -> vector<16x256xf32>
    %28 = vector.broadcast %26 : vector<1x256xf32> to vector<16x256xf32>
    %29 = arith.addf %27, %28 : vector<16x256xf32>
    %cst_29 = arith.constant 0.000000e+00 : f32
    %30 = vector.broadcast %cst_29 : f32 to vector<2x64xf32>
    %cst_30 = arith.constant 0.000000e+00 : f32
    %31 = vector.broadcast %cst_30 : f32 to vector<2x64xf32>
    %32 = vector.extract_strided_slice %29 {offsets = [0, 0], sizes = [2, 256], strides = [1, 1]} : vector<16x256xf32> to vector<2x256xf32>
    %33 = vector.extract_strided_slice %29 {offsets = [14, 0], sizes = [2, 256], strides = [1, 1]} : vector<16x256xf32> to vector<2x256xf32>
    %34 = vector.shape_cast %2 : vector<1x256xi1> to vector<1x256xi1>
    %35 = vector.broadcast %34 : vector<1x256xi1> to vector<2x256xi1>
    %36 = arith.select %35, %32, %33 : vector<2x256xi1>, vector<2x256xf32>
    %cst_31 = arith.constant dense<0.000000e+00> : vector<2x256xf32>
    %37 = tpu.matmul %30, %25, %cst_31 {dimension_numbers = #tpu.dot_dimension_numbers<[1], [0], [0], [1], [0, 0, 1, 1], [], []>} : vector<2x64xf32>, vector<64x256xf32>, vector<2x256xf32> -> vector<2x256xf32>
    %38 = arith.addf %36, %37 : vector<2x256xf32>
    %39 = vector.extract_strided_slice %38 {offsets = [0, 0], sizes = [2, 192], strides = [1, 1]} : vector<2x256xf32> to vector<2x192xf32>
    %40 = arith.negf %39 : vector<2x192xf32>
    %41 = math.exp %40 : vector<2x192xf32>
    %cst_32 = arith.constant 1.000000e+00 : f32
    %42 = vector.broadcast %cst_32 : f32 to vector<2x192xf32>
    %43 = arith.addf %42, %41 : vector<2x192xf32>
    %44 = arith.divf %42, %43 : vector<2x192xf32>
    %45 = vector.extract_strided_slice %38 {offsets = [0, 192], sizes = [2, 64], strides = [1, 1]} : vector<2x256xf32> to vector<2x64xf32>
    %46 = math.tanh %45 : vector<2x64xf32>
    %47 = vector.extract_strided_slice %44 {offsets = [0, 64], sizes = [2, 64], strides = [1, 1]} : vector<2x192xf32> to vector<2x64xf32>
    %48 = arith.mulf %47, %31 : vector<2x64xf32>
    %49 = vector.extract_strided_slice %44 {offsets = [0, 0], sizes = [2, 64], strides = [1, 1]} : vector<2x192xf32> to vector<2x64xf32>
    %50 = arith.mulf %49, %46 : vector<2x64xf32>
    %51 = arith.addf %48, %50 : vector<2x64xf32>
    %52 = vector.extract_strided_slice %44 {offsets = [0, 128], sizes = [2, 64], strides = [1, 1]} : vector<2x192xf32> to vector<2x64xf32>
    %53 = math.tanh %51 : vector<2x64xf32>
    %54 = arith.mulf %52, %53 : vector<2x64xf32>
    %55 = vector.extract_strided_slice %54 {offsets = [0, 0], sizes = [2, 32], strides = [1, 1]} : vector<2x64xf32> to vector<2x32xf32>
    %c0_33 = arith.constant 0 : index
    %c0_34 = arith.constant 0 : index
    %56 = vector.load %arg30[%c0_33, %c0_34] : memref<16x32xf32, #tpu.memory_space<vmem>>, vector<2x32xf32>
    tpu.vector_store %arg30[%c0_33, %c0_34], %55 {strides = array<i32>} : memref<16x32xf32, #tpu.memory_space<vmem>>, vector<2x32xf32>,
    %57 = vector.extract_strided_slice %54 {offsets = [0, 32], sizes = [2, 32], strides = [1, 1]} : vector<2x64xf32> to vector<2x32xf32>
    %c14 = arith.constant 14 : index
    %c0_35 = arith.constant 0 : index
    %58 = vector.load %arg31[%c14, %c0_35] : memref<16x32xf32, #tpu.memory_space<vmem>>, vector<2x32xf32>
    tpu.vector_store %arg31[%c14, %c0_35], %57 {strides = array<i32>} : memref<16x32xf32, #tpu.memory_space<vmem>>, vector<2x32xf32>,
    %59 = vector.extract_strided_slice %29 {offsets = [2, 0], sizes = [2, 256], strides = [1, 1]} : vector<16x256xf32> to vector<2x256xf32>
    %60 = vector.extract_strided_slice %29 {offsets = [12, 0], sizes = [2, 256], strides = [1, 1]} : vector<16x256xf32> to vector<2x256xf32>
    %61 = vector.shape_cast %2 : vector<1x256xi1> to vector<1x256xi1>
    %62 = vector.broadcast %61 : vector<1x256xi1> to vector<2x256xi1>
    %63 = arith.select %62, %59, %60 : vector<2x256xi1>, vector<2x256xf32>
    %cst_36 = arith.constant dense<0.000000e+00> : vector<2x256xf32>
    %64 = tpu.matmul %54, %25, %cst_36 {dimension_numbers = #tpu.dot_dimension_numbers<[1], [0], [0], [1], [0, 0, 1, 1], [], []>} : vector<2x64xf32>, vector<64x256xf32>, vector<2x256xf32> -> vector<2x256xf32>
    %65 = arith.addf %63, %64 : vector<2x256xf32>
    %66 = vector.extract_strided_slice %65 {offsets = [0, 0], sizes = [2, 192], strides = [1, 1]} : vector<2x256xf32> to vector<2x192xf32>
    %67 = arith.negf %66 : vector<2x192xf32>
    %68 = math.exp %67 : vector<2x192xf32>
    %cst_37 = arith.constant 1.000000e+00 : f32
    %69 = vector.broadcast %cst_37 : f32 to vector<2x192xf32>
    %70 = arith.addf %69, %68 : vector<2x192xf32>
    %71 = arith.divf %69, %70 : vector<2x192xf32>
    %72 = vector.extract_strided_slice %65 {offsets = [0, 192], sizes = [2, 64], strides = [1, 1]} : vector<2x256xf32> to vector<2x64xf32>
    %73 = math.tanh %72 : vector<2x64xf32>
    %74 = vector.extract_strided_slice %71 {offsets = [0, 64], sizes = [2, 64], strides = [1, 1]} : vector<2x192xf32> to vector<2x64xf32>
    %75 = arith.mulf %74, %51 : vector<2x64xf32>
    %76 = vector.extract_strided_slice %71 {offsets = [0, 0], sizes = [2, 64], strides = [1, 1]} : vector<2x192xf32> to vector<2x64xf32>
    %77 = arith.mulf %76, %73 : vector<2x64xf32>
    %78 = arith.addf %75, %77 : vector<2x64xf32>
    %79 = vector.extract_strided_slice %71 {offsets = [0, 128], sizes = [2, 64], strides = [1, 1]} : vector<2x192xf32> to vector<2x64xf32>
    %80 = math.tanh %78 : vector<2x64xf32>
    %81 = arith.mulf %79, %80 : vector<2x64xf32>
    %82 = vector.extract_strided_slice %81 {offsets = [0, 0], sizes = [2, 32], strides = [1, 1]} : vector<2x64xf32> to vector<2x32xf32>
    %c2 = arith.constant 2 : index
    %c0_38 = arith.constant 0 : index
    %83 = vector.load %arg30[%c2, %c0_38] : memref<16x32xf32, #tpu.memory_space<vmem>>, vector<2x32xf32>
    tpu.vector_store %arg30[%c2, %c0_38], %82 {strides = array<i32>} : memref<16x32xf32, #tpu.memory_space<vmem>>, vector<2x32xf32>,
    %84 = vector.extract_strided_slice %81 {offsets = [0, 32], sizes = [2, 32], strides = [1, 1]} : vector<2x64xf32> to vector<2x32xf32>
    %c12 = arith.constant 12 : index
    %c0_39 = arith.constant 0 : index
    %85 = vector.load %arg31[%c12, %c0_39] : memref<16x32xf32, #tpu.memory_space<vmem>>, vector<2x32xf32>
    tpu.vector_store %arg31[%c12, %c0_39], %84 {strides = array<i32>} : memref<16x32xf32, #tpu.memory_space<vmem>>, vector<2x32xf32>,
    %86 = vector.extract_strided_slice %29 {offsets = [4, 0], sizes = [2, 256], strides = [1, 1]} : vector<16x256xf32> to vector<2x256xf32>
    %87 = vector.extract_strided_slice %29 {offsets = [10, 0], sizes = [2, 256], strides = [1, 1]} : vector<16x256xf32> to vector<2x256xf32>
    %88 = vector.shape_cast %2 : vector<1x256xi1> to vector<1x256xi1>
    %89 = vector.broadcast %88 : vector<1x256xi1> to vector<2x256xi1>
    %90 = arith.select %89, %86, %87 : vector<2x256xi1>, vector<2x256xf32>
    %cst_40 = arith.constant dense<0.000000e+00> : vector<2x256xf32>
    %91 = tpu.matmul %81, %25, %cst_40 {dimension_numbers = #tpu.dot_dimension_numbers<[1], [0], [0], [1], [0, 0, 1, 1], [], []>} : vector<2x64xf32>, vector<64x256xf32>, vector<2x256xf32> -> vector<2x256xf32>
    %92 = arith.addf %90, %91 : vector<2x256xf32>
    %93 = vector.extract_strided_slice %92 {offsets = [0, 0], sizes = [2, 192], strides = [1, 1]} : vector<2x256xf32> to vector<2x192xf32>
    %94 = arith.negf %93 : vector<2x192xf32>
    %95 = math.exp %94 : vector<2x192xf32>
    %cst_41 = arith.constant 1.000000e+00 : f32
    %96 = vector.broadcast %cst_41 : f32 to vector<2x192xf32>
    %97 = arith.addf %96, %95 : vector<2x192xf32>
    %98 = arith.divf %96, %97 : vector<2x192xf32>
    %99 = vector.extract_strided_slice %92 {offsets = [0, 192], sizes = [2, 64], strides = [1, 1]} : vector<2x256xf32> to vector<2x64xf32>
    %100 = math.tanh %99 : vector<2x64xf32>
    %101 = vector.extract_strided_slice %98 {offsets = [0, 64], sizes = [2, 64], strides = [1, 1]} : vector<2x192xf32> to vector<2x64xf32>
    %102 = arith.mulf %101, %78 : vector<2x64xf32>
    %103 = vector.extract_strided_slice %98 {offsets = [0, 0], sizes = [2, 64], strides = [1, 1]} : vector<2x192xf32> to vector<2x64xf32>
    %104 = arith.mulf %103, %100 : vector<2x64xf32>
    %105 = arith.addf %102, %104 : vector<2x64xf32>
    %106 = vector.extract_strided_slice %98 {offsets = [0, 128], sizes = [2, 64], strides = [1, 1]} : vector<2x192xf32> to vector<2x64xf32>
    %107 = math.tanh %105 : vector<2x64xf32>
    %108 = arith.mulf %106, %107 : vector<2x64xf32>
    %109 = vector.extract_strided_slice %108 {offsets = [0, 0], sizes = [2, 32], strides = [1, 1]} : vector<2x64xf32> to vector<2x32xf32>
    %c4 = arith.constant 4 : index
    %c0_42 = arith.constant 0 : index
    %110 = vector.load %arg30[%c4, %c0_42] : memref<16x32xf32, #tpu.memory_space<vmem>>, vector<2x32xf32>
    tpu.vector_store %arg30[%c4, %c0_42], %109 {strides = array<i32>} : memref<16x32xf32, #tpu.memory_space<vmem>>, vector<2x32xf32>,
    %111 = vector.extract_strided_slice %108 {offsets = [0, 32], sizes = [2, 32], strides = [1, 1]} : vector<2x64xf32> to vector<2x32xf32>
    %c10 = arith.constant 10 : index
    %c0_43 = arith.constant 0 : index
    %112 = vector.load %arg31[%c10, %c0_43] : memref<16x32xf32, #tpu.memory_space<vmem>>, vector<2x32xf32>
    tpu.vector_store %arg31[%c10, %c0_43], %111 {strides = array<i32>} : memref<16x32xf32, #tpu.memory_space<vmem>>, vector<2x32xf32>,
    %113 = vector.extract_strided_slice %29 {offsets = [6, 0], sizes = [2, 256], strides = [1, 1]} : vector<16x256xf32> to vector<2x256xf32>
    %114 = vector.extract_strided_slice %29 {offsets = [8, 0], sizes = [2, 256], strides = [1, 1]} : vector<16x256xf32> to vector<2x256xf32>
    %115 = vector.shape_cast %2 : vector<1x256xi1> to vector<1x256xi1>
    %116 = vector.broadcast %115 : vector<1x256xi1> to vector<2x256xi1>
    %117 = arith.select %116, %113, %114 : vector<2x256xi1>, vector<2x256xf32>
    %cst_44 = arith.constant dense<0.000000e+00> : vector<2x256xf32>
    %118 = tpu.matmul %108, %25, %cst_44 {dimension_numbers = #tpu.dot_dimension_numbers<[1], [0], [0], [1], [0, 0, 1, 1], [], []>} : vector<2x64xf32>, vector<64x256xf32>, vector<2x256xf32> -> vector<2x256xf32>
    %119 = arith.addf %117, %118 : vector<2x256xf32>
    %120 = vector.extract_strided_slice %119 {offsets = [0, 0], sizes = [2, 192], strides = [1, 1]} : vector<2x256xf32> to vector<2x192xf32>
    %121 = arith.negf %120 : vector<2x192xf32>
    %122 = math.exp %121 : vector<2x192xf32>
    %cst_45 = arith.constant 1.000000e+00 : f32
    %123 = vector.broadcast %cst_45 : f32 to vector<2x192xf32>
    %124 = arith.addf %123, %122 : vector<2x192xf32>
    %125 = arith.divf %123, %124 : vector<2x192xf32>
    %126 = vector.extract_strided_slice %119 {offsets = [0, 192], sizes = [2, 64], strides = [1, 1]} : vector<2x256xf32> to vector<2x64xf32>
    %127 = math.tanh %126 : vector<2x64xf32>
    %128 = vector.extract_strided_slice %125 {offsets = [0, 64], sizes = [2, 64], strides = [1, 1]} : vector<2x192xf32> to vector<2x64xf32>
    %129 = arith.mulf %128, %105 : vector<2x64xf32>
    %130 = vector.extract_strided_slice %125 {offsets = [0, 0], sizes = [2, 64], strides = [1, 1]} : vector<2x192xf32> to vector<2x64xf32>
    %131 = arith.mulf %130, %127 : vector<2x64xf32>
    %132 = arith.addf %129, %131 : vector<2x64xf32>
    %133 = vector.extract_strided_slice %125 {offsets = [0, 128], sizes = [2, 64], strides = [1, 1]} : vector<2x192xf32> to vector<2x64xf32>
    %134 = math.tanh %132 : vector<2x64xf32>
    %135 = arith.mulf %133, %134 : vector<2x64xf32>
    %136 = vector.extract_strided_slice %135 {offsets = [0, 0], sizes = [2, 32], strides = [1, 1]} : vector<2x64xf32> to vector<2x32xf32>
    %c6 = arith.constant 6 : index
    %c0_46 = arith.constant 0 : index
    %137 = vector.load %arg30[%c6, %c0_46] : memref<16x32xf32, #tpu.memory_space<vmem>>, vector<2x32xf32>
    tpu.vector_store %arg30[%c6, %c0_46], %136 {strides = array<i32>} : memref<16x32xf32, #tpu.memory_space<vmem>>, vector<2x32xf32>,
    %138 = vector.extract_strided_slice %135 {offsets = [0, 32], sizes = [2, 32], strides = [1, 1]} : vector<2x64xf32> to vector<2x32xf32>
    %c8 = arith.constant 8 : index
    %c0_47 = arith.constant 0 : index
    %139 = vector.load %arg31[%c8, %c0_47] : memref<16x32xf32, #tpu.memory_space<vmem>>, vector<2x32xf32>
    tpu.vector_store %arg31[%c8, %c0_47], %138 {strides = array<i32>} : memref<16x32xf32, #tpu.memory_space<vmem>>, vector<2x32xf32>,
    %140 = vector.extract_strided_slice %29 {offsets = [8, 0], sizes = [2, 256], strides = [1, 1]} : vector<16x256xf32> to vector<2x256xf32>
    %141 = vector.extract_strided_slice %29 {offsets = [6, 0], sizes = [2, 256], strides = [1, 1]} : vector<16x256xf32> to vector<2x256xf32>
    %142 = vector.shape_cast %2 : vector<1x256xi1> to vector<1x256xi1>
    %143 = vector.broadcast %142 : vector<1x256xi1> to vector<2x256xi1>
    %144 = arith.select %143, %140, %141 : vector<2x256xi1>, vector<2x256xf32>
    %cst_48 = arith.constant dense<0.000000e+00> : vector<2x256xf32>
    %145 = tpu.matmul %135, %25, %cst_48 {dimension_numbers = #tpu.dot_dimension_numbers<[1], [0], [0], [1], [0, 0, 1, 1], [], []>} : vector<2x64xf32>, vector<64x256xf32>, vector<2x256xf32> -> vector<2x256xf32>
    %146 = arith.addf %144, %145 : vector<2x256xf32>
    %147 = vector.extract_strided_slice %146 {offsets = [0, 0], sizes = [2, 192], strides = [1, 1]} : vector<2x256xf32> to vector<2x192xf32>
    %148 = arith.negf %147 : vector<2x192xf32>
    %149 = math.exp %148 : vector<2x192xf32>
    %cst_49 = arith.constant 1.000000e+00 : f32
    %150 = vector.broadcast %cst_49 : f32 to vector<2x192xf32>
    %151 = arith.addf %150, %149 : vector<2x192xf32>
    %152 = arith.divf %150, %151 : vector<2x192xf32>
    %153 = vector.extract_strided_slice %146 {offsets = [0, 192], sizes = [2, 64], strides = [1, 1]} : vector<2x256xf32> to vector<2x64xf32>
    %154 = math.tanh %153 : vector<2x64xf32>
    %155 = vector.extract_strided_slice %152 {offsets = [0, 64], sizes = [2, 64], strides = [1, 1]} : vector<2x192xf32> to vector<2x64xf32>
    %156 = arith.mulf %155, %132 : vector<2x64xf32>
    %157 = vector.extract_strided_slice %152 {offsets = [0, 0], sizes = [2, 64], strides = [1, 1]} : vector<2x192xf32> to vector<2x64xf32>
    %158 = arith.mulf %157, %154 : vector<2x64xf32>
    %159 = arith.addf %156, %158 : vector<2x64xf32>
    %160 = vector.extract_strided_slice %152 {offsets = [0, 128], sizes = [2, 64], strides = [1, 1]} : vector<2x192xf32> to vector<2x64xf32>
    %161 = math.tanh %159 : vector<2x64xf32>
    %162 = arith.mulf %160, %161 : vector<2x64xf32>
    %163 = vector.extract_strided_slice %162 {offsets = [0, 0], sizes = [2, 32], strides = [1, 1]} : vector<2x64xf32> to vector<2x32xf32>
    %c8_50 = arith.constant 8 : index
    %c0_51 = arith.constant 0 : index
    %164 = vector.load %arg30[%c8_50, %c0_51] : memref<16x32xf32, #tpu.memory_space<vmem>>, vector<2x32xf32>
    tpu.vector_store %arg30[%c8_50, %c0_51], %163 {strides = array<i32>} : memref<16x32xf32, #tpu.memory_space<vmem>>, vector<2x32xf32>,
    %165 = vector.extract_strided_slice %162 {offsets = [0, 32], sizes = [2, 32], strides = [1, 1]} : vector<2x64xf32> to vector<2x32xf32>
    %c6_52 = arith.constant 6 : index
    %c0_53 = arith.constant 0 : index
    %166 = vector.load %arg31[%c6_52, %c0_53] : memref<16x32xf32, #tpu.memory_space<vmem>>, vector<2x32xf32>
    tpu.vector_store %arg31[%c6_52, %c0_53], %165 {strides = array<i32>} : memref<16x32xf32, #tpu.memory_space<vmem>>, vector<2x32xf32>,
    %167 = vector.extract_strided_slice %29 {offsets = [10, 0], sizes = [2, 256], strides = [1, 1]} : vector<16x256xf32> to vector<2x256xf32>
    %168 = vector.extract_strided_slice %29 {offsets = [4, 0], sizes = [2, 256], strides = [1, 1]} : vector<16x256xf32> to vector<2x256xf32>
    %169 = vector.shape_cast %2 : vector<1x256xi1> to vector<1x256xi1>
    %170 = vector.broadcast %169 : vector<1x256xi1> to vector<2x256xi1>
    %171 = arith.select %170, %167, %168 : vector<2x256xi1>, vector<2x256xf32>
    %cst_54 = arith.constant dense<0.000000e+00> : vector<2x256xf32>
    %172 = tpu.matmul %162, %25, %cst_54 {dimension_numbers = #tpu.dot_dimension_numbers<[1], [0], [0], [1], [0, 0, 1, 1], [], []>} : vector<2x64xf32>, vector<64x256xf32>, vector<2x256xf32> -> vector<2x256xf32>
    %173 = arith.addf %171, %172 : vector<2x256xf32>
    %174 = vector.extract_strided_slice %173 {offsets = [0, 0], sizes = [2, 192], strides = [1, 1]} : vector<2x256xf32> to vector<2x192xf32>
    %175 = arith.negf %174 : vector<2x192xf32>
    %176 = math.exp %175 : vector<2x192xf32>
    %cst_55 = arith.constant 1.000000e+00 : f32
    %177 = vector.broadcast %cst_55 : f32 to vector<2x192xf32>
    %178 = arith.addf %177, %176 : vector<2x192xf32>
    %179 = arith.divf %177, %178 : vector<2x192xf32>
    %180 = vector.extract_strided_slice %173 {offsets = [0, 192], sizes = [2, 64], strides = [1, 1]} : vector<2x256xf32> to vector<2x64xf32>
    %181 = math.tanh %180 : vector<2x64xf32>
    %182 = vector.extract_strided_slice %179 {offsets = [0, 64], sizes = [2, 64], strides = [1, 1]} : vector<2x192xf32> to vector<2x64xf32>
    %183 = arith.mulf %182, %159 : vector<2x64xf32>
    %184 = vector.extract_strided_slice %179 {offsets = [0, 0], sizes = [2, 64], strides = [1, 1]} : vector<2x192xf32> to vector<2x64xf32>
    %185 = arith.mulf %184, %181 : vector<2x64xf32>
    %186 = arith.addf %183, %185 : vector<2x64xf32>
    %187 = vector.extract_strided_slice %179 {offsets = [0, 128], sizes = [2, 64], strides = [1, 1]} : vector<2x192xf32> to vector<2x64xf32>
    %188 = math.tanh %186 : vector<2x64xf32>
    %189 = arith.mulf %187, %188 : vector<2x64xf32>
    %190 = vector.extract_strided_slice %189 {offsets = [0, 0], sizes = [2, 32], strides = [1, 1]} : vector<2x64xf32> to vector<2x32xf32>
    %c10_56 = arith.constant 10 : index
    %c0_57 = arith.constant 0 : index
    %191 = vector.load %arg30[%c10_56, %c0_57] : memref<16x32xf32, #tpu.memory_space<vmem>>, vector<2x32xf32>
    tpu.vector_store %arg30[%c10_56, %c0_57], %190 {strides = array<i32>} : memref<16x32xf32, #tpu.memory_space<vmem>>, vector<2x32xf32>,
    %192 = vector.extract_strided_slice %189 {offsets = [0, 32], sizes = [2, 32], strides = [1, 1]} : vector<2x64xf32> to vector<2x32xf32>
    %c4_58 = arith.constant 4 : index
    %c0_59 = arith.constant 0 : index
    %193 = vector.load %arg31[%c4_58, %c0_59] : memref<16x32xf32, #tpu.memory_space<vmem>>, vector<2x32xf32>
    tpu.vector_store %arg31[%c4_58, %c0_59], %192 {strides = array<i32>} : memref<16x32xf32, #tpu.memory_space<vmem>>, vector<2x32xf32>,
    %194 = vector.extract_strided_slice %29 {offsets = [12, 0], sizes = [2, 256], strides = [1, 1]} : vector<16x256xf32> to vector<2x256xf32>
    %195 = vector.extract_strided_slice %29 {offsets = [2, 0], sizes = [2, 256], strides = [1, 1]} : vector<16x256xf32> to vector<2x256xf32>
    %196 = vector.shape_cast %2 : vector<1x256xi1> to vector<1x256xi1>
    %197 = vector.broadcast %196 : vector<1x256xi1> to vector<2x256xi1>
    %198 = arith.select %197, %194, %195 : vector<2x256xi1>, vector<2x256xf32>
    %cst_60 = arith.constant dense<0.000000e+00> : vector<2x256xf32>
    %199 = tpu.matmul %189, %25, %cst_60 {dimension_numbers = #tpu.dot_dimension_numbers<[1], [0], [0], [1], [0, 0, 1, 1], [], []>} : vector<2x64xf32>, vector<64x256xf32>, vector<2x256xf32> -> vector<2x256xf32>
    %200 = arith.addf %198, %199 : vector<2x256xf32>
    %201 = vector.extract_strided_slice %200 {offsets = [0, 0], sizes = [2, 192], strides = [1, 1]} : vector<2x256xf32> to vector<2x192xf32>
    %202 = arith.negf %201 : vector<2x192xf32>
    %203 = math.exp %202 : vector<2x192xf32>
    %cst_61 = arith.constant 1.000000e+00 : f32
    %204 = vector.broadcast %cst_61 : f32 to vector<2x192xf32>
    %205 = arith.addf %204, %203 : vector<2x192xf32>
    %206 = arith.divf %204, %205 : vector<2x192xf32>
    %207 = vector.extract_strided_slice %200 {offsets = [0, 192], sizes = [2, 64], strides = [1, 1]} : vector<2x256xf32> to vector<2x64xf32>
    %208 = math.tanh %207 : vector<2x64xf32>
    %209 = vector.extract_strided_slice %206 {offsets = [0, 64], sizes = [2, 64], strides = [1, 1]} : vector<2x192xf32> to vector<2x64xf32>
    %210 = arith.mulf %209, %186 : vector<2x64xf32>
    %211 = vector.extract_strided_slice %206 {offsets = [0, 0], sizes = [2, 64], strides = [1, 1]} : vector<2x192xf32> to vector<2x64xf32>
    %212 = arith.mulf %211, %208 : vector<2x64xf32>
    %213 = arith.addf %210, %212 : vector<2x64xf32>
    %214 = vector.extract_strided_slice %206 {offsets = [0, 128], sizes = [2, 64], strides = [1, 1]} : vector<2x192xf32> to vector<2x64xf32>
    %215 = math.tanh %213 : vector<2x64xf32>
    %216 = arith.mulf %214, %215 : vector<2x64xf32>
    %217 = vector.extract_strided_slice %216 {offsets = [0, 0], sizes = [2, 32], strides = [1, 1]} : vector<2x64xf32> to vector<2x32xf32>
    %c12_62 = arith.constant 12 : index
    %c0_63 = arith.constant 0 : index
    %218 = vector.load %arg30[%c12_62, %c0_63] : memref<16x32xf32, #tpu.memory_space<vmem>>, vector<2x32xf32>
    tpu.vector_store %arg30[%c12_62, %c0_63], %217 {strides = array<i32>} : memref<16x32xf32, #tpu.memory_space<vmem>>, vector<2x32xf32>,
    %219 = vector.extract_strided_slice %216 {offsets = [0, 32], sizes = [2, 32], strides = [1, 1]} : vector<2x64xf32> to vector<2x32xf32>
    %c2_64 = arith.constant 2 : index
    %c0_65 = arith.constant 0 : index
    %220 = vector.load %arg31[%c2_64, %c0_65] : memref<16x32xf32, #tpu.memory_space<vmem>>, vector<2x32xf32>
    tpu.vector_store %arg31[%c2_64, %c0_65], %219 {strides = array<i32>} : memref<16x32xf32, #tpu.memory_space<vmem>>, vector<2x32xf32>,
    %221 = vector.extract_strided_slice %29 {offsets = [14, 0], sizes = [2, 256], strides = [1, 1]} : vector<16x256xf32> to vector<2x256xf32>
    %222 = vector.extract_strided_slice %29 {offsets = [0, 0], sizes = [2, 256], strides = [1, 1]} : vector<16x256xf32> to vector<2x256xf32>
    %223 = vector.shape_cast %2 : vector<1x256xi1> to vector<1x256xi1>
    %224 = vector.broadcast %223 : vector<1x256xi1> to vector<2x256xi1>
    %225 = arith.select %224, %221, %222 : vector<2x256xi1>, vector<2x256xf32>
    %cst_66 = arith.constant dense<0.000000e+00> : vector<2x256xf32>
    %226 = tpu.matmul %216, %25, %cst_66 {dimension_numbers = #tpu.dot_dimension_numbers<[1], [0], [0], [1], [0, 0, 1, 1], [], []>} : vector<2x64xf32>, vector<64x256xf32>, vector<2x256xf32> -> vector<2x256xf32>
    %227 = arith.addf %225, %226 : vector<2x256xf32>
    %228 = vector.extract_strided_slice %227 {offsets = [0, 0], sizes = [2, 192], strides = [1, 1]} : vector<2x256xf32> to vector<2x192xf32>
    %229 = arith.negf %228 : vector<2x192xf32>
    %230 = math.exp %229 : vector<2x192xf32>
    %cst_67 = arith.constant 1.000000e+00 : f32
    %231 = vector.broadcast %cst_67 : f32 to vector<2x192xf32>
    %232 = arith.addf %231, %230 : vector<2x192xf32>
    %233 = arith.divf %231, %232 : vector<2x192xf32>
    %234 = vector.extract_strided_slice %227 {offsets = [0, 192], sizes = [2, 64], strides = [1, 1]} : vector<2x256xf32> to vector<2x64xf32>
    %235 = math.tanh %234 : vector<2x64xf32>
    %236 = vector.extract_strided_slice %233 {offsets = [0, 64], sizes = [2, 64], strides = [1, 1]} : vector<2x192xf32> to vector<2x64xf32>
    %237 = arith.mulf %236, %213 : vector<2x64xf32>
    %238 = vector.extract_strided_slice %233 {offsets = [0, 0], sizes = [2, 64], strides = [1, 1]} : vector<2x192xf32> to vector<2x64xf32>
    %239 = arith.mulf %238, %235 : vector<2x64xf32>
    %240 = arith.addf %237, %239 : vector<2x64xf32>
    %241 = vector.extract_strided_slice %233 {offsets = [0, 128], sizes = [2, 64], strides = [1, 1]} : vector<2x192xf32> to vector<2x64xf32>
    %242 = math.tanh %240 : vector<2x64xf32>
    %243 = arith.mulf %241, %242 : vector<2x64xf32>
    %244 = vector.extract_strided_slice %243 {offsets = [0, 0], sizes = [2, 32], strides = [1, 1]} : vector<2x64xf32> to vector<2x32xf32>
    %c14_68 = arith.constant 14 : index
    %c0_69 = arith.constant 0 : index
    %245 = vector.load %arg30[%c14_68, %c0_69] : memref<16x32xf32, #tpu.memory_space<vmem>>, vector<2x32xf32>
    tpu.vector_store %arg30[%c14_68, %c0_69], %244 {strides = array<i32>} : memref<16x32xf32, #tpu.memory_space<vmem>>, vector<2x32xf32>,
    %246 = vector.extract_strided_slice %243 {offsets = [0, 32], sizes = [2, 32], strides = [1, 1]} : vector<2x64xf32> to vector<2x32xf32>
    %c0_70 = arith.constant 0 : index
    %c0_71 = arith.constant 0 : index
    %247 = vector.load %arg31[%c0_70, %c0_71] : memref<16x32xf32, #tpu.memory_space<vmem>>, vector<2x32xf32>
    tpu.vector_store %arg31[%c0_70, %c0_71], %246 {strides = array<i32>} : memref<16x32xf32, #tpu.memory_space<vmem>>, vector<2x32xf32>,
    %c0_72 = arith.constant 0 : index
    %c0_73 = arith.constant 0 : index
    %248 = vector.load %arg30[%c0_72, %c0_73] : memref<16x32xf32, #tpu.memory_space<vmem>>, vector<16x32xf32>
    %c0_74 = arith.constant 0 : index
    %c0_75 = arith.constant 0 : index
    %249 = vector.load %arg31[%c0_74, %c0_75] : memref<16x32xf32, #tpu.memory_space<vmem>>, vector<16x32xf32>
    %250 = tpu.concatenate %248, %249 in 1 : vector<16x32xf32>, vector<16x32xf32> -> vector<16x64xf32>
    %c0_76 = arith.constant 0 : index
    %c0_77 = arith.constant 0 : index
    %251 = vector.load %arg13[%c0_76, %c0_77] : memref<64x64xf32, #tpu.memory_space<vmem>>, vector<64x64xf32>
    %c0_78 = arith.constant 0 : index
    %c0_79 = arith.constant 0 : index
    %252 = vector.load %arg14[%c0_78, %c0_79] : memref<1x64xf32, #tpu.memory_space<vmem>>, vector<1x64xf32>
    %c0_80 = arith.constant 0 : index
    %c0_81 = arith.constant 0 : index
    %253 = vector.load %arg15[%c0_80, %c0_81] : memref<64x4xf32, #tpu.memory_space<vmem>>, vector<64x4xf32>
    %c0_82 = arith.constant 0 : index
    %c0_83 = arith.constant 0 : index
    %254 = vector.load %arg16[%c0_82, %c0_83] : memref<4x64xf32, #tpu.memory_space<vmem>>, vector<4x64xf32>
    %c0_84 = arith.constant 0 : index
    %c0_85 = arith.constant 0 : index
    %255 = vector.load %arg17[%c0_84, %c0_85] : memref<16x4xf32, #tpu.memory_space<vmem>>, vector<16x4xf32>
    %c0_86 = arith.constant 0 : index
    %c0_87 = arith.constant 0 : index
    %256 = vector.load %arg18[%c0_86, %c0_87] : memref<4x16xf32, #tpu.memory_space<vmem>>, vector<4x16xf32>
    %cst_88 = arith.constant dense<0.000000e+00> : vector<16x64xf32>
    %257 = tpu.matmul %250, %251, %cst_88 {dimension_numbers = #tpu.dot_dimension_numbers<[1], [0], [0], [1], [0, 0, 1, 1], [], []>} : vector<16x64xf32>, vector<64x64xf32>, vector<16x64xf32> -> vector<16x64xf32>
    %258 = vector.broadcast %252 : vector<1x64xf32> to vector<16x64xf32>
    %259 = arith.addf %257, %258 : vector<16x64xf32>
    %260 = math.tanh %259 : vector<16x64xf32>
    %cst_89 = arith.constant dense<0.000000e+00> : vector<16x4xf32>
    %261 = tpu.matmul %260, %253, %cst_89 {dimension_numbers = #tpu.dot_dimension_numbers<[1], [0], [0], [1], [0, 0, 1, 1], [], []>} : vector<16x64xf32>, vector<64x4xf32>, vector<16x4xf32> -> vector<16x4xf32>
    %cst_90 = arith.constant dense<0xFF800000> : vector<4xf32>
    %262 = vector.multi_reduction <maximumf>, %261, %cst_90 [0] : vector<16x4xf32> to vector<4xf32>
    %263 = vector.shape_cast %262 : vector<4xf32> to vector<1x4xf32>
    %264 = vector.broadcast %263 : vector<1x4xf32> to vector<16x4xf32>
    %265 = arith.subf %261, %264 : vector<16x4xf32>
    %266 = math.exp %265 : vector<16x4xf32>
    %cst_91 = arith.constant dense<0.000000e+00> : vector<4x4xf32>
    %267 = tpu.matmul %256, %266, %cst_91 {dimension_numbers = #tpu.dot_dimension_numbers<[1], [0], [0], [1], [0, 0, 1, 1], [], []>} : vector<4x16xf32>, vector<16x4xf32>, vector<4x4xf32> -> vector<4x4xf32>
    %cst_92 = arith.constant 1.000000e-30 : f32
    %268 = vector.broadcast %cst_92 : f32 to vector<4x4xf32>
    %269 = arith.addf %267, %268 : vector<4x4xf32>
    %270 = tpu.reciprocal %269 {approx = true} : vector<4x4xf32> -> vector<4x4xf32>
    %cst_93 = arith.constant dense<0.000000e+00> : vector<16x4xf32>
    %271 = tpu.matmul %255, %270, %cst_93 {dimension_numbers = #tpu.dot_dimension_numbers<[1], [0], [0], [1], [0, 0, 1, 1], [], []>} : vector<16x4xf32>, vector<4x4xf32>, vector<16x4xf32> -> vector<16x4xf32>
    %272 = arith.mulf %266, %271 : vector<16x4xf32>
    %cst_94 = arith.constant dense<0.000000e+00> : vector<16x64xf32>
    %273 = tpu.matmul %272, %254, %cst_94 {dimension_numbers = #tpu.dot_dimension_numbers<[1], [0], [0], [1], [0, 0, 1, 1], [], []>} : vector<16x4xf32>, vector<4x64xf32>, vector<16x64xf32> -> vector<16x64xf32>
    %274 = arith.mulf %273, %250 : vector<16x64xf32>
    %cst_95 = arith.constant dense<0.000000e+00> : vector<4x64xf32>
    %275 = tpu.matmul %256, %274, %cst_95 {dimension_numbers = #tpu.dot_dimension_numbers<[1], [0], [0], [1], [0, 0, 1, 1], [], []>} : vector<4x16xf32>, vector<16x64xf32>, vector<4x64xf32> -> vector<4x64xf32>
    %c0_96 = arith.constant 0 : index
    %c0_97 = arith.constant 0 : index
    %276 = vector.load %arg19[%c0_96, %c0_97] : memref<64x256xf32, #tpu.memory_space<vmem>>, vector<64x256xf32>
    %c0_98 = arith.constant 0 : index
    %c0_99 = arith.constant 0 : index
    %277 = vector.load %arg20[%c0_98, %c0_99] : memref<64x256xf32, #tpu.memory_space<vmem>>, vector<64x256xf32>
    %c0_100 = arith.constant 0 : index
    %c0_101 = arith.constant 0 : index
    %278 = vector.load %arg21[%c0_100, %c0_101] : memref<1x256xf32, #tpu.memory_space<vmem>>, vector<1x256xf32>
    %cst_102 = arith.constant dense<0.000000e+00> : vector<4x256xf32>
    %279 = tpu.matmul %275, %276, %cst_102 {dimension_numbers = #tpu.dot_dimension_numbers<[1], [0], [0], [1], [0, 0, 1, 1], [], []>} : vector<4x64xf32>, vector<64x256xf32>, vector<4x256xf32> -> vector<4x256xf32>
    %280 = vector.broadcast %278 : vector<1x256xf32> to vector<4x256xf32>
    %281 = arith.addf %279, %280 : vector<4x256xf32>
    %cst_103 = arith.constant 0.000000e+00 : f32
    %282 = vector.broadcast %cst_103 : f32 to vector<2x64xf32>
    %cst_104 = arith.constant 0.000000e+00 : f32
    %283 = vector.broadcast %cst_104 : f32 to vector<2x64xf32>
    %284 = vector.extract_strided_slice %281 {offsets = [0, 0], sizes = [2, 256], strides = [1, 1]} : vector<4x256xf32> to vector<2x256xf32>
    %285 = vector.extract_strided_slice %281 {offsets = [2, 0], sizes = [2, 256], strides = [1, 1]} : vector<4x256xf32> to vector<2x256xf32>
    %286 = vector.shape_cast %2 : vector<1x256xi1> to vector<1x256xi1>
    %287 = vector.broadcast %286 : vector<1x256xi1> to vector<2x256xi1>
    %288 = arith.select %287, %284, %285 : vector<2x256xi1>, vector<2x256xf32>
    %cst_105 = arith.constant dense<0.000000e+00> : vector<2x256xf32>
    %289 = tpu.matmul %282, %277, %cst_105 {dimension_numbers = #tpu.dot_dimension_numbers<[1], [0], [0], [1], [0, 0, 1, 1], [], []>} : vector<2x64xf32>, vector<64x256xf32>, vector<2x256xf32> -> vector<2x256xf32>
    %290 = arith.addf %288, %289 : vector<2x256xf32>
    %291 = vector.extract_strided_slice %290 {offsets = [0, 0], sizes = [2, 192], strides = [1, 1]} : vector<2x256xf32> to vector<2x192xf32>
    %292 = arith.negf %291 : vector<2x192xf32>
    %293 = math.exp %292 : vector<2x192xf32>
    %cst_106 = arith.constant 1.000000e+00 : f32
    %294 = vector.broadcast %cst_106 : f32 to vector<2x192xf32>
    %295 = arith.addf %294, %293 : vector<2x192xf32>
    %296 = arith.divf %294, %295 : vector<2x192xf32>
    %297 = vector.extract_strided_slice %290 {offsets = [0, 192], sizes = [2, 64], strides = [1, 1]} : vector<2x256xf32> to vector<2x64xf32>
    %298 = math.tanh %297 : vector<2x64xf32>
    %299 = vector.extract_strided_slice %296 {offsets = [0, 64], sizes = [2, 64], strides = [1, 1]} : vector<2x192xf32> to vector<2x64xf32>
    %300 = arith.mulf %299, %283 : vector<2x64xf32>
    %301 = vector.extract_strided_slice %296 {offsets = [0, 0], sizes = [2, 64], strides = [1, 1]} : vector<2x192xf32> to vector<2x64xf32>
    %302 = arith.mulf %301, %298 : vector<2x64xf32>
    %303 = arith.addf %300, %302 : vector<2x64xf32>
    %304 = vector.extract_strided_slice %296 {offsets = [0, 128], sizes = [2, 64], strides = [1, 1]} : vector<2x192xf32> to vector<2x64xf32>
    %305 = math.tanh %303 : vector<2x64xf32>
    %306 = arith.mulf %304, %305 : vector<2x64xf32>
    %307 = vector.extract_strided_slice %306 {offsets = [0, 0], sizes = [2, 32], strides = [1, 1]} : vector<2x64xf32> to vector<2x32xf32>
    %c0_107 = arith.constant 0 : index
    %c0_108 = arith.constant 0 : index
    %308 = vector.load %arg32[%c0_107, %c0_108] : memref<4x32xf32, #tpu.memory_space<vmem>>, vector<2x32xf32>
    tpu.vector_store %arg32[%c0_107, %c0_108], %307 {strides = array<i32>} : memref<4x32xf32, #tpu.memory_space<vmem>>, vector<2x32xf32>,
    %309 = vector.extract_strided_slice %306 {offsets = [0, 32], sizes = [2, 32], strides = [1, 1]} : vector<2x64xf32> to vector<2x32xf32>
    %c2_109 = arith.constant 2 : index
    %c0_110 = arith.constant 0 : index
    %310 = vector.load %arg33[%c2_109, %c0_110] : memref<4x32xf32, #tpu.memory_space<vmem>>, vector<2x32xf32>
    tpu.vector_store %arg33[%c2_109, %c0_110], %309 {strides = array<i32>} : memref<4x32xf32, #tpu.memory_space<vmem>>, vector<2x32xf32>,
    %311 = vector.extract_strided_slice %281 {offsets = [2, 0], sizes = [2, 256], strides = [1, 1]} : vector<4x256xf32> to vector<2x256xf32>
    %312 = vector.extract_strided_slice %281 {offsets = [0, 0], sizes = [2, 256], strides = [1, 1]} : vector<4x256xf32> to vector<2x256xf32>
    %313 = vector.shape_cast %2 : vector<1x256xi1> to vector<1x256xi1>
    %314 = vector.broadcast %313 : vector<1x256xi1> to vector<2x256xi1>
    %315 = arith.select %314, %311, %312 : vector<2x256xi1>, vector<2x256xf32>
    %cst_111 = arith.constant dense<0.000000e+00> : vector<2x256xf32>
    %316 = tpu.matmul %306, %277, %cst_111 {dimension_numbers = #tpu.dot_dimension_numbers<[1], [0], [0], [1], [0, 0, 1, 1], [], []>} : vector<2x64xf32>, vector<64x256xf32>, vector<2x256xf32> -> vector<2x256xf32>
    %317 = arith.addf %315, %316 : vector<2x256xf32>
    %318 = vector.extract_strided_slice %317 {offsets = [0, 0], sizes = [2, 192], strides = [1, 1]} : vector<2x256xf32> to vector<2x192xf32>
    %319 = arith.negf %318 : vector<2x192xf32>
    %320 = math.exp %319 : vector<2x192xf32>
    %cst_112 = arith.constant 1.000000e+00 : f32
    %321 = vector.broadcast %cst_112 : f32 to vector<2x192xf32>
    %322 = arith.addf %321, %320 : vector<2x192xf32>
    %323 = arith.divf %321, %322 : vector<2x192xf32>
    %324 = vector.extract_strided_slice %317 {offsets = [0, 192], sizes = [2, 64], strides = [1, 1]} : vector<2x256xf32> to vector<2x64xf32>
    %325 = math.tanh %324 : vector<2x64xf32>
    %326 = vector.extract_strided_slice %323 {offsets = [0, 64], sizes = [2, 64], strides = [1, 1]} : vector<2x192xf32> to vector<2x64xf32>
    %327 = arith.mulf %326, %303 : vector<2x64xf32>
    %328 = vector.extract_strided_slice %323 {offsets = [0, 0], sizes = [2, 64], strides = [1, 1]} : vector<2x192xf32> to vector<2x64xf32>
    %329 = arith.mulf %328, %325 : vector<2x64xf32>
    %330 = arith.addf %327, %329 : vector<2x64xf32>
    %331 = vector.extract_strided_slice %323 {offsets = [0, 128], sizes = [2, 64], strides = [1, 1]} : vector<2x192xf32> to vector<2x64xf32>
    %332 = math.tanh %330 : vector<2x64xf32>
    %333 = arith.mulf %331, %332 : vector<2x64xf32>
    %334 = vector.extract_strided_slice %333 {offsets = [0, 0], sizes = [2, 32], strides = [1, 1]} : vector<2x64xf32> to vector<2x32xf32>
    %c2_113 = arith.constant 2 : index
    %c0_114 = arith.constant 0 : index
    %335 = vector.load %arg32[%c2_113, %c0_114] : memref<4x32xf32, #tpu.memory_space<vmem>>, vector<2x32xf32>
    tpu.vector_store %arg32[%c2_113, %c0_114], %334 {strides = array<i32>} : memref<4x32xf32, #tpu.memory_space<vmem>>, vector<2x32xf32>,
    %336 = vector.extract_strided_slice %333 {offsets = [0, 32], sizes = [2, 32], strides = [1, 1]} : vector<2x64xf32> to vector<2x32xf32>
    %c0_115 = arith.constant 0 : index
    %c0_116 = arith.constant 0 : index
    %337 = vector.load %arg33[%c0_115, %c0_116] : memref<4x32xf32, #tpu.memory_space<vmem>>, vector<2x32xf32>
    tpu.vector_store %arg33[%c0_115, %c0_116], %336 {strides = array<i32>} : memref<4x32xf32, #tpu.memory_space<vmem>>, vector<2x32xf32>,
    %c0_117 = arith.constant 0 : index
    %c0_118 = arith.constant 0 : index
    %338 = vector.load %arg32[%c0_117, %c0_118] : memref<4x32xf32, #tpu.memory_space<vmem>>, vector<4x32xf32>
    %c0_119 = arith.constant 0 : index
    %c0_120 = arith.constant 0 : index
    %339 = vector.load %arg33[%c0_119, %c0_120] : memref<4x32xf32, #tpu.memory_space<vmem>>, vector<4x32xf32>
    %340 = tpu.concatenate %338, %339 in 1 : vector<4x32xf32>, vector<4x32xf32> -> vector<4x64xf32>
    %c0_121 = arith.constant 0 : index
    %c0_122 = arith.constant 0 : index
    %341 = vector.load %arg22[%c0_121, %c0_122] : memref<64x64xf32, #tpu.memory_space<vmem>>, vector<64x64xf32>
    %c0_123 = arith.constant 0 : index
    %c0_124 = arith.constant 0 : index
    %342 = vector.load %arg23[%c0_123, %c0_124] : memref<1x64xf32, #tpu.memory_space<vmem>>, vector<1x64xf32>
    %c0_125 = arith.constant 0 : index
    %c0_126 = arith.constant 0 : index
    %343 = vector.load %arg24[%c0_125, %c0_126] : memref<64x4xf32, #tpu.memory_space<vmem>>, vector<64x4xf32>
    %c0_127 = arith.constant 0 : index
    %c0_128 = arith.constant 0 : index
    %344 = vector.load %arg16[%c0_127, %c0_128] : memref<4x64xf32, #tpu.memory_space<vmem>>, vector<4x64xf32>
    %c0_129 = arith.constant 0 : index
    %c0_130 = arith.constant 0 : index
    %345 = vector.load %arg25[%c0_129, %c0_130] : memref<4x2xf32, #tpu.memory_space<vmem>>, vector<4x2xf32>
    %c0_131 = arith.constant 0 : index
    %c0_132 = arith.constant 0 : index
    %346 = vector.load %arg26[%c0_131, %c0_132] : memref<2x4xf32, #tpu.memory_space<vmem>>, vector<2x4xf32>
    %cst_133 = arith.constant dense<0.000000e+00> : vector<4x64xf32>
    %347 = tpu.matmul %340, %341, %cst_133 {dimension_numbers = #tpu.dot_dimension_numbers<[1], [0], [0], [1], [0, 0, 1, 1], [], []>} : vector<4x64xf32>, vector<64x64xf32>, vector<4x64xf32> -> vector<4x64xf32>
    %348 = vector.broadcast %342 : vector<1x64xf32> to vector<4x64xf32>
    %349 = arith.addf %347, %348 : vector<4x64xf32>
    %350 = math.tanh %349 : vector<4x64xf32>
    %cst_134 = arith.constant dense<0.000000e+00> : vector<4x4xf32>
    %351 = tpu.matmul %350, %343, %cst_134 {dimension_numbers = #tpu.dot_dimension_numbers<[1], [0], [0], [1], [0, 0, 1, 1], [], []>} : vector<4x64xf32>, vector<64x4xf32>, vector<4x4xf32> -> vector<4x4xf32>
    %cst_135 = arith.constant dense<0xFF800000> : vector<4xf32>
    %352 = vector.multi_reduction <maximumf>, %351, %cst_135 [0] : vector<4x4xf32> to vector<4xf32>
    %353 = vector.shape_cast %352 : vector<4xf32> to vector<1x4xf32>
    %354 = vector.broadcast %353 : vector<1x4xf32> to vector<4x4xf32>
    %355 = arith.subf %351, %354 : vector<4x4xf32>
    %356 = math.exp %355 : vector<4x4xf32>
    %cst_136 = arith.constant dense<0.000000e+00> : vector<2x4xf32>
    %357 = tpu.matmul %346, %356, %cst_136 {dimension_numbers = #tpu.dot_dimension_numbers<[1], [0], [0], [1], [0, 0, 1, 1], [], []>} : vector<2x4xf32>, vector<4x4xf32>, vector<2x4xf32> -> vector<2x4xf32>
    %cst_137 = arith.constant 1.000000e-30 : f32
    %358 = vector.broadcast %cst_137 : f32 to vector<2x4xf32>
    %359 = arith.addf %357, %358 : vector<2x4xf32>
    %360 = tpu.reciprocal %359 {approx = true} : vector<2x4xf32> -> vector<2x4xf32>
    %cst_138 = arith.constant dense<0.000000e+00> : vector<4x4xf32>
    %361 = tpu.matmul %345, %360, %cst_138 {dimension_numbers = #tpu.dot_dimension_numbers<[1], [0], [0], [1], [0, 0, 1, 1], [], []>} : vector<4x2xf32>, vector<2x4xf32>, vector<4x4xf32> -> vector<4x4xf32>
    %362 = arith.mulf %356, %361 : vector<4x4xf32>
    %cst_139 = arith.constant dense<0.000000e+00> : vector<4x64xf32>
    %363 = tpu.matmul %362, %344, %cst_139 {dimension_numbers = #tpu.dot_dimension_numbers<[1], [0], [0], [1], [0, 0, 1, 1], [], []>} : vector<4x4xf32>, vector<4x64xf32>, vector<4x64xf32> -> vector<4x64xf32>
    %364 = arith.mulf %363, %340 : vector<4x64xf32>
    %cst_140 = arith.constant dense<0.000000e+00> : vector<2x64xf32>
    %365 = tpu.matmul %346, %364, %cst_140 {dimension_numbers = #tpu.dot_dimension_numbers<[1], [0], [0], [1], [0, 0, 1, 1], [], []>} : vector<2x4xf32>, vector<4x64xf32>, vector<2x64xf32> -> vector<2x64xf32>
    %c0_141 = arith.constant 0 : index
    %c0_142 = arith.constant 0 : index
    %366 = vector.load %arg27[%c0_141, %c0_142] : memref<64x32xf32, #tpu.memory_space<vmem>>, vector<64x32xf32>
    %cst_143 = arith.constant dense<0.000000e+00> : vector<2x32xf32>
    %367 = tpu.matmul %365, %366, %cst_143 {dimension_numbers = #tpu.dot_dimension_numbers<[1], [0], [0], [1], [0, 0, 1, 1], [], []>} : vector<2x64xf32>, vector<64x32xf32>, vector<2x32xf32> -> vector<2x32xf32>
    %c0_144 = arith.constant 0 : index
    %c0_145 = arith.constant 0 : index
    %368 = vector.load %arg28[%c0_144, %c0_145] : memref<1x32xf32, #tpu.memory_space<vmem>>, vector<1x32xf32>
    %369 = vector.broadcast %368 : vector<1x32xf32> to vector<2x32xf32>
    %370 = arith.addf %367, %369 : vector<2x32xf32>
    %371 = vector.extract_strided_slice %370 {offsets = [0, 0], sizes = [2, 16], strides = [1, 1]} : vector<2x32xf32> to vector<2x16xf32>
    %372 = vector.extract_strided_slice %370 {offsets = [0, 16], sizes = [2, 16], strides = [1, 1]} : vector<2x32xf32> to vector<2x16xf32>
    %c0_146 = arith.constant 0 : index
    %c0_147 = arith.constant 0 : index
    %373 = vector.load %arg3[%c0_146, %c0_147] : memref<2x16xf32, #tpu.memory_space<vmem>>, vector<2x16xf32>
    %cst_148 = arith.constant 5.000000e-01 : f32
    %374 = vector.broadcast %cst_148 : f32 to vector<2x16xf32>
    %375 = arith.mulf %374, %372 : vector<2x16xf32>
    %376 = math.exp %375 : vector<2x16xf32>
    %377 = arith.mulf %373, %376 : vector<2x16xf32>
    %378 = arith.addf %371, %377 : vector<2x16xf32>
    %379 = tpu.concatenate %378, %370 in 1 : vector<2x16xf32>, vector<2x32xf32> -> vector<2x48xf32>
    %c0_149 = arith.constant 0 : index
    %c0_150 = arith.constant 0 : index
    %380 = vector.load %arg29[%c0_149, %c0_150] : memref<2x48xf32, #tpu.memory_space<vmem>>, vector<2x48xf32>
    tpu.vector_store %arg29[%c0_149, %c0_150], %379 {strides = array<i32>} : memref<2x48xf32, #tpu.memory_space<vmem>>, vector<2x48xf32>,
    return
  }
  func.func @transform_0(%arg0: i32) -> (i32, i32, i32) {
    %c0_i32 = arith.constant 0 : i32
    %c0_i32_0 = arith.constant 0 : i32
    %c0_i32_1 = arith.constant 0 : i32
    return %c0_i32, %arg0, %c0_i32_0 : i32, i32, i32
  }
  func.func @transform_1(%arg0: i32) -> (i32, i32, i32) {
    %c0_i32 = arith.constant 0 : i32
    %c0_i32_0 = arith.constant 0 : i32
    %c0_i32_1 = arith.constant 0 : i32
    return %c0_i32, %arg0, %c0_i32_0 : i32, i32, i32
  }
  func.func @transform_2(%arg0: i32) -> (i32, i32) {
    %c0_i32 = arith.constant 0 : i32
    %c0_i32_0 = arith.constant 0 : i32
    return %arg0, %c0_i32 : i32, i32
  }
  func.func @transform_3(%arg0: i32) -> (i32, i32) {
    %c0_i32 = arith.constant 0 : i32
    %c0_i32_0 = arith.constant 0 : i32
    %c0_i32_1 = arith.constant 0 : i32
    return %c0_i32, %c0_i32_0 : i32, i32
  }
  func.func @transform_4(%arg0: i32) -> (i32, i32) {
    %c0_i32 = arith.constant 0 : i32
    %c0_i32_0 = arith.constant 0 : i32
    %c0_i32_1 = arith.constant 0 : i32
    return %c0_i32, %c0_i32_0 : i32, i32
  }
  func.func @transform_5(%arg0: i32) -> (i32, i32) {
    %c0_i32 = arith.constant 0 : i32
    %c0_i32_0 = arith.constant 0 : i32
    %c0_i32_1 = arith.constant 0 : i32
    return %c0_i32, %c0_i32_0 : i32, i32
  }
  func.func @transform_6(%arg0: i32) -> (i32, i32) {
    %c0_i32 = arith.constant 0 : i32
    %c0_i32_0 = arith.constant 0 : i32
    %c0_i32_1 = arith.constant 0 : i32
    return %c0_i32, %c0_i32_0 : i32, i32
  }
  func.func @transform_7(%arg0: i32) -> (i32, i32) {
    %c0_i32 = arith.constant 0 : i32
    %c0_i32_0 = arith.constant 0 : i32
    %c0_i32_1 = arith.constant 0 : i32
    return %c0_i32, %c0_i32_0 : i32, i32
  }
  func.func @transform_8(%arg0: i32) -> (i32, i32) {
    %c0_i32 = arith.constant 0 : i32
    %c0_i32_0 = arith.constant 0 : i32
    %c0_i32_1 = arith.constant 0 : i32
    return %c0_i32, %c0_i32_0 : i32, i32
  }
  func.func @transform_9(%arg0: i32) -> (i32, i32) {
    %c0_i32 = arith.constant 0 : i32
    %c0_i32_0 = arith.constant 0 : i32
    %c0_i32_1 = arith.constant 0 : i32
    return %c0_i32, %c0_i32_0 : i32, i32
  }
  func.func @transform_10(%arg0: i32) -> (i32, i32) {
    %c0_i32 = arith.constant 0 : i32
    %c0_i32_0 = arith.constant 0 : i32
    %c0_i32_1 = arith.constant 0 : i32
    return %c0_i32, %c0_i32_0 : i32, i32
  }
  func.func @transform_11(%arg0: i32) -> (i32, i32) {
    %c0_i32 = arith.constant 0 : i32
    %c0_i32_0 = arith.constant 0 : i32
    %c0_i32_1 = arith.constant 0 : i32
    return %c0_i32, %c0_i32_0 : i32, i32
  }
  func.func @transform_12(%arg0: i32) -> (i32, i32) {
    %c0_i32 = arith.constant 0 : i32
    %c0_i32_0 = arith.constant 0 : i32
    %c0_i32_1 = arith.constant 0 : i32
    return %c0_i32, %c0_i32_0 : i32, i32
  }
  func.func @transform_13(%arg0: i32) -> (i32, i32) {
    %c0_i32 = arith.constant 0 : i32
    %c0_i32_0 = arith.constant 0 : i32
    %c0_i32_1 = arith.constant 0 : i32
    return %c0_i32, %c0_i32_0 : i32, i32
  }
  func.func @transform_14(%arg0: i32) -> (i32, i32) {
    %c0_i32 = arith.constant 0 : i32
    %c0_i32_0 = arith.constant 0 : i32
    %c0_i32_1 = arith.constant 0 : i32
    return %c0_i32, %c0_i32_0 : i32, i32
  }
  func.func @transform_15(%arg0: i32) -> (i32, i32) {
    %c0_i32 = arith.constant 0 : i32
    %c0_i32_0 = arith.constant 0 : i32
    %c0_i32_1 = arith.constant 0 : i32
    return %c0_i32, %c0_i32_0 : i32, i32
  }
  func.func @transform_16(%arg0: i32) -> (i32, i32) {
    %c0_i32 = arith.constant 0 : i32
    %c0_i32_0 = arith.constant 0 : i32
    %c0_i32_1 = arith.constant 0 : i32
    return %c0_i32, %c0_i32_0 : i32, i32
  }
  func.func @transform_17(%arg0: i32) -> (i32, i32) {
    %c0_i32 = arith.constant 0 : i32
    %c0_i32_0 = arith.constant 0 : i32
    %c0_i32_1 = arith.constant 0 : i32
    return %c0_i32, %c0_i32_0 : i32, i32
  }
  func.func @transform_18(%arg0: i32) -> (i32, i32) {
    %c0_i32 = arith.constant 0 : i32
    %c0_i32_0 = arith.constant 0 : i32
    %c0_i32_1 = arith.constant 0 : i32
    return %c0_i32, %c0_i32_0 : i32, i32
  }
  func.func @transform_19(%arg0: i32) -> (i32, i32) {
    %c0_i32 = arith.constant 0 : i32
    %c0_i32_0 = arith.constant 0 : i32
    %c0_i32_1 = arith.constant 0 : i32
    return %c0_i32, %c0_i32_0 : i32, i32
  }
  func.func @transform_20(%arg0: i32) -> (i32, i32) {
    %c0_i32 = arith.constant 0 : i32
    %c0_i32_0 = arith.constant 0 : i32
    %c0_i32_1 = arith.constant 0 : i32
    return %c0_i32, %c0_i32_0 : i32, i32
  }
  func.func @transform_21(%arg0: i32) -> (i32, i32) {
    %c0_i32 = arith.constant 0 : i32
    %c0_i32_0 = arith.constant 0 : i32
    %c0_i32_1 = arith.constant 0 : i32
    return %c0_i32, %c0_i32_0 : i32, i32
  }
  func.func @transform_22(%arg0: i32) -> (i32, i32) {
    %c0_i32 = arith.constant 0 : i32
    %c0_i32_0 = arith.constant 0 : i32
    %c0_i32_1 = arith.constant 0 : i32
    return %c0_i32, %c0_i32_0 : i32, i32
  }
  func.func @transform_23(%arg0: i32) -> (i32, i32) {
    %c0_i32 = arith.constant 0 : i32
    %c0_i32_0 = arith.constant 0 : i32
    %c0_i32_1 = arith.constant 0 : i32
    return %c0_i32, %c0_i32_0 : i32, i32
  }
  func.func @transform_24(%arg0: i32) -> (i32, i32) {
    %c0_i32 = arith.constant 0 : i32
    %c0_i32_0 = arith.constant 0 : i32
    %c0_i32_1 = arith.constant 0 : i32
    return %c0_i32, %c0_i32_0 : i32, i32
  }
  func.func @transform_25(%arg0: i32) -> (i32, i32) {
    %c0_i32 = arith.constant 0 : i32
    %c0_i32_0 = arith.constant 0 : i32
    %c0_i32_1 = arith.constant 0 : i32
    return %c0_i32, %c0_i32_0 : i32, i32
  }
  func.func @transform_26(%arg0: i32) -> (i32, i32) {
    %c0_i32 = arith.constant 0 : i32
    %c0_i32_0 = arith.constant 0 : i32
    %c0_i32_1 = arith.constant 0 : i32
    return %c0_i32, %c0_i32_0 : i32, i32
  }
  func.func @transform_27(%arg0: i32) -> (i32, i32) {
    %c0_i32 = arith.constant 0 : i32
    %c0_i32_0 = arith.constant 0 : i32
    %c0_i32_1 = arith.constant 0 : i32
    return %c0_i32, %c0_i32_0 : i32, i32
  }
  func.func @transform_28(%arg0: i32) -> (i32, i32) {
    %c0_i32 = arith.constant 0 : i32
    %c0_i32_0 = arith.constant 0 : i32
    return %arg0, %c0_i32 : i32, i32
  }
}

</mosaic_0001>

<llo_original>
// kernel: tpu_custom_call.1
$region0: #{tpu_custom_call.1}
  #allocation0 [shape = 'u32[]', space=smem, size = 0x4, offset = 0x4, fixed_abs, tag = 'smem constant byte address 0x4 - core index']
  #allocation1 [shape = 'u32[144,128]{1,0:T(1,128)}', space=vmem, size = 0x12000, scoped, tag = 'internal scratch']
  #allocation2 [shape = 'f32[16,32]{1,0:T(8,128)}', space=vmem, size = 0x2000, scoped, tag = 'scratch operand']
  #allocation3 [shape = 'f32[16,32]{1,0:T(8,128)}', space=vmem, size = 0x2000, scoped, tag = 'scratch operand']
  #allocation4 [shape = 'f32[4,32]{1,0:T(4,128)}', space=vmem, size = 0x800, scoped, tag = 'scratch operand']
  #allocation5 [shape = 'f32[4,32]{1,0:T(4,128)}', space=vmem, size = 0x800, scoped, tag = 'scratch operand']
  %s0 = inlined_call_operand.hbm [shape: f32[8,2,48], index: 0, kind: input, shape index: {}]
  %s1 = inlined_call_operand.hbm [shape: f32[8,2,8], index: 1, kind: input, shape index: {}]
  %s2 = inlined_call_operand.hbm [shape: f32[2,16], index: 2, kind: input, shape index: {}]
  %s3 = inlined_call_operand.hbm [shape: f32[8,16], index: 3, kind: input, shape index: {}]
  %s4 = inlined_call_operand.hbm [shape: f32[1,16], index: 4, kind: input, shape index: {}]
  %s5 = inlined_call_operand.vmem [shape: f32[48,32], index: 5, kind: input, shape index: {}]
  %s6 = inlined_call_operand.hbm [shape: f32[16,32], index: 6, kind: input, shape index: {}]
  %s7 = inlined_call_operand.hbm [shape: f32[1,32], index: 7, kind: input, shape index: {}]
  %s8 = inlined_call_operand.vmem [shape: f32[32,256], index: 8, kind: input, shape index: {}]
  %s9 = inlined_call_operand.vmem [shape: f32[64,256], index: 9, kind: input, shape index: {}]
  %s10 = inlined_call_operand.hbm [shape: f32[1,256], index: 10, kind: input, shape index: {}]
  %s11 = inlined_call_operand.hbm [shape: f32[1,256], index: 11, kind: input, shape index: {}]
  %s12 = inlined_call_operand.hbm [shape: f32[64,64], index: 12, kind: input, shape index: {}]
  %s13 = inlined_call_operand.hbm [shape: f32[1,64], index: 13, kind: input, shape index: {}]
  %s14 = inlined_call_operand.vmem [shape: f32[64,4], index: 14, kind: input, shape index: {}]
  %s15 = inlined_call_operand.hbm [shape: f32[4,64], index: 15, kind: input, shape index: {}]
  %s16 = inlined_call_operand.vmem [shape: f32[16,4], index: 16, kind: input, shape index: {}]
  %s17 = inlined_call_operand.hbm [shape: f32[4,16], index: 17, kind: input, shape index: {}]
  %s18 = inlined_call_operand.vmem [shape: f32[64,256], index: 18, kind: input, shape index: {}]
  %s19 = inlined_call_operand.hbm [shape: f32[64,256], index: 19, kind: input, shape index: {}]
  %s20 = inlined_call_operand.vmem [shape: f32[1,256], index: 20, kind: input, shape index: {}]
  %s21 = inlined_call_operand.hbm [shape: f32[64,64], index: 21, kind: input, shape index: {}]
  %s22 = inlined_call_operand.vmem [shape: f32[1,64], index: 22, kind: input, shape index: {}]
  %s23 = inlined_call_operand.vmem [shape: f32[64,4], index: 23, kind: input, shape index: {}]
  %s24 = inlined_call_operand.vmem [shape: f32[4,2], index: 24, kind: input, shape index: {}]
  %s25 = inlined_call_operand.vmem [shape: f32[2,4], index: 25, kind: input, shape index: {}]
  %s26 = inlined_call_operand.vmem [shape: f32[64,32], index: 26, kind: input, shape index: {}]
  %s27 = inlined_call_operand.vmem [shape: f32[1,32], index: 27, kind: input, shape index: {}]
  %s28 = inlined_call_operand.hbm [shape: f32[2,48], index: 28, kind: output, shape index: {}]
  %s29 = sld [smem:[#allocation0]]
  $region182: #{tpu_custom_call.1} parent=0
    _
  %s31 = ssub.s32 1, %s29
  %s32 = scalar_select 0, %s31, %s29
  $region1: #{tpu_custom_call.1} parent=0
    #allocation6 [shape = 'u8[8192]{0}', space=vmem, size = 0x2000, scoped, tag = 'input window, operand 0, single buffered']
    #allocation7 [shape = 's32[1]{0}', space=sflag, size = 0x4, scoped, tag = 'scoped memory for tpu_custom_call.1']
    #allocation8 [shape = 's32[1]{0}', space=sflag, size = 0x4, scoped, tag = 'scoped memory for tpu_custom_call.1']
    #allocation9 [shape = 'u8[8192]{0}', space=vmem, size = 0x2000, scoped, tag = 'input window, operand 1, single buffered']
    #allocation10 [shape = 's32[1]{0}', space=sflag, size = 0x4, scoped, tag = 'scoped memory for tpu_custom_call.1']
    #allocation11 [shape = 'u8[1024]{0}', space=vmem, size = 0x400, scoped, tag = 'input window, operand 2, single buffered']
    #allocation12 [shape = 'u8[4096]{0}', space=vmem, size = 0x1000, scoped, tag = 'input window, operand 3, single buffered']
    #allocation13 [shape = 's32[1]{0}', space=sflag, size = 0x4, scoped, tag = 'scoped memory for tpu_custom_call.1']
    #allocation14 [shape = 'u8[512]{0}', space=vmem, size = 0x400, scoped, tag = 'input window, operand 4, single buffered']
    #allocation15 [shape = 'u8[8192]{0}', space=vmem, size = 0x2000, scoped, tag = 'input window, operand 6, single buffered']
    #allocation16 [shape = 's32[1]{0}', space=sflag, size = 0x4, scoped, tag = 'scoped memory for tpu_custom_call.1']
    #allocation17 [shape = 'u8[512]{0}', space=vmem, size = 0x400, scoped, tag = 'input window, operand 7, single buffered']
    #allocation18 [shape = 'u8[1024]{0}', space=vmem, size = 0x400, scoped, tag = 'input window, operand 10, single buffered']
    #allocation19 [shape = 's32[1]{0}', space=sflag, size = 0x4, scoped, tag = 'scoped memory for tpu_custom_call.1']
    #allocation20 [shape = 'u8[1024]{0}', space=vmem, size = 0x400, scoped, tag = 'input window, operand 11, single buffered']
    #allocation21 [shape = 'u8[32768]{0}', space=vmem, size = 0x8000, scoped, tag = 'input window, operand 12, single buffered']
    #allocation22 [shape = 's32[1]{0}', space=sflag, size = 0x4, scoped, tag = 'scoped memory for tpu_custom_call.1']
    #allocation23 [shape = 'u8[512]{0}', space=vmem, size = 0x400, scoped, tag = 'input window, operand 13, single buffered']
    #allocation24 [shape = 'u8[2048]{0}', space=vmem, size = 0x800, scoped, tag = 'input window, operand 15, single buffered']
    #allocation25 [shape = 's32[1]{0}', space=sflag, size = 0x4, scoped, tag = 'scoped memory for tpu_custom_call.1']
    #allocation26 [shape = 'u8[2048]{0}', space=vmem, size = 0x800, scoped, tag = 'input window, operand 17, single buffered']
    #allocation27 [shape = 'u8[65536]{0}', space=vmem, size = 0x10000, scoped, tag = 'input window, operand 19, single buffered']
    #allocation28 [shape = 's32[1]{0}', space=sflag, size = 0x4, scoped, tag = 'scoped memory for tpu_custom_call.1']
    #allocation29 [shape = 'u8[32768]{0}', space=vmem, size = 0x8000, scoped, tag = 'input window, operand 21, single buffered']
    #allocation30 [shape = 'u8[1024]{0}', space=vmem, size = 0x400, scoped, tag = 'output window, operand 0, single buffered']
    %33 = vsyncpa [#allocation7], 0
    %34 = vsyncpa [#allocation10], 0
    %35 = vsyncpa [#allocation13], 0
    %36 = vsyncpa [#allocation16], 0
    %37 = vsyncpa [#allocation19], 0
    %38 = vsyncpa [#allocation22], 0
    %39 = vsyncpa [#allocation25], 0
    %40 = vsyncpa [#allocation28], 0
    %41 = vsyncpa [#allocation8], 0
    // Predicated region
    $region2: #{tpu_custom_call.1} parent=1 // pred_check
      _
    $region3: #{tpu_custom_call.1} parent=1 // pred_check_branch
      %43 = sbr.rel (0) target = $region5
    $region4: #{tpu_custom_call.1} parent=1 // pred_region
      %s45 = ssub.s32 256, 256
      %46 = vsyncadd [#allocation7], %s45
      %s47 = sshll.u32 [#allocation6], 4
      %s48 = int_to_ptr.vmem [resolvable:$true] %s47
      %53 = dma.hbm_to_vmem [thread:$0]  %s0, 256, %s48, [#allocation7], 32, 32, 2
    $region5: #{tpu_custom_call.1} parent=1 // pred_fallthru
      _
    // Predicated region
    $region6: #{tpu_custom_call.1} parent=1 // pred_check
      _
    $region7: #{tpu_custom_call.1} parent=1 // pred_check_branch
      %55 = sbr.rel (0) target = $region9
    $region8: #{tpu_custom_call.1} parent=1 // pred_region
      %s57 = ssub.s32 256, 256
      %58 = vsyncadd [#allocation10], %s57
      %s59 = sshll.u32 [#allocation9], 4
      %s60 = int_to_ptr.vmem [resolvable:$true] %s59
      %65 = dma.hbm_to_vmem [thread:$0]  %s1, 256, %s60, [#allocation10], 32, 32, 2
    $region9: #{tpu_custom_call.1} parent=1 // pred_fallthru
      _
    // Predicated region
    $region10: #{tpu_custom_call.1} parent=1 // pred_check
      _
    $region11: #{tpu_custom_call.1} parent=1 // pred_check_branch
      %67 = sbr.rel (0) target = $region13
    $region12: #{tpu_custom_call.1} parent=1 // pred_region
      %s69 = ssub.s32 32, 32
      %70 = vsyncadd [#allocation10], %s69
      %s72 = sshll.u32 [#allocation11], 4
      %s73 = int_to_ptr.vmem [resolvable:$true] %s72
      %75 = dma.hbm_to_vmem [thread:$0]  %s2, 32, %s73, [#allocation10]
    $region13: #{tpu_custom_call.1} parent=1 // pred_fallthru
      _
    // Predicated region
    $region14: #{tpu_custom_call.1} parent=1 // pred_check
      _
    $region15: #{tpu_custom_call.1} parent=1 // pred_check_branch
      %77 = sbr.rel (0) target = $region17
    $region16: #{tpu_custom_call.1} parent=1 // pred_region
      %s79 = ssub.s32 128, 128
      %80 = vsyncadd [#allocation13], %s79
      %s82 = sshll.u32 [#allocation12], 4
      %s83 = int_to_ptr.vmem [resolvable:$true] %s82
      %85 = dma.hbm_to_vmem [thread:$0]  %s3, 128, %s83, [#allocation13]
    $region17: #{tpu_custom_call.1} parent=1 // pred_fallthru
      _
    // Predicated region
    $region18: #{tpu_custom_call.1} parent=1 // pred_check
      _
    $region19: #{tpu_custom_call.1} parent=1 // pred_check_branch
      %87 = sbr.rel (0) target = $region21
    $region20: #{tpu_custom_call.1} parent=1 // pred_region
      %s89 = ssub.s32 16, 16
      %90 = vsyncadd [#allocation13], %s89
      %s92 = sshll.u32 [#allocation14], 4
      %s93 = int_to_ptr.vmem [resolvable:$true] %s92
      %95 = dma.hbm_to_vmem [thread:$0]  %s4, 16, %s93, [#allocation13]
    $region21: #{tpu_custom_call.1} parent=1 // pred_fallthru
      _
    // Predicated region
    $region22: #{tpu_custom_call.1} parent=1 // pred_check
      _
    $region23: #{tpu_custom_call.1} parent=1 // pred_check_branch
      %97 = sbr.rel (0) target = $region25
    $region24: #{tpu_custom_call.1} parent=1 // pred_region
      _
    $region25: #{tpu_custom_call.1} parent=1 // pred_fallthru
      _
    // Predicated region
    $region26: #{tpu_custom_call.1} parent=1 // pred_check
      _
    $region27: #{tpu_custom_call.1} parent=1 // pred_check_branch
      %99 = sbr.rel (0) target = $region29
    $region28: #{tpu_custom_call.1} parent=1 // pred_region
      %s101 = ssub.s32 256, 256
      %102 = vsyncadd [#allocation16], %s101
      %s103 = sshll.u32 [#allocation15], 4
      %s104 = int_to_ptr.vmem [resolvable:$true] %s103
      %109 = dma.hbm_to_vmem [thread:$0]  %s6, 256, %s104, [#allocation16], 128, 128, 8
    $region29: #{tpu_custom_call.1} parent=1 // pred_fallthru
      _
    // Predicated region
    $region30: #{tpu_custom_call.1} parent=1 // pred_check
      _
    $region31: #{tpu_custom_call.1} parent=1 // pred_check_branch
      %111 = sbr.rel (0) target = $region33
    $region32: #{tpu_custom_call.1} parent=1 // pred_region
      %s113 = ssub.s32 16, 16
      %114 = vsyncadd [#allocation16], %s113
      %s116 = sshll.u32 [#allocation17], 4
      %s117 = int_to_ptr.vmem [resolvable:$true] %s116
      %119 = dma.hbm_to_vmem [thread:$0]  %s7, 16, %s117, [#allocation16]
    $region33: #{tpu_custom_call.1} parent=1 // pred_fallthru
      _
    // Predicated region
    $region34: #{tpu_custom_call.1} parent=1 // pred_check
      _
    $region35: #{tpu_custom_call.1} parent=1 // pred_check_branch
      %121 = sbr.rel (0) target = $region37
    $region36: #{tpu_custom_call.1} parent=1 // pred_region
      _
    $region37: #{tpu_custom_call.1} parent=1 // pred_fallthru
      _
    // Predicated region
    $region38: #{tpu_custom_call.1} parent=1 // pred_check
      _
    $region39: #{tpu_custom_call.1} parent=1 // pred_check_branch
      %123 = sbr.rel (0) target = $region41
    $region40: #{tpu_custom_call.1} parent=1 // pred_region
      _
    $region41: #{tpu_custom_call.1} parent=1 // pred_fallthru
      _
    // Predicated region
    $region42: #{tpu_custom_call.1} parent=1 // pred_check
      _
    $region43: #{tpu_custom_call.1} parent=1 // pred_check_branch
      %125 = sbr.rel (0) target = $region45
    $region44: #{tpu_custom_call.1} parent=1 // pred_region
      %s127 = ssub.s32 32, 32
      %128 = vsyncadd [#allocation19], %s127
      %s130 = sshll.u32 [#allocation18], 4
      %s131 = int_to_ptr.vmem [resolvable:$true] %s130
      %133 = dma.hbm_to_vmem [thread:$0]  %s10, 32, %s131, [#allocation19]
    $region45: #{tpu_custom_call.1} parent=1 // pred_fallthru
      _
    // Predicated region
    $region46: #{tpu_custom_call.1} parent=1 // pred_check
      _
    $region47: #{tpu_custom_call.1} parent=1 // pred_check_branch
      %135 = sbr.rel (0) target = $region49
    $region48: #{tpu_custom_call.1} parent=1 // pred_region
      %s137 = ssub.s32 32, 32
      %138 = vsyncadd [#allocation19], %s137
      %s140 = sshll.u32 [#allocation20], 4
      %s141 = int_to_ptr.vmem [resolvable:$true] %s140
      %143 = dma.hbm_to_vmem [thread:$0]  %s11, 32, %s141, [#allocation19]
    $region49: #{tpu_custom_call.1} parent=1 // pred_fallthru
      _
    // Predicated region
    $region50: #{tpu_custom_call.1} parent=1 // pred_check
      _
    $region51: #{tpu_custom_call.1} parent=1 // pred_check_branch
      %145 = sbr.rel (0) target = $region53
    $region52: #{tpu_custom_call.1} parent=1 // pred_region
      %s147 = ssub.s32 1024, 1024
      %148 = vsyncadd [#allocation22], %s147
      %s149 = sshll.u32 [#allocation21], 4
      %s150 = int_to_ptr.vmem [resolvable:$true] %s149
      %155 = dma.hbm_to_vmem [thread:$0]  %s12, 1024, %s150, [#allocation22], 128, 128, 8
    $region53: #{tpu_custom_call.1} parent=1 // pred_fallthru
      _
    // Predicated region
    $region54: #{tpu_custom_call.1} parent=1 // pred_check
      _
    $region55: #{tpu_custom_call.1} parent=1 // pred_check_branch
      %157 = sbr.rel (0) target = $region57
    $region56: #{tpu_custom_call.1} parent=1 // pred_region
      %s159 = ssub.s32 16, 16
      %160 = vsyncadd [#allocation22], %s159
      %s162 = sshll.u32 [#allocation23], 4
      %s163 = int_to_ptr.vmem [resolvable:$true] %s162
      %165 = dma.hbm_to_vmem [thread:$0]  %s13, 16, %s163, [#allocation22]
    $region57: #{tpu_custom_call.1} parent=1 // pred_fallthru
      _
    // Predicated region
    $region58: #{tpu_custom_call.1} parent=1 // pred_check
      _
    $region59: #{tpu_custom_call.1} parent=1 // pred_check_branch
      %167 = sbr.rel (0) target = $region61
    $region60: #{tpu_custom_call.1} parent=1 // pred_region
      _
    $region61: #{tpu_custom_call.1} parent=1 // pred_fallthru
      _
    // Predicated region
    $region62: #{tpu_custom_call.1} parent=1 // pred_check
      _
    $region63: #{tpu_custom_call.1} parent=1 // pred_check_branch
      %169 = sbr.rel (0) target = $region65
    $region64: #{tpu_custom_call.1} parent=1 // pred_region
      %s171 = ssub.s32 64, 64
      %172 = vsyncadd [#allocation25], %s171
      %s174 = sshll.u32 [#allocation24], 4
      %s175 = int_to_ptr.vmem [resolvable:$true] %s174
      %177 = dma.hbm_to_vmem [thread:$0]  %s15, 64, %s175, [#allocation25]
    $region65: #{tpu_custom_call.1} parent=1 // pred_fallthru
      _
    // Predicated region
    $region66: #{tpu_custom_call.1} parent=1 // pred_check
      _
    $region67: #{tpu_custom_call.1} parent=1 // pred_check_branch
      %179 = sbr.rel (0) target = $region69
    $region68: #{tpu_custom_call.1} parent=1 // pred_region
      _
    $region69: #{tpu_custom_call.1} parent=1 // pred_fallthru
      _
    // Predicated region
    $region70: #{tpu_custom_call.1} parent=1 // pred_check
      _
    $region71: #{tpu_custom_call.1} parent=1 // pred_check_branch
      %181 = sbr.rel (0) target = $region73
    $region72: #{tpu_custom_call.1} parent=1 // pred_region
      %s183 = ssub.s32 64, 64
      %184 = vsyncadd [#allocation25], %s183
      %s186 = sshll.u32 [#allocation26], 4
      %s187 = int_to_ptr.vmem [resolvable:$true] %s186
      %189 = dma.hbm_to_vmem [thread:$0]  %s17, 64, %s187, [#allocation25]
    $region73: #{tpu_custom_call.1} parent=1 // pred_fallthru
      _
    // Predicated region
    $region74: #{tpu_custom_call.1} parent=1 // pred_check
      _
    $region75: #{tpu_custom_call.1} parent=1 // pred_check_branch
      %191 = sbr.rel (0) target = $region77
    $region76: #{tpu_custom_call.1} parent=1 // pred_region
      _
    $region77: #{tpu_custom_call.1} parent=1 // pred_fallthru
      _
    // Predicated region
    $region78: #{tpu_custom_call.1} parent=1 // pred_check
      _
    $region79: #{tpu_custom_call.1} parent=1 // pred_check_branch
      %193 = sbr.rel (0) target = $region81
    $region80: #{tpu_custom_call.1} parent=1 // pred_region
      %s195 = ssub.s32 2048, 2048
      %196 = vsyncadd [#allocation28], %s195
      %s197 = sshll.u32 [#allocation27], 4
      %s198 = int_to_ptr.vmem [resolvable:$true] %s197
      %203 = dma.hbm_to_vmem [thread:$0]  %s19, 2048, %s198, [#allocation28], 256, 256, 16
    $region81: #{tpu_custom_call.1} parent=1 // pred_fallthru
      _
    // Predicated region
    $region82: #{tpu_custom_call.1} parent=1 // pred_check
      _
    $region83: #{tpu_custom_call.1} parent=1 // pred_check_branch
      %205 = sbr.rel (0) target = $region85
    $region84: #{tpu_custom_call.1} parent=1 // pred_region
      _
    $region85: #{tpu_custom_call.1} parent=1 // pred_fallthru
      _
    // Predicated region
    $region86: #{tpu_custom_call.1} parent=1 // pred_check
      _
    $region87: #{tpu_custom_call.1} parent=1 // pred_check_branch
      %207 = sbr.rel (0) target = $region89
    $region88: #{tpu_custom_call.1} parent=1 // pred_region
      %s209 = ssub.s32 1024, 1024
      %210 = vsyncadd [#allocation28], %s209
      %s211 = sshll.u32 [#allocation29], 4
      %s212 = int_to_ptr.vmem [resolvable:$true] %s211
      %217 = dma.hbm_to_vmem [thread:$0]  %s21, 1024, %s212, [#allocation28], 128, 128, 8
    $region89: #{tpu_custom_call.1} parent=1 // pred_fallthru
      _
    // Predicated region
    $region90: #{tpu_custom_call.1} parent=1 // pred_check
      _
    $region91: #{tpu_custom_call.1} parent=1 // pred_check_branch
      %219 = sbr.rel (0) target = $region93
    $region92: #{tpu_custom_call.1} parent=1 // pred_region
      _
    $region93: #{tpu_custom_call.1} parent=1 // pred_fallthru
      _
    // Predicated region
    $region94: #{tpu_custom_call.1} parent=1 // pred_check
      _
    $region95: #{tpu_custom_call.1} parent=1 // pred_check_branch
      %221 = sbr.rel (0) target = $region97
    $region96: #{tpu_custom_call.1} parent=1 // pred_region
      _
    $region97: #{tpu_custom_call.1} parent=1 // pred_fallthru
      _
    // Predicated region
    $region98: #{tpu_custom_call.1} parent=1 // pred_check
      _
    $region99: #{tpu_custom_call.1} parent=1 // pred_check_branch
      %223 = sbr.rel (0) target = $region101
    $region100: #{tpu_custom_call.1} parent=1 // pred_region
      _
    $region101: #{tpu_custom_call.1} parent=1 // pred_fallthru
      _
    // Predicated region
    $region102: #{tpu_custom_call.1} parent=1 // pred_check
      _
    $region103: #{tpu_custom_call.1} parent=1 // pred_check_branch
      %225 = sbr.rel (0) target = $region105
    $region104: #{tpu_custom_call.1} parent=1 // pred_region
      _
    $region105: #{tpu_custom_call.1} parent=1 // pred_fallthru
      _
    // Predicated region
    $region106: #{tpu_custom_call.1} parent=1 // pred_check
      _
    $region107: #{tpu_custom_call.1} parent=1 // pred_check_branch
      %227 = sbr.rel (0) target = $region109
    $region108: #{tpu_custom_call.1} parent=1 // pred_region
      _
    $region109: #{tpu_custom_call.1} parent=1 // pred_fallthru
      _
    // Predicated region
    $region110: #{tpu_custom_call.1} parent=1 // pred_check
      _
    $region111: #{tpu_custom_call.1} parent=1 // pred_check_branch
      %229 = sbr.rel (0) target = $region113
    $region112: #{tpu_custom_call.1} parent=1 // pred_region
      _
    $region113: #{tpu_custom_call.1} parent=1 // pred_fallthru
      _
    // Predicated region
    $region114: #{tpu_custom_call.1} parent=1 // pred_check
      _
    $region115: #{tpu_custom_call.1} parent=1 // pred_check_branch
      %231 = sbr.rel (0) target = $region117
    $region116: #{tpu_custom_call.1} parent=1 // pred_region
      %232 = dma.done [#allocation7], 256
    $region117: #{tpu_custom_call.1} parent=1 // pred_fallthru
      _
    // Predicated region
    $region118: #{tpu_custom_call.1} parent=1 // pred_check
      _
    $region119: #{tpu_custom_call.1} parent=1 // pred_check_branch
      %234 = sbr.rel (0) target = $region121
    $region120: #{tpu_custom_call.1} parent=1 // pred_region
      %235 = dma.done [#allocation10], 256
    $region121: #{tpu_custom_call.1} parent=1 // pred_fallthru
      _
    // Predicated region
    $region122: #{tpu_custom_call.1} parent=1 // pred_check
      _
    $region123: #{tpu_custom_call.1} parent=1 // pred_check_branch
      %237 = sbr.rel (0) target = $region125
    $region124: #{tpu_custom_call.1} parent=1 // pred_region
      %238 = dma.done [#allocation10], 32
    $region125: #{tpu_custom_call.1} parent=1 // pred_fallthru
      _
    // Predicated region
    $region126: #{tpu_custom_call.1} parent=1 // pred_check
      _
    $region127: #{tpu_custom_call.1} parent=1 // pred_check_branch
      %240 = sbr.rel (0) target = $region129
    $region128: #{tpu_custom_call.1} parent=1 // pred_region
      %241 = dma.done [#allocation13], 128
    $region129: #{tpu_custom_call.1} parent=1 // pred_fallthru
      _
    // Predicated region
    $region130: #{tpu_custom_call.1} parent=1 // pred_check
      _
    $region131: #{tpu_custom_call.1} parent=1 // pred_check_branch
      %243 = sbr.rel (0) target = $region133
    $region132: #{tpu_custom_call.1} parent=1 // pred_region
      %244 = dma.done [#allocation13], 16
    $region133: #{tpu_custom_call.1} parent=1 // pred_fallthru
      _
    // Predicated region
    $region134: #{tpu_custom_call.1} parent=1 // pred_check
      _
    $region135: #{tpu_custom_call.1} parent=1 // pred_check_branch
      %246 = sbr.rel (0) target = $region137
    $region136: #{tpu_custom_call.1} parent=1 // pred_region
      %247 = dma.done [#allocation16], 256
    $region137: #{tpu_custom_call.1} parent=1 // pred_fallthru
      _
    // Predicated region
    $region138: #{tpu_custom_call.1} parent=1 // pred_check
      _
    $region139: #{tpu_custom_call.1} parent=1 // pred_check_branch
      %249 = sbr.rel (0) target = $region141
    $region140: #{tpu_custom_call.1} parent=1 // pred_region
      %250 = dma.done [#allocation16], 16
    $region141: #{tpu_custom_call.1} parent=1 // pred_fallthru
      _
    // Predicated region
    $region142: #{tpu_custom_call.1} parent=1 // pred_check
      _
    $region143: #{tpu_custom_call.1} parent=1 // pred_check_branch
      %252 = sbr.rel (0) target = $region145
    $region144: #{tpu_custom_call.1} parent=1 // pred_region
      %253 = dma.done [#allocation19], 32
    $region145: #{tpu_custom_call.1} parent=1 // pred_fallthru
      _
    // Predicated region
    $region146: #{tpu_custom_call.1} parent=1 // pred_check
      _
    $region147: #{tpu_custom_call.1} parent=1 // pred_check_branch
      %255 = sbr.rel (0) target = $region149
    $region148: #{tpu_custom_call.1} parent=1 // pred_region
      %256 = dma.done [#allocation19], 32
    $region149: #{tpu_custom_call.1} parent=1 // pred_fallthru
      _
    // Predicated region
    $region150: #{tpu_custom_call.1} parent=1 // pred_check
      _
    $region151: #{tpu_custom_call.1} parent=1 // pred_check_branch
      %258 = sbr.rel (0) target = $region153
    $region152: #{tpu_custom_call.1} parent=1 // pred_region
      %259 = dma.done [#allocation22], 1024
    $region153: #{tpu_custom_call.1} parent=1 // pred_fallthru
      _
    // Predicated region
    $region154: #{tpu_custom_call.1} parent=1 // pred_check
      _
    $region155: #{tpu_custom_call.1} parent=1 // pred_check_branch
      %261 = sbr.rel (0) target = $region157
    $region156: #{tpu_custom_call.1} parent=1 // pred_region
      %262 = dma.done [#allocation22], 16
    $region157: #{tpu_custom_call.1} parent=1 // pred_fallthru
      _
    // Predicated region
    $region158: #{tpu_custom_call.1} parent=1 // pred_check
      _
    $region159: #{tpu_custom_call.1} parent=1 // pred_check_branch
      %264 = sbr.rel (0) target = $region161
    $region160: #{tpu_custom_call.1} parent=1 // pred_region
      %265 = dma.done [#allocation25], 64
    $region161: #{tpu_custom_call.1} parent=1 // pred_fallthru
      _
    // Predicated region
    $region162: #{tpu_custom_call.1} parent=1 // pred_check
      _
    $region163: #{tpu_custom_call.1} parent=1 // pred_check_branch
      %267 = sbr.rel (0) target = $region165
    $region164: #{tpu_custom_call.1} parent=1 // pred_region
      %268 = dma.done [#allocation25], 64
    $region165: #{tpu_custom_call.1} parent=1 // pred_fallthru
      _
    // Predicated region
    $region166: #{tpu_custom_call.1} parent=1 // pred_check
      _
    $region167: #{tpu_custom_call.1} parent=1 // pred_check_branch
      %270 = sbr.rel (0) target = $region169
    $region168: #{tpu_custom_call.1} parent=1 // pred_region
      %271 = dma.done [#allocation28], 2048
    $region169: #{tpu_custom_call.1} parent=1 // pred_fallthru
      _
    // Predicated region
    $region170: #{tpu_custom_call.1} parent=1 // pred_check
      _
    $region171: #{tpu_custom_call.1} parent=1 // pred_check_branch
      %273 = sbr.rel (0) target = $region173
    $region172: #{tpu_custom_call.1} parent=1 // pred_region
      %274 = dma.done [#allocation28], 1024
    $region173: #{tpu_custom_call.1} parent=1 // pred_fallthru
      _
    %v275 = vld [vmem:[#allocation20] sm:$0x3]
    %vm276 = vcmp.gt.f32.partialorder %v275, 0.0
    %v277 = vld [vmem:[#allocation9] sm:$0x3]
    %v278 = vld [vmem:[#allocation9 + $0x2] sm:$0x3]
    %v279 = vld [vmem:[#allocation9 + $0x4] sm:$0x3]
    %v280 = vld [vmem:[#allocation9 + $0x6] sm:$0x3]
    %v281 = vld [vmem:[#allocation9 + $0x8] sm:$0x3]
    %v282 = vld [vmem:[#allocation9 + $0xa] sm:$0x3]
    %v283 = vld [vmem:[#allocation9 + $0xc] sm:$0x3]
    %v284 = vld [vmem:[#allocation9 + $0xe] sm:$0x3]
    %v285 = vld [vmem:[#allocation6] sm:$0x3]
    %v286 = vld [vmem:[#allocation6 + $0x2] sm:$0x3]
    %v287 = vld [vmem:[#allocation6 + $0x4] sm:$0x3]
    %v288 = vld [vmem:[#allocation6 + $0x6] sm:$0x3]
    %v289 = vld [vmem:[#allocation6 + $0x8] sm:$0x3]
    %v290 = vld [vmem:[#allocation6 + $0xa] sm:$0x3]
    %v291 = vld [vmem:[#allocation6 + $0xc] sm:$0x3]
    %v292 = vld [vmem:[#allocation6 + $0xe] sm:$0x3]
    %v293 = vld [vmem:[#allocation12] sm:$0xff]
    %v294 = vld [vmem:[#allocation14] sm:$0x1]
    %v296 = vlaneseq
    %v297 = vshrl.u32 %v296, 7
    %v298 = vsub.s32 0, %v297
    %v299 = vrot.slane %v294, %v298
    %v309 = vcombine.low %v277, %v278
    %v310 = vcombine.low %v279, %v280
    %v312 = vunpack.c.l.s4 1983009808
    %v313 = vunpack.c.0.s8 %v312
    %v314 = vlaneseq
    %v315 = vshrl.u32 %v314, 7
    %v316 = vsub.s32 %v313, %v315
    %v317 = vrot.slane %v309, %v316
    %v319 = vunpack.c.l.s4 1983009808
    %v320 = vunpack.c.0.s8 %v319
    %v321 = vlaneseq
    %v322 = vshrl.u32 %v321, 7
    %v323 = vsub.s32 %v320, %v322
    %v324 = vrot.slane %v310, %v323
    %v325 = vcombine.low %v317, %v324
    %v326 = vcombine.low %v281, %v282
    %v327 = vcombine.low %v283, %v284
    %v329 = vunpack.c.l.s4 1983009808
    %v330 = vunpack.c.0.s8 %v329
    %v331 = vlaneseq
    %v332 = vshrl.u32 %v331, 7
    %v333 = vsub.s32 %v330, %v332
    %v334 = vrot.slane %v326, %v333
    %v336 = vunpack.c.l.s4 1983009808
    %v337 = vunpack.c.0.s8 %v336
    %v338 = vlaneseq
    %v339 = vshrl.u32 %v338, 7
    %v340 = vsub.s32 %v337, %v339
    %v341 = vrot.slane %v327, %v340
    %v342 = vcombine.low %v334, %v341
    %vm343 = vcmask 64512
    %v344 = vsel %vm343, %v325, 0
    %v346 = vsel %vm343, %v342, 0
    %348 = vmatprep.subr.mxu0 0.0
    %349 = vmatpush1.msra.mxu0 0.0
    %350 = vmatprep.subr.mxu0 0.0
    %351 = vmatpush1.msra.mxu0 0.0
    %352 = vmatprep.subr.mxu0 0.0
    %353 = vmatpush1.msra.mxu0 0.0
    %354 = vmatprep.subr.mxu0 0.0
    %355 = vmatpush1.msra.mxu0 0.0
    %356 = vmatprep.subr.mxu0 0.0
    %357 = vmatpush1.msra.mxu0 0.0
    %358 = vmatprep.subr.mxu0 0.0
    %359 = vmatpush1.msra.mxu0 0.0
    %360 = vmatprep.subr.mxu0 0.0
    %361 = vmatpush1.msra.mxu0 0.0
    %362 = vmatprep.subr.mxu0 0.0
    %363 = vmatpush1.msra.mxu0 0.0
    %364 = vmatprep.subr.mxu0 0.0
    %365 = vmatpush1.msra.mxu0 0.0
    %366 = vmatprep.subr.mxu0 0.0
    %367 = vmatpush1.msra.mxu0 0.0
    %368 = vmatprep.subr.mxu0 0.0
    %369 = vmatpush1.msra.mxu0 0.0
    %370 = vmatprep.subr.mxu0 0.0
    %371 = vmatpush1.msra.mxu0 0.0
    %372 = vmatprep.subr.mxu0 0.0
    %373 = vmatpush1.msra.mxu0 0.0
    %374 = vmatprep.subr.mxu0 0.0
    %375 = vmatpush1.msra.mxu0 0.0
    %376 = vmatprep.subr.mxu0 0.0
    %377 = vmatpush1.msra.mxu0 0.0
    %378 = vmatprep.subr.mxu0 0.0
    %379 = vmatpush1.msra.mxu0 %v293
    %380 = vmatprep.subr.mxu0 0.0
    %381 = vmatpush2.msra.mxu0 0.0
    %382 = vmatprep.subr.mxu0 0.0
    %383 = vmatpush2.msra.mxu0 0.0
    %384 = vmatprep.subr.mxu0 0.0
    %385 = vmatpush2.msra.mxu0 0.0
    %386 = vmatprep.subr.mxu0 0.0
    %387 = vmatpush2.msra.mxu0 0.0
    %388 = vmatprep.subr.mxu0 0.0
    %389 = vmatpush2.msra.mxu0 0.0
    %390 = vmatprep.subr.mxu0 0.0
    %391 = vmatpush2.msra.mxu0 0.0
    %392 = vmatprep.subr.mxu0 0.0
    %393 = vmatpush2.msra.mxu0 0.0
    %394 = vmatprep.subr.mxu0 0.0
    %395 = vmatpush2.msra.mxu0 0.0
    %396 = vmatprep.subr.mxu0 0.0
    %397 = vmatpush2.msra.mxu0 0.0
    %398 = vmatprep.subr.mxu0 0.0
    %399 = vmatpush2.msra.mxu0 0.0
    %400 = vmatprep.subr.mxu0 0.0
    %401 = vmatpush2.msra.mxu0 0.0
    %402 = vmatprep.subr.mxu0 0.0
    %403 = vmatpush2.msra.mxu0 0.0
    %404 = vmatprep.subr.mxu0 0.0
    %405 = vmatpush2.msra.mxu0 0.0
    %406 = vmatprep.subr.mxu0 0.0
    %407 = vmatpush2.msra.mxu0 0.0
    %408 = vmatprep.subr.mxu0 0.0
    %409 = vmatpush2.msra.mxu0 0.0
    %410 = vmatprep.subr.mxu0 0.0
    %411 = vmatpush2.msra.mxu0 0.0
    %412 = vmatprep.mubr.f32.mxu0 0.0
    %413 = vmatmul.mubr.f32.gmra.mxu0 %v344
    %v414 = vpop.f32.mrf.mxu0
    %v415 = vadd.f32 %v299, %v414
    %v416 = vpop.f32.mrf.mxu0
    %417 = vmatprep.mubr.f32.mxu0 0.0
    %418 = vmatmul.mubr.f32.gmra.mxu0 %v346
    %v419 = vpop.f32.mrf.mxu0
    %v420 = vadd.f32 %v299, %v419
    %v421 = vpop.f32.mrf.mxu0
    %422 = vdwg.mxu0
    %v423 = vmax.f32 %v415, 0.0
    %v424 = vmax.f32 %v420, 0.0
    %v425 = vld [vmem:[%s5] sm:$0xff]
    %v426 = vld [vmem:[%s5 + $0x8] sm:$0xff]
    %v427 = vld [vmem:[%s5 + $0x10] sm:$0xff]
    %v428 = vld [vmem:[%s5 + $0x18] sm:$0xff]
    %v429 = vld [vmem:[%s5 + $0x20] sm:$0xff]
    %v430 = vld [vmem:[%s5 + $0x28] sm:$0xff]
    %v431 = vld [vmem:[#allocation15] sm:$0xff]
    %v432 = vld [vmem:[#allocation15 + $0x8] sm:$0xff]
    %vm433 = vcmask 130048
    %v435 = vsel %vm433, %v423, 0
    %v438 = vsel %vm433, %v424, 0
    %440 = vmatprep.subr.mxu0 0.0
    %441 = vmatpush1.msra.mxu0 0.0
    %442 = vmatprep.subr.mxu0 0.0
    %443 = vmatpush1.msra.mxu0 0.0
    %444 = vmatprep.subr.mxu0 0.0
    %445 = vmatpush1.msra.mxu0 0.0
    %446 = vmatprep.subr.mxu0 0.0
    %447 = vmatpush1.msra.mxu0 0.0
    %448 = vmatprep.subr.mxu0 0.0
    %449 = vmatpush1.msra.mxu0 0.0
    %450 = vmatprep.subr.mxu0 0.0
    %451 = vmatpush1.msra.mxu0 0.0
    %452 = vmatprep.subr.mxu0 0.0
    %453 = vmatpush1.msra.mxu0 0.0
    %454 = vmatprep.subr.mxu0 0.0
    %455 = vmatpush1.msra.mxu0 0.0
    %456 = vmatprep.subr.mxu0 0.0
    %457 = vmatpush1.msra.mxu0 0.0
    %458 = vmatprep.subr.mxu0 0.0
    %459 = vmatpush1.msra.mxu0 0.0
    %460 = vmatprep.subr.mxu0 0.0
    %461 = vmatpush1.msra.mxu0 0.0
    %462 = vmatprep.subr.mxu0 0.0
    %463 = vmatpush1.msra.mxu0 0.0
    %464 = vmatprep.subr.mxu0 0.0
    %465 = vmatpush1.msra.mxu0 0.0
    %466 = vmatprep.subr.mxu0 0.0
    %467 = vmatpush1.msra.mxu0 0.0
    %468 = vmatprep.subr.mxu0 0.0
    %469 = vmatpush1.msra.mxu0 %v432
    %470 = vmatprep.subr.mxu0 0.0
    %471 = vmatpush1.msra.mxu0 %v431
    %472 = vmatprep.subr.mxu0 0.0
    %473 = vmatpush2.msra.mxu0 0.0
    %474 = vmatprep.subr.mxu0 0.0
    %475 = vmatpush2.msra.mxu0 0.0
    %476 = vmatprep.subr.mxu0 0.0
    %477 = vmatpush2.msra.mxu0 0.0
    %478 = vmatprep.subr.mxu0 0.0
    %479 = vmatpush2.msra.mxu0 0.0
    %480 = vmatprep.subr.mxu0 0.0
    %481 = vmatpush2.msra.mxu0 0.0
    %482 = vmatprep.subr.mxu0 0.0
    %483 = vmatpush2.msra.mxu0 0.0
    %484 = vmatprep.subr.mxu0 0.0
    %485 = vmatpush2.msra.mxu0 0.0
    %486 = vmatprep.subr.mxu0 0.0
    %487 = vmatpush2.msra.mxu0 0.0
    %488 = vmatprep.subr.mxu0 0.0
    %489 = vmatpush2.msra.mxu0 0.0
    %490 = vmatprep.subr.mxu0 0.0
    %491 = vmatpush2.msra.mxu0 0.0
    %492 = vmatprep.subr.mxu0 0.0
    %493 = vmatpush2.msra.mxu0 0.0
    %494 = vmatprep.subr.mxu0 0.0
    %495 = vmatpush2.msra.mxu0 0.0
    %496 = vmatprep.subr.mxu0 0.0
    %497 = vmatpush2.msra.mxu0 0.0
    %498 = vmatprep.subr.mxu0 0.0
    %499 = vmatpush2.msra.mxu0 0.0
    %500 = vmatprep.subr.mxu0 0.0
    %501 = vmatpush2.msra.mxu0 0.0
    %502 = vmatprep.subr.mxu0 0.0
    %503 = vmatpush2.msra.mxu0 0.0
    %504 = vmatprep.mubr.f32.mxu0 0.0
    %505 = vmatmul.mubr.f32.gmra.mxu0 %v435
    %v506 = vpop.f32.mrf.mxu0
    %v507 = vadd.f32 0.0, %v506
    %v508 = vpop.f32.mrf.mxu0
    %509 = vmatprep.mubr.f32.mxu0 0.0
    %510 = vmatmul.mubr.f32.gmra.mxu0 %v438
    %v511 = vpop.f32.mrf.mxu0
    %v512 = vadd.f32 0.0, %v511
    %v513 = vpop.f32.mrf.mxu0
    %514 = vdwg.mxu0
    %v523 = vcombine.low %v285, %v286
    %v524 = vcombine.low %v287, %v288
    %v526 = vunpack.c.l.s4 1983009808
    %v527 = vunpack.c.0.s8 %v526
    %v528 = vlaneseq
    %v529 = vshrl.u32 %v528, 7
    %v530 = vsub.s32 %v527, %v529
    %v531 = vrot.slane %v523, %v530
    %v533 = vunpack.c.l.s4 1983009808
    %v534 = vunpack.c.0.s8 %v533
    %v535 = vlaneseq
    %v536 = vshrl.u32 %v535, 7
    %v537 = vsub.s32 %v534, %v536
    %v538 = vrot.slane %v524, %v537
    %v539 = vcombine.low %v531, %v538
    %v540 = vcombine.low %v289, %v290
    %v541 = vcombine.low %v291, %v292
    %v543 = vunpack.c.l.s4 1983009808
    %v544 = vunpack.c.0.s8 %v543
    %v545 = vlaneseq
    %v546 = vshrl.u32 %v545, 7
    %v547 = vsub.s32 %v544, %v546
    %v548 = vrot.slane %v540, %v547
    %v550 = vunpack.c.l.s4 1983009808
    %v551 = vunpack.c.0.s8 %v550
    %v552 = vlaneseq
    %v553 = vshrl.u32 %v552, 7
    %v554 = vsub.s32 %v551, %v553
    %v555 = vrot.slane %v541, %v554
    %v556 = vcombine.low %v548, %v555
    %vm557 = vcmask 392192
    %v558 = vsel %vm557, %v539, 0
    %v560 = vsel %vm557, %v556, 0
    %562 = vmatprep.subr.mxu0 0.0
    %563 = vmatpush1.msra.mxu0 0.0
    %564 = vmatprep.subr.mxu0 0.0
    %565 = vmatpush1.msra.mxu0 0.0
    %566 = vmatprep.subr.mxu0 0.0
    %567 = vmatpush1.msra.mxu0 0.0
    %568 = vmatprep.subr.mxu0 0.0
    %569 = vmatpush1.msra.mxu0 0.0
    %570 = vmatprep.subr.mxu0 0.0
    %571 = vmatpush1.msra.mxu0 0.0
    %572 = vmatprep.subr.mxu0 0.0
    %573 = vmatpush1.msra.mxu0 0.0
    %574 = vmatprep.subr.mxu0 0.0
    %575 = vmatpush1.msra.mxu0 0.0
    %576 = vmatprep.subr.mxu0 0.0
    %577 = vmatpush1.msra.mxu0 0.0
    %578 = vmatprep.subr.mxu0 0.0
    %579 = vmatpush1.msra.mxu0 0.0
    %580 = vmatprep.subr.mxu0 0.0
    %581 = vmatpush1.msra.mxu0 0.0
    %582 = vmatprep.subr.mxu0 0.0
    %583 = vmatpush1.msra.mxu0 %v430
    %584 = vmatprep.subr.mxu0 0.0
    %585 = vmatpush1.msra.mxu0 %v429
    %586 = vmatprep.subr.mxu0 0.0
    %587 = vmatpush1.msra.mxu0 %v428
    %588 = vmatprep.subr.mxu0 0.0
    %589 = vmatpush1.msra.mxu0 %v427
    %590 = vmatprep.subr.mxu0 0.0
    %591 = vmatpush1.msra.mxu0 %v426
    %592 = vmatprep.subr.mxu0 0.0
    %593 = vmatpush1.msra.mxu0 %v425
    %594 = vmatprep.subr.mxu0 0.0
    %595 = vmatpush2.msra.mxu0 0.0
    %596 = vmatprep.subr.mxu0 0.0
    %597 = vmatpush2.msra.mxu0 0.0
    %598 = vmatprep.subr.mxu0 0.0
    %599 = vmatpush2.msra.mxu0 0.0
    %600 = vmatprep.subr.mxu0 0.0
    %601 = vmatpush2.msra.mxu0 0.0
    %602 = vmatprep.subr.mxu0 0.0
    %603 = vmatpush2.msra.mxu0 0.0
    %604 = vmatprep.subr.mxu0 0.0
    %605 = vmatpush2.msra.mxu0 0.0
    %606 = vmatprep.subr.mxu0 0.0
    %607 = vmatpush2.msra.mxu0 0.0
    %608 = vmatprep.subr.mxu0 0.0
    %609 = vmatpush2.msra.mxu0 0.0
    %610 = vmatprep.subr.mxu0 0.0
    %611 = vmatpush2.msra.mxu0 0.0
    %612 = vmatprep.subr.mxu0 0.0
    %613 = vmatpush2.msra.mxu0 0.0
    %614 = vmatprep.subr.mxu0 0.0
    %615 = vmatpush2.msra.mxu0 0.0
    %616 = vmatprep.subr.mxu0 0.0
    %617 = vmatpush2.msra.mxu0 0.0
    %618 = vmatprep.subr.mxu0 0.0
    %619 = vmatpush2.msra.mxu0 0.0
    %620 = vmatprep.subr.mxu0 0.0
    %621 = vmatpush2.msra.mxu0 0.0
    %622 = vmatprep.subr.mxu0 0.0
    %623 = vmatpush2.msra.mxu0 0.0
    %624 = vmatprep.subr.mxu0 0.0
    %625 = vmatpush2.msra.mxu0 0.0
    %626 = vmatprep.mubr.f32.mxu0 0.0
    %627 = vmatmul.mubr.f32.gmra.mxu0 %v558
    %v628 = vpop.f32.mrf.mxu0
    %v629 = vadd.f32 %v507, %v628
    %v630 = vpop.f32.mrf.mxu0
    %631 = vmatprep.mubr.f32.mxu0 0.0
    %632 = vmatmul.mubr.f32.gmra.mxu0 %v560
    %v633 = vpop.f32.mrf.mxu0
    %v634 = vadd.f32 %v512, %v633
    %v635 = vpop.f32.mrf.mxu0
    %636 = vdwg.mxu0
    %v637 = vld [vmem:[#allocation17] sm:$0x1]
    %v639 = vlaneseq
    %v640 = vshrl.u32 %v639, 7
    %v641 = vsub.s32 0, %v640
    %v642 = vrot.slane %v637, %v641
    %v644 = vadd.f32 %v629, %v642
    %v645 = vadd.f32 %v634, %v642
    %v646 = vmax.f32 %v644, 0.0
    %v647 = vmax.f32 %v645, 0.0
    %v648 = vld [vmem:[%s8] sm:$0xff]
    %v649 = vld [vmem:[%s8 + $0x8] sm:$0xff]
    %v650 = vld [vmem:[%s8 + $0x10] sm:$0xff]
    %v651 = vld [vmem:[%s8 + $0x18] sm:$0xff]
    %v652 = vld [vmem:[%s8 + $0x20] sm:$0xff]
    %v653 = vld [vmem:[%s8 + $0x28] sm:$0xff]
    %v654 = vld [vmem:[%s8 + $0x30] sm:$0xff]
    %v655 = vld [vmem:[%s8 + $0x38] sm:$0xff]
    %v656 = vld [vmem:[%s9] sm:$0xff]
    %v657 = vld [vmem:[%s9 + $0x8] sm:$0xff]
    %v658 = vld [vmem:[%s9 + $0x10] sm:$0xff]
    %v659 = vld [vmem:[%s9 + $0x18] sm:$0xff]
    %v660 = vld [vmem:[%s9 + $0x20] sm:$0xff]
    %v661 = vld [vmem:[%s9 + $0x28] sm:$0xff]
    %v662 = vld [vmem:[%s9 + $0x30] sm:$0xff]
    %v663 = vld [vmem:[%s9 + $0x38] sm:$0xff]
    %v664 = vld [vmem:[%s9 + $0x40] sm:$0xff]
    %v665 = vld [vmem:[%s9 + $0x48] sm:$0xff]
    %v666 = vld [vmem:[%s9 + $0x50] sm:$0xff]
    %v667 = vld [vmem:[%s9 + $0x58] sm:$0xff]
    %v668 = vld [vmem:[%s9 + $0x60] sm:$0xff]
    %v669 = vld [vmem:[%s9 + $0x68] sm:$0xff]
    %v670 = vld [vmem:[%s9 + $0x70] sm:$0xff]
    %v671 = vld [vmem:[%s9 + $0x78] sm:$0xff]
    %v672 = vld [vmem:[#allocation18] sm:$0x3]
    %v674 = vlaneseq
    %v675 = vshrl.u32 %v674, 7
    %v676 = vsub.s32 0, %v675
    %v677 = vrot.slane %v672, %v676
    %v678 = vlaneseq
    %v679 = vshrl.u32 %v678, 7
    %v680 = vsub.s32 1, %v679
    %v681 = vrot.slane %v672, %v680
    %vm684 = vcmask 261120
    %v686 = vsel %vm684, %v646, 0
    %v689 = vsel %vm684, %v647, 0
    %691 = vmatprep.subr.mxu0 0.0
    %692 = vmatpush1.msra.mxu0 0.0
    %693 = vmatprep.subr.mxu0 0.0
    %694 = vmatpush1.msra.mxu0 0.0
    %695 = vmatprep.subr.mxu0 0.0
    %696 = vmatpush1.msra.mxu0 0.0
    %697 = vmatprep.subr.mxu0 0.0
    %698 = vmatpush1.msra.mxu0 0.0
    %699 = vmatprep.subr.mxu0 0.0
    %700 = vmatpush1.msra.mxu0 0.0
    %701 = vmatprep.subr.mxu0 0.0
    %702 = vmatpush1.msra.mxu0 0.0
    %703 = vmatprep.subr.mxu0 0.0
    %704 = vmatpush1.msra.mxu0 0.0
    %705 = vmatprep.subr.mxu0 0.0
    %706 = vmatpush1.msra.mxu0 0.0
    %707 = vmatprep.subr.mxu0 0.0
    %708 = vmatpush1.msra.mxu0 0.0
    %709 = vmatprep.subr.mxu0 0.0
    %710 = vmatpush1.msra.mxu0 0.0
    %711 = vmatprep.subr.mxu0 0.0
    %712 = vmatpush1.msra.mxu0 0.0
    %713 = vmatprep.subr.mxu0 0.0
    %714 = vmatpush1.msra.mxu0 0.0
    %715 = vmatprep.subr.mxu0 %v655
    %716 = vmatpush1.msra.mxu0 %v654
    %717 = vmatprep.subr.mxu0 %v653
    %718 = vmatpush1.msra.mxu0 %v652
    %719 = vmatprep.subr.mxu0 %v651
    %720 = vmatpush1.msra.mxu0 %v650
    %721 = vmatprep.subr.mxu0 %v649
    %722 = vmatpush1.msra.mxu0 %v648
    %723 = vmatprep.subr.mxu0 0.0
    %724 = vmatpush2.msra.mxu0 0.0
    %725 = vmatprep.subr.mxu0 0.0
    %726 = vmatpush2.msra.mxu0 0.0
    %727 = vmatprep.subr.mxu0 0.0
    %728 = vmatpush2.msra.mxu0 0.0
    %729 = vmatprep.subr.mxu0 0.0
    %730 = vmatpush2.msra.mxu0 0.0
    %731 = vmatprep.subr.mxu0 0.0
    %732 = vmatpush2.msra.mxu0 0.0
    %733 = vmatprep.subr.mxu0 0.0
    %734 = vmatpush2.msra.mxu0 0.0
    %735 = vmatprep.subr.mxu0 0.0
    %736 = vmatpush2.msra.mxu0 0.0
    %737 = vmatprep.subr.mxu0 0.0
    %738 = vmatpush2.msra.mxu0 0.0
    %739 = vmatprep.subr.mxu0 0.0
    %740 = vmatpush2.msra.mxu0 0.0
    %741 = vmatprep.subr.mxu0 0.0
    %742 = vmatpush2.msra.mxu0 0.0
    %743 = vmatprep.subr.mxu0 0.0
    %744 = vmatpush2.msra.mxu0 0.0
    %745 = vmatprep.subr.mxu0 0.0
    %746 = vmatpush2.msra.mxu0 0.0
    %747 = vmatprep.subr.mxu0 0.0
    %748 = vmatpush2.msra.mxu0 0.0
    %749 = vmatprep.subr.mxu0 0.0
    %750 = vmatpush2.msra.mxu0 0.0
    %751 = vmatprep.subr.mxu0 0.0
    %752 = vmatpush2.msra.mxu0 0.0
    %753 = vmatprep.subr.mxu0 0.0
    %754 = vmatpush2.msra.mxu0 0.0
    %755 = vmatprep.mubr.f32.mxu0 0.0
    %756 = vmatmul.mubr.f32.gmra.mxu0 %v686
    %v757 = vpop.f32.mrf.mxu0
    %v758 = vadd.f32 %v677, %v757
    %v759 = vpop.f32.mrf.mxu0
    %v760 = vadd.f32 %v681, %v759
    %761 = vmatprep.mubr.f32.mxu0 0.0
    %762 = vmatmul.mubr.f32.gmra.mxu0 %v689
    %v763 = vpop.f32.mrf.mxu0
    %v764 = vadd.f32 %v677, %v763
    %v765 = vpop.f32.mrf.mxu0
    %v766 = vadd.f32 %v681, %v765
    %767 = vdwg.mxu0
    %v768 = vsel %vm276, 1, 0
    %v769 = vlaneseq
    %v770 = vshrl.u32 %v769, 7
    %v771 = vsub.s32 0, %v770
    %v772 = vrot.slane %v768, %v771
    %v773 = vlaneseq
    %v774 = vshrl.u32 %v773, 7
    %v775 = vsub.s32 1, %v774
    %v776 = vrot.slane %v768, %v775
    %vm777 = vcmp.eq.s32.totalorder %v772, 1
    %vm778 = vcmp.eq.s32.totalorder %v776, 1
    %v781 = vrot.slane %v764, 6
    %v782 = vrot.slane %v766, 6
    %v785 = vsel %vm777, %v758, %v781
    %v786 = vsel %vm778, %v760, %v782
    %vm787 = vcmask 523264
    %v789 = vsel %vm787, 0.0, 0
    %791 = vmatprep.subr.mxu0 0.0
    %792 = vmatpush1.msra.mxu0 0.0
    %793 = vmatprep.subr.mxu0 0.0
    %794 = vmatpush1.msra.mxu0 0.0
    %795 = vmatprep.subr.mxu0 0.0
    %796 = vmatpush1.msra.mxu0 0.0
    %797 = vmatprep.subr.mxu0 0.0
    %798 = vmatpush1.msra.mxu0 0.0
    %799 = vmatprep.subr.mxu0 0.0
    %800 = vmatpush1.msra.mxu0 0.0
    %801 = vmatprep.subr.mxu0 0.0
    %802 = vmatpush1.msra.mxu0 0.0
    %803 = vmatprep.subr.mxu0 0.0
    %804 = vmatpush1.msra.mxu0 0.0
    %805 = vmatprep.subr.mxu0 0.0
    %806 = vmatpush1.msra.mxu0 0.0
    %807 = vmatprep.subr.mxu0 %v671
    %808 = vmatpush1.msra.mxu0 %v670
    %809 = vmatprep.subr.mxu0 %v669
    %810 = vmatpush1.msra.mxu0 %v668
    %811 = vmatprep.subr.mxu0 %v667
    %812 = vmatpush1.msra.mxu0 %v666
    %813 = vmatprep.subr.mxu0 %v665
    %814 = vmatpush1.msra.mxu0 %v664
    %815 = vmatprep.subr.mxu0 %v663
    %816 = vmatpush1.msra.mxu0 %v662
    %817 = vmatprep.subr.mxu0 %v661
    %818 = vmatpush1.msra.mxu0 %v660
    %819 = vmatprep.subr.mxu0 %v659
    %820 = vmatpush1.msra.mxu0 %v658
    %821 = vmatprep.subr.mxu0 %v657
    %822 = vmatpush1.msra.mxu0 %v656
    %823 = vmatprep.subr.mxu0 0.0
    %824 = vmatpush2.msra.mxu0 0.0
    %825 = vmatprep.subr.mxu0 0.0
    %826 = vmatpush2.msra.mxu0 0.0
    %827 = vmatprep.subr.mxu0 0.0
    %828 = vmatpush2.msra.mxu0 0.0
    %829 = vmatprep.subr.mxu0 0.0
    %830 = vmatpush2.msra.mxu0 0.0
    %831 = vmatprep.subr.mxu0 0.0
    %832 = vmatpush2.msra.mxu0 0.0
    %833 = vmatprep.subr.mxu0 0.0
    %834 = vmatpush2.msra.mxu0 0.0
    %835 = vmatprep.subr.mxu0 0.0
    %836 = vmatpush2.msra.mxu0 0.0
    %837 = vmatprep.subr.mxu0 0.0
    %838 = vmatpush2.msra.mxu0 0.0
    %839 = vmatprep.subr.mxu0 0.0
    %840 = vmatpush2.msra.mxu0 0.0
    %841 = vmatprep.subr.mxu0 0.0
    %842 = vmatpush2.msra.mxu0 0.0
    %843 = vmatprep.subr.mxu0 0.0
    %844 = vmatpush2.msra.mxu0 0.0
    %845 = vmatprep.subr.mxu0 0.0
    %846 = vmatpush2.msra.mxu0 0.0
    %847 = vmatprep.subr.mxu0 0.0
    %848 = vmatpush2.msra.mxu0 0.0
    %849 = vmatprep.subr.mxu0 0.0
    %850 = vmatpush2.msra.mxu0 0.0
    %851 = vmatprep.subr.mxu0 0.0
    %852 = vmatpush2.msra.mxu0 0.0
    %853 = vmatprep.subr.mxu0 0.0
    %854 = vmatpush2.msra.mxu0 0.0
    %855 = vmatprep.mubr.f32.mxu0 0.0
    %856 = vmatmul.mubr.f32.gmra.mxu0 %v789
    %v857 = vpop.f32.mrf.mxu0
    %v858 = vadd.f32 0.0, %v857
    %v859 = vpop.f32.mrf.mxu0
    %v860 = vadd.f32 0.0, %v859
    %861 = vdwg.mxu0
    %v862 = vadd.f32 %v785, %v858
    %v863 = vadd.f32 %v786, %v860
    %v864 = vxor.u32 %v862, 2147483648
    %v865 = vxor.u32 %v863, 2147483648
    %v866 = vmul.f32 %v864, 1.442695
    %v867 = vpow.pop %v866
    %v868 = vmul.f32 %v865, 1.442695
    %v869 = vpow.pop %v868
    %v870 = vadd.f32 %v867, 1.0
    %v871 = vadd.f32 %v869, 1.0
    %v872 = vrcp.pop %v870
    %v873 = vmul.f32 1.0, %v872
    %v874 = vrcp.pop %v871
    %v875 = vmul.f32 1.0, %v874
    %v876 = vtanh.pop %v863
    %v877 = vmul.f32 %v873, 0.0
    %879 = vrot.lane.b32.xlu0 %v876, 64
    %v880 = vpop.permute.xlu0 %879
    %v882 = vmul.f32 %v873, %v880
    %884 = vrot.lane.b32.xlu0 %v882, 64
    %v885 = vpop.permute.xlu0 %884
    %v887 = vadd.f32 %v877, %v885
    %v888 = vtanh.pop %v887
    %890 = vrot.lane.b32.xlu0 %v888, 64
    %v891 = vpop.permute.xlu0 %890
    %v893 = vmul.f32 %v875, %v891
    %vm894 = vcmask 254976
    %895 = vst.msk [vmem:[#allocation2] sm:$0x3] %vm894, %v893
    %897 = vrot.lane.b32.xlu0 %v893, 96
    %v898 = vpop.permute.xlu0 %897
    %900 = vst.msk [vmem:[#allocation3 + $0xe] sm:$0x3] %vm894, %v898
    %v901 = vrot.slane %v764, 2
    %v902 = vrot.slane %v766, 2
    %v905 = vsel %vm777, %v758, %v901
    %v906 = vsel %vm778, %v760, %v902
    %v907 = vsel %vm787, %v893, 0
    %909 = vmatprep.subr.mxu0 0.0
    %910 = vmatpush1.msra.mxu0 0.0
    %911 = vmatprep.subr.mxu0 0.0
    %912 = vmatpush1.msra.mxu0 0.0
    %913 = vmatprep.subr.mxu0 0.0
    %914 = vmatpush1.msra.mxu0 0.0
    %915 = vmatprep.subr.mxu0 0.0
    %916 = vmatpush1.msra.mxu0 0.0
    %917 = vmatprep.subr.mxu0 0.0
    %918 = vmatpush1.msra.mxu0 0.0
    %919 = vmatprep.subr.mxu0 0.0
    %920 = vmatpush1.msra.mxu0 0.0
    %921 = vmatprep.subr.mxu0 0.0
    %922 = vmatpush1.msra.mxu0 0.0
    %923 = vmatprep.subr.mxu0 0.0
    %924 = vmatpush1.msra.mxu0 0.0
    %925 = vmatprep.subr.mxu0 %v671
    %926 = vmatpush1.msra.mxu0 %v670
    %927 = vmatprep.subr.mxu0 %v669
    %928 = vmatpush1.msra.mxu0 %v668
    %929 = vmatprep.subr.mxu0 %v667
    %930 = vmatpush1.msra.mxu0 %v666
    %931 = vmatprep.subr.mxu0 %v665
    %932 = vmatpush1.msra.mxu0 %v664
    %933 = vmatprep.subr.mxu0 %v663
    %934 = vmatpush1.msra.mxu0 %v662
    %935 = vmatprep.subr.mxu0 %v661
    %936 = vmatpush1.msra.mxu0 %v660
    %937 = vmatprep.subr.mxu0 %v659
    %938 = vmatpush1.msra.mxu0 %v658
    %939 = vmatprep.subr.mxu0 %v657
    %940 = vmatpush1.msra.mxu0 %v656
    %941 = vmatprep.subr.mxu0 0.0
    %942 = vmatpush2.msra.mxu0 0.0
    %943 = vmatprep.subr.mxu0 0.0
    %944 = vmatpush2.msra.mxu0 0.0
    %945 = vmatprep.subr.mxu0 0.0
    %946 = vmatpush2.msra.mxu0 0.0
    %947 = vmatprep.subr.mxu0 0.0
    %948 = vmatpush2.msra.mxu0 0.0
    %949 = vmatprep.subr.mxu0 0.0
    %950 = vmatpush2.msra.mxu0 0.0
    %951 = vmatprep.subr.mxu0 0.0
    %952 = vmatpush2.msra.mxu0 0.0
    %953 = vmatprep.subr.mxu0 0.0
    %954 = vmatpush2.msra.mxu0 0.0
    %955 = vmatprep.subr.mxu0 0.0
    %956 = vmatpush2.msra.mxu0 0.0
    %957 = vmatprep.subr.mxu0 0.0
    %958 = vmatpush2.msra.mxu0 0.0
    %959 = vmatprep.subr.mxu0 0.0
    %960 = vmatpush2.msra.mxu0 0.0
    %961 = vmatprep.subr.mxu0 0.0
    %962 = vmatpush2.msra.mxu0 0.0
    %963 = vmatprep.subr.mxu0 0.0
    %964 = vmatpush2.msra.mxu0 0.0
    %965 = vmatprep.subr.mxu0 0.0
    %966 = vmatpush2.msra.mxu0 0.0
    %967 = vmatprep.subr.mxu0 0.0
    %968 = vmatpush2.msra.mxu0 0.0
    %969 = vmatprep.subr.mxu0 0.0
    %970 = vmatpush2.msra.mxu0 0.0
    %971 = vmatprep.subr.mxu0 0.0
    %972 = vmatpush2.msra.mxu0 0.0
    %973 = vmatprep.mubr.f32.mxu0 0.0
    %974 = vmatmul.mubr.f32.gmra.mxu0 %v907
    %v975 = vpop.f32.mrf.mxu0
    %v976 = vadd.f32 0.0, %v975
    %v977 = vpop.f32.mrf.mxu0
    %v978 = vadd.f32 0.0, %v977
    %979 = vdwg.mxu0
    %v982 = vrot.slane %v976, 6
    %v983 = vrot.slane %v978, 6
    %v986 = vadd.f32 %v905, %v982
    %v987 = vadd.f32 %v906, %v983
    %v988 = vxor.u32 %v986, 2147483648
    %v989 = vxor.u32 %v987, 2147483648
    %v990 = vmul.f32 %v988, 1.442695
    %v991 = vpow.pop %v990
    %v992 = vmul.f32 %v989, 1.442695
    %v993 = vpow.pop %v992
    %v994 = vadd.f32 %v991, 1.0
    %v995 = vadd.f32 %v993, 1.0
    %v996 = vrcp.pop %v994
    %v997 = vmul.f32 1.0, %v996
    %v998 = vrcp.pop %v995
    %v999 = vmul.f32 1.0, %v998
    %v1000 = vtanh.pop %v987
    %v1002 = vrot.slane %v887, 6
    %v1004 = vmul.f32 %v997, %v1002
    %1006 = vrot.lane.b32.xlu0 %v1000, 64
    %v1007 = vpop.permute.xlu0 %1006
    %v1009 = vmul.f32 %v997, %v1007
    %1011 = vrot.lane.b32.xlu0 %v1009, 64
    %v1012 = vpop.permute.xlu0 %1011
    %v1014 = vadd.f32 %v1004, %v1012
    %v1015 = vtanh.pop %v1014
    %1017 = vrot.lane.b32.xlu0 %v1015, 64
    %v1018 = vpop.permute.xlu0 %1017
    %v1020 = vmul.f32 %v999, %v1018
    %vm1021 = vcmask 257026
    %1022 = vst.msk [vmem:[#allocation2] sm:$0xc] %vm1021, %v1020
    %1024 = vrot.lane.b32.xlu0 %v1020, 96
    %v1025 = vpop.permute.xlu0 %1024
    %1027 = vst.msk [vmem:[#allocation3 + $0xa] sm:$0xc] %vm1021, %v1025
    %v1028 = vrot.slane %v1020, 2
    %v1029 = vsel %vm787, %v1028, 0
    %1031 = vmatprep.subr.mxu0 0.0
    %1032 = vmatpush1.msra.mxu0 0.0
    %1033 = vmatprep.subr.mxu0 0.0
    %1034 = vmatpush1.msra.mxu0 0.0
    %1035 = vmatprep.subr.mxu0 0.0
    %1036 = vmatpush1.msra.mxu0 0.0
    %1037 = vmatprep.subr.mxu0 0.0
    %1038 = vmatpush1.msra.mxu0 0.0
    %1039 = vmatprep.subr.mxu0 0.0
    %1040 = vmatpush1.msra.mxu0 0.0
    %1041 = vmatprep.subr.mxu0 0.0
    %1042 = vmatpush1.msra.mxu0 0.0
    %1043 = vmatprep.subr.mxu0 0.0
    %1044 = vmatpush1.msra.mxu0 0.0
    %1045 = vmatprep.subr.mxu0 0.0
    %1046 = vmatpush1.msra.mxu0 0.0
    %1047 = vmatprep.subr.mxu0 %v671
    %1048 = vmatpush1.msra.mxu0 %v670
    %1049 = vmatprep.subr.mxu0 %v669
    %1050 = vmatpush1.msra.mxu0 %v668
    %1051 = vmatprep.subr.mxu0 %v667
    %1052 = vmatpush1.msra.mxu0 %v666
    %1053 = vmatprep.subr.mxu0 %v665
    %1054 = vmatpush1.msra.mxu0 %v664
    %1055 = vmatprep.subr.mxu0 %v663
    %1056 = vmatpush1.msra.mxu0 %v662
    %1057 = vmatprep.subr.mxu0 %v661
    %1058 = vmatpush1.msra.mxu0 %v660
    %1059 = vmatprep.subr.mxu0 %v659
    %1060 = vmatpush1.msra.mxu0 %v658
    %1061 = vmatprep.subr.mxu0 %v657
    %1062 = vmatpush1.msra.mxu0 %v656
    %1063 = vmatprep.subr.mxu0 0.0
    %1064 = vmatpush2.msra.mxu0 0.0
    %1065 = vmatprep.subr.mxu0 0.0
    %1066 = vmatpush2.msra.mxu0 0.0
    %1067 = vmatprep.subr.mxu0 0.0
    %1068 = vmatpush2.msra.mxu0 0.0
    %1069 = vmatprep.subr.mxu0 0.0
    %1070 = vmatpush2.msra.mxu0 0.0
    %1071 = vmatprep.subr.mxu0 0.0
    %1072 = vmatpush2.msra.mxu0 0.0
    %1073 = vmatprep.subr.mxu0 0.0
    %1074 = vmatpush2.msra.mxu0 0.0
    %1075 = vmatprep.subr.mxu0 0.0
    %1076 = vmatpush2.msra.mxu0 0.0
    %1077 = vmatprep.subr.mxu0 0.0
    %1078 = vmatpush2.msra.mxu0 0.0
    %1079 = vmatprep.subr.mxu0 0.0
    %1080 = vmatpush2.msra.mxu0 0.0
    %1081 = vmatprep.subr.mxu0 0.0
    %1082 = vmatpush2.msra.mxu0 0.0
    %1083 = vmatprep.subr.mxu0 0.0
    %1084 = vmatpush2.msra.mxu0 0.0
    %1085 = vmatprep.subr.mxu0 0.0
    %1086 = vmatpush2.msra.mxu0 0.0
    %1087 = vmatprep.subr.mxu0 0.0
    %1088 = vmatpush2.msra.mxu0 0.0
    %1089 = vmatprep.subr.mxu0 0.0
    %1090 = vmatpush2.msra.mxu0 0.0
    %1091 = vmatprep.subr.mxu0 0.0
    %1092 = vmatpush2.msra.mxu0 0.0
    %1093 = vmatprep.subr.mxu0 0.0
    %1094 = vmatpush2.msra.mxu0 0.0
    %1095 = vmatprep.mubr.f32.mxu0 0.0
    %1096 = vmatmul.mubr.f32.gmra.mxu0 %v1029
    %v1097 = vpop.f32.mrf.mxu0
    %v1098 = vadd.f32 0.0, %v1097
    %v1099 = vpop.f32.mrf.mxu0
    %v1100 = vadd.f32 0.0, %v1099
    %1101 = vdwg.mxu0
    %v1104 = vrot.slane %v1098, 4
    %v1105 = vrot.slane %v1100, 4
    %v1108 = vadd.f32 %v785, %v1104
    %v1109 = vadd.f32 %v786, %v1105
    %v1110 = vxor.u32 %v1108, 2147483648
    %v1111 = vxor.u32 %v1109, 2147483648
    %v1112 = vmul.f32 %v1110, 1.442695
    %v1113 = vpow.pop %v1112
    %v1114 = vmul.f32 %v1111, 1.442695
    %v1115 = vpow.pop %v1114
    %v1116 = vadd.f32 %v1113, 1.0
    %v1117 = vadd.f32 %v1115, 1.0
    %v1118 = vrcp.pop %v1116
    %v1119 = vmul.f32 1.0, %v1118
    %v1120 = vrcp.pop %v1117
    %v1121 = vmul.f32 1.0, %v1120
    %v1122 = vtanh.pop %v1109
    %v1124 = vrot.slane %v1014, 6
    %v1126 = vmul.f32 %v1119, %v1124
    %1128 = vrot.lane.b32.xlu0 %v1122, 64
    %v1129 = vpop.permute.xlu0 %1128
    %v1131 = vmul.f32 %v1119, %v1129
    %1133 = vrot.lane.b32.xlu0 %v1131, 64
    %v1134 = vpop.permute.xlu0 %1133
    %v1136 = vadd.f32 %v1126, %v1134
    %v1137 = vtanh.pop %v1136
    %1139 = vrot.lane.b32.xlu0 %v1137, 64
    %v1140 = vpop.permute.xlu0 %1139
    %v1142 = vmul.f32 %v1121, %v1140
    %vm1143 = vcmask 259076
    %1144 = vst.msk [vmem:[#allocation2] sm:$0x30] %vm1143, %v1142
    %1146 = vrot.lane.b32.xlu0 %v1142, 96
    %v1147 = vpop.permute.xlu0 %1146
    %1149 = vst.msk [vmem:[#allocation3 + $0x6] sm:$0x30] %vm1143, %v1147
    %v1150 = vrot.slane %v1142, 4
    %v1151 = vsel %vm787, %v1150, 0
    %1153 = vmatprep.subr.mxu0 0.0
    %1154 = vmatpush1.msra.mxu0 0.0
    %1155 = vmatprep.subr.mxu0 0.0
    %1156 = vmatpush1.msra.mxu0 0.0
    %1157 = vmatprep.subr.mxu0 0.0
    %1158 = vmatpush1.msra.mxu0 0.0
    %1159 = vmatprep.subr.mxu0 0.0
    %1160 = vmatpush1.msra.mxu0 0.0
    %1161 = vmatprep.subr.mxu0 0.0
    %1162 = vmatpush1.msra.mxu0 0.0
    %1163 = vmatprep.subr.mxu0 0.0
    %1164 = vmatpush1.msra.mxu0 0.0
    %1165 = vmatprep.subr.mxu0 0.0
    %1166 = vmatpush1.msra.mxu0 0.0
    %1167 = vmatprep.subr.mxu0 0.0
    %1168 = vmatpush1.msra.mxu0 0.0
    %1169 = vmatprep.subr.mxu0 %v671
    %1170 = vmatpush1.msra.mxu0 %v670
    %1171 = vmatprep.subr.mxu0 %v669
    %1172 = vmatpush1.msra.mxu0 %v668
    %1173 = vmatprep.subr.mxu0 %v667
    %1174 = vmatpush1.msra.mxu0 %v666
    %1175 = vmatprep.subr.mxu0 %v665
    %1176 = vmatpush1.msra.mxu0 %v664
    %1177 = vmatprep.subr.mxu0 %v663
    %1178 = vmatpush1.msra.mxu0 %v662
    %1179 = vmatprep.subr.mxu0 %v661
    %1180 = vmatpush1.msra.mxu0 %v660
    %1181 = vmatprep.subr.mxu0 %v659
    %1182 = vmatpush1.msra.mxu0 %v658
    %1183 = vmatprep.subr.mxu0 %v657
    %1184 = vmatpush1.msra.mxu0 %v656
    %1185 = vmatprep.subr.mxu0 0.0
    %1186 = vmatpush2.msra.mxu0 0.0
    %1187 = vmatprep.subr.mxu0 0.0
    %1188 = vmatpush2.msra.mxu0 0.0
    %1189 = vmatprep.subr.mxu0 0.0
    %1190 = vmatpush2.msra.mxu0 0.0
    %1191 = vmatprep.subr.mxu0 0.0
    %1192 = vmatpush2.msra.mxu0 0.0
    %1193 = vmatprep.subr.mxu0 0.0
    %1194 = vmatpush2.msra.mxu0 0.0
    %1195 = vmatprep.subr.mxu0 0.0
    %1196 = vmatpush2.msra.mxu0 0.0
    %1197 = vmatprep.subr.mxu0 0.0
    %1198 = vmatpush2.msra.mxu0 0.0
    %1199 = vmatprep.subr.mxu0 0.0
    %1200 = vmatpush2.msra.mxu0 0.0
    %1201 = vmatprep.subr.mxu0 0.0
    %1202 = vmatpush2.msra.mxu0 0.0
    %1203 = vmatprep.subr.mxu0 0.0
    %1204 = vmatpush2.msra.mxu0 0.0
    %1205 = vmatprep.subr.mxu0 0.0
    %1206 = vmatpush2.msra.mxu0 0.0
    %1207 = vmatprep.subr.mxu0 0.0
    %1208 = vmatpush2.msra.mxu0 0.0
    %1209 = vmatprep.subr.mxu0 0.0
    %1210 = vmatpush2.msra.mxu0 0.0
    %1211 = vmatprep.subr.mxu0 0.0
    %1212 = vmatpush2.msra.mxu0 0.0
    %1213 = vmatprep.subr.mxu0 0.0
    %1214 = vmatpush2.msra.mxu0 0.0
    %1215 = vmatprep.subr.mxu0 0.0
    %1216 = vmatpush2.msra.mxu0 0.0
    %1217 = vmatprep.mubr.f32.mxu0 0.0
    %1218 = vmatmul.mubr.f32.gmra.mxu0 %v1151
    %v1219 = vpop.f32.mrf.mxu0
    %v1220 = vadd.f32 0.0, %v1219
    %v1221 = vpop.f32.mrf.mxu0
    %v1222 = vadd.f32 0.0, %v1221
    %1223 = vdwg.mxu0
    %v1226 = vrot.slane %v1220, 2
    %v1227 = vrot.slane %v1222, 2
    %v1230 = vadd.f32 %v905, %v1226
    %v1231 = vadd.f32 %v906, %v1227
    %v1232 = vxor.u32 %v1230, 2147483648
    %v1233 = vxor.u32 %v1231, 2147483648
    %v1234 = vmul.f32 %v1232, 1.442695
    %v1235 = vpow.pop %v1234
    %v1236 = vmul.f32 %v1233, 1.442695
    %v1237 = vpow.pop %v1236
    %v1238 = vadd.f32 %v1235, 1.0
    %v1239 = vadd.f32 %v1237, 1.0
    %v1240 = vrcp.pop %v1238
    %v1241 = vmul.f32 1.0, %v1240
    %v1242 = vrcp.pop %v1239
    %v1243 = vmul.f32 1.0, %v1242
    %v1244 = vtanh.pop %v1231
    %v1246 = vrot.slane %v1136, 6
    %v1248 = vmul.f32 %v1241, %v1246
    %1250 = vrot.lane.b32.xlu0 %v1244, 64
    %v1251 = vpop.permute.xlu0 %1250
    %v1253 = vmul.f32 %v1241, %v1251
    %1255 = vrot.lane.b32.xlu0 %v1253, 64
    %v1256 = vpop.permute.xlu0 %1255
    %v1258 = vadd.f32 %v1248, %v1256
    %v1259 = vtanh.pop %v1258
    %1261 = vrot.lane.b32.xlu0 %v1259, 64
    %v1262 = vpop.permute.xlu0 %1261
    %v1264 = vmul.f32 %v1243, %v1262
    %vm1265 = vcmask 261126
    %1266 = vst.msk [vmem:[#allocation2] sm:$0xc0] %vm1265, %v1264
    %1268 = vrot.lane.b32.xlu0 %v1264, 96
    %v1269 = vpop.permute.xlu0 %1268
    %1271 = vst.msk [vmem:[#allocation3 + $0x2] sm:$0xc0] %vm1265, %v1269
    %v1274 = vrot.slane %v758, 6
    %v1275 = vrot.slane %v760, 6
    %v1278 = vsel %vm777, %v764, %v1274
    %v1279 = vsel %vm778, %v766, %v1275
    %v1280 = vrot.slane %v1264, 6
    %v1281 = vsel %vm787, %v1280, 0
    %1283 = vmatprep.subr.mxu0 0.0
    %1284 = vmatpush1.msra.mxu0 0.0
    %1285 = vmatprep.subr.mxu0 0.0
    %1286 = vmatpush1.msra.mxu0 0.0
    %1287 = vmatprep.subr.mxu0 0.0
    %1288 = vmatpush1.msra.mxu0 0.0
    %1289 = vmatprep.subr.mxu0 0.0
    %1290 = vmatpush1.msra.mxu0 0.0
    %1291 = vmatprep.subr.mxu0 0.0
    %1292 = vmatpush1.msra.mxu0 0.0
    %1293 = vmatprep.subr.mxu0 0.0
    %1294 = vmatpush1.msra.mxu0 0.0
    %1295 = vmatprep.subr.mxu0 0.0
    %1296 = vmatpush1.msra.mxu0 0.0
    %1297 = vmatprep.subr.mxu0 0.0
    %1298 = vmatpush1.msra.mxu0 0.0
    %1299 = vmatprep.subr.mxu0 %v671
    %1300 = vmatpush1.msra.mxu0 %v670
    %1301 = vmatprep.subr.mxu0 %v669
    %1302 = vmatpush1.msra.mxu0 %v668
    %1303 = vmatprep.subr.mxu0 %v667
    %1304 = vmatpush1.msra.mxu0 %v666
    %1305 = vmatprep.subr.mxu0 %v665
    %1306 = vmatpush1.msra.mxu0 %v664
    %1307 = vmatprep.subr.mxu0 %v663
    %1308 = vmatpush1.msra.mxu0 %v662
    %1309 = vmatprep.subr.mxu0 %v661
    %1310 = vmatpush1.msra.mxu0 %v660
    %1311 = vmatprep.subr.mxu0 %v659
    %1312 = vmatpush1.msra.mxu0 %v658
    %1313 = vmatprep.subr.mxu0 %v657
    %1314 = vmatpush1.msra.mxu0 %v656
    %1315 = vmatprep.subr.mxu0 0.0
    %1316 = vmatpush2.msra.mxu0 0.0
    %1317 = vmatprep.subr.mxu0 0.0
    %1318 = vmatpush2.msra.mxu0 0.0
    %1319 = vmatprep.subr.mxu0 0.0
    %1320 = vmatpush2.msra.mxu0 0.0
    %1321 = vmatprep.subr.mxu0 0.0
    %1322 = vmatpush2.msra.mxu0 0.0
    %1323 = vmatprep.subr.mxu0 0.0
    %1324 = vmatpush2.msra.mxu0 0.0
    %1325 = vmatprep.subr.mxu0 0.0
    %1326 = vmatpush2.msra.mxu0 0.0
    %1327 = vmatprep.subr.mxu0 0.0
    %1328 = vmatpush2.msra.mxu0 0.0
    %1329 = vmatprep.subr.mxu0 0.0
    %1330 = vmatpush2.msra.mxu0 0.0
    %1331 = vmatprep.subr.mxu0 0.0
    %1332 = vmatpush2.msra.mxu0 0.0
    %1333 = vmatprep.subr.mxu0 0.0
    %1334 = vmatpush2.msra.mxu0 0.0
    %1335 = vmatprep.subr.mxu0 0.0
    %1336 = vmatpush2.msra.mxu0 0.0
    %1337 = vmatprep.subr.mxu0 0.0
    %1338 = vmatpush2.msra.mxu0 0.0
    %1339 = vmatprep.subr.mxu0 0.0
    %1340 = vmatpush2.msra.mxu0 0.0
    %1341 = vmatprep.subr.mxu0 0.0
    %1342 = vmatpush2.msra.mxu0 0.0
    %1343 = vmatprep.subr.mxu0 0.0
    %1344 = vmatpush2.msra.mxu0 0.0
    %1345 = vmatprep.subr.mxu0 0.0
    %1346 = vmatpush2.msra.mxu0 0.0
    %1347 = vmatprep.mubr.f32.mxu0 0.0
    %1348 = vmatmul.mubr.f32.gmra.mxu0 %v1281
    %v1349 = vpop.f32.mrf.mxu0
    %v1350 = vadd.f32 0.0, %v1349
    %v1351 = vpop.f32.mrf.mxu0
    %v1352 = vadd.f32 0.0, %v1351
    %1353 = vdwg.mxu0
    %v1354 = vadd.f32 %v1278, %v1350
    %v1355 = vadd.f32 %v1279, %v1352
    %v1356 = vxor.u32 %v1354, 2147483648
    %v1357 = vxor.u32 %v1355, 2147483648
    %v1358 = vmul.f32 %v1356, 1.442695
    %v1359 = vpow.pop %v1358
    %v1360 = vmul.f32 %v1357, 1.442695
    %v1361 = vpow.pop %v1360
    %v1362 = vadd.f32 %v1359, 1.0
    %v1363 = vadd.f32 %v1361, 1.0
    %v1364 = vrcp.pop %v1362
    %v1365 = vmul.f32 1.0, %v1364
    %v1366 = vrcp.pop %v1363
    %v1367 = vmul.f32 1.0, %v1366
    %v1368 = vtanh.pop %v1355
    %v1370 = vrot.slane %v1258, 6
    %v1372 = vmul.f32 %v1365, %v1370
    %1374 = vrot.lane.b32.xlu0 %v1368, 64
    %v1375 = vpop.permute.xlu0 %1374
    %v1377 = vmul.f32 %v1365, %v1375
    %1379 = vrot.lane.b32.xlu0 %v1377, 64
    %v1380 = vpop.permute.xlu0 %1379
    %v1382 = vadd.f32 %v1372, %v1380
    %v1383 = vtanh.pop %v1382
    %1385 = vrot.lane.b32.xlu0 %v1383, 64
    %v1386 = vpop.permute.xlu0 %1385
    %v1388 = vmul.f32 %v1367, %v1386
    %1389 = vst.msk [vmem:[#allocation2 + $0x8] sm:$0x3] %vm894, %v1388
    %1391 = vrot.lane.b32.xlu0 %v1388, 96
    %v1392 = vpop.permute.xlu0 %1391
    %1394 = vst.msk [vmem:[#allocation3 + $0x6] sm:$0x3] %vm894, %v1392
    %v1395 = vrot.slane %v758, 2
    %v1396 = vrot.slane %v760, 2
    %v1399 = vsel %vm777, %v764, %v1395
    %v1400 = vsel %vm778, %v766, %v1396
    %v1401 = vsel %vm787, %v1388, 0
    %1403 = vmatprep.subr.mxu0 0.0
    %1404 = vmatpush1.msra.mxu0 0.0
    %1405 = vmatprep.subr.mxu0 0.0
    %1406 = vmatpush1.msra.mxu0 0.0
    %1407 = vmatprep.subr.mxu0 0.0
    %1408 = vmatpush1.msra.mxu0 0.0
    %1409 = vmatprep.subr.mxu0 0.0
    %1410 = vmatpush1.msra.mxu0 0.0
    %1411 = vmatprep.subr.mxu0 0.0
    %1412 = vmatpush1.msra.mxu0 0.0
    %1413 = vmatprep.subr.mxu0 0.0
    %1414 = vmatpush1.msra.mxu0 0.0
    %1415 = vmatprep.subr.mxu0 0.0
    %1416 = vmatpush1.msra.mxu0 0.0
    %1417 = vmatprep.subr.mxu0 0.0
    %1418 = vmatpush1.msra.mxu0 0.0
    %1419 = vmatprep.subr.mxu0 %v671
    %1420 = vmatpush1.msra.mxu0 %v670
    %1421 = vmatprep.subr.mxu0 %v669
    %1422 = vmatpush1.msra.mxu0 %v668
    %1423 = vmatprep.subr.mxu0 %v667
    %1424 = vmatpush1.msra.mxu0 %v666
    %1425 = vmatprep.subr.mxu0 %v665
    %1426 = vmatpush1.msra.mxu0 %v664
    %1427 = vmatprep.subr.mxu0 %v663
    %1428 = vmatpush1.msra.mxu0 %v662
    %1429 = vmatprep.subr.mxu0 %v661
    %1430 = vmatpush1.msra.mxu0 %v660
    %1431 = vmatprep.subr.mxu0 %v659
    %1432 = vmatpush1.msra.mxu0 %v658
    %1433 = vmatprep.subr.mxu0 %v657
    %1434 = vmatpush1.msra.mxu0 %v656
    %1435 = vmatprep.subr.mxu0 0.0
    %1436 = vmatpush2.msra.mxu0 0.0
    %1437 = vmatprep.subr.mxu0 0.0
    %1438 = vmatpush2.msra.mxu0 0.0
    %1439 = vmatprep.subr.mxu0 0.0
    %1440 = vmatpush2.msra.mxu0 0.0
    %1441 = vmatprep.subr.mxu0 0.0
    %1442 = vmatpush2.msra.mxu0 0.0
    %1443 = vmatprep.subr.mxu0 0.0
    %1444 = vmatpush2.msra.mxu0 0.0
    %1445 = vmatprep.subr.mxu0 0.0
    %1446 = vmatpush2.msra.mxu0 0.0
    %1447 = vmatprep.subr.mxu0 0.0
    %1448 = vmatpush2.msra.mxu0 0.0
    %1449 = vmatprep.subr.mxu0 0.0
    %1450 = vmatpush2.msra.mxu0 0.0
    %1451 = vmatprep.subr.mxu0 0.0
    %1452 = vmatpush2.msra.mxu0 0.0
    %1453 = vmatprep.subr.mxu0 0.0
    %1454 = vmatpush2.msra.mxu0 0.0
    %1455 = vmatprep.subr.mxu0 0.0
    %1456 = vmatpush2.msra.mxu0 0.0
    %1457 = vmatprep.subr.mxu0 0.0
    %1458 = vmatpush2.msra.mxu0 0.0
    %1459 = vmatprep.subr.mxu0 0.0
    %1460 = vmatpush2.msra.mxu0 0.0
    %1461 = vmatprep.subr.mxu0 0.0
    %1462 = vmatpush2.msra.mxu0 0.0
    %1463 = vmatprep.subr.mxu0 0.0
    %1464 = vmatpush2.msra.mxu0 0.0
    %1465 = vmatprep.subr.mxu0 0.0
    %1466 = vmatpush2.msra.mxu0 0.0
    %1467 = vmatprep.mubr.f32.mxu0 0.0
    %1468 = vmatmul.mubr.f32.gmra.mxu0 %v1401
    %v1469 = vpop.f32.mrf.mxu0
    %v1470 = vadd.f32 0.0, %v1469
    %v1471 = vpop.f32.mrf.mxu0
    %v1472 = vadd.f32 0.0, %v1471
    %1473 = vdwg.mxu0
    %v1476 = vrot.slane %v1470, 6
    %v1477 = vrot.slane %v1472, 6
    %v1480 = vadd.f32 %v1399, %v1476
    %v1481 = vadd.f32 %v1400, %v1477
    %v1482 = vxor.u32 %v1480, 2147483648
    %v1483 = vxor.u32 %v1481, 2147483648
    %v1484 = vmul.f32 %v1482, 1.442695
    %v1485 = vpow.pop %v1484
    %v1486 = vmul.f32 %v1483, 1.442695
    %v1487 = vpow.pop %v1486
    %v1488 = vadd.f32 %v1485, 1.0
    %v1489 = vadd.f32 %v1487, 1.0
    %v1490 = vrcp.pop %v1488
    %v1491 = vmul.f32 1.0, %v1490
    %v1492 = vrcp.pop %v1489
    %v1493 = vmul.f32 1.0, %v1492
    %v1494 = vtanh.pop %v1481
    %v1496 = vrot.slane %v1382, 6
    %v1498 = vmul.f32 %v1491, %v1496
    %1500 = vrot.lane.b32.xlu0 %v1494, 64
    %v1501 = vpop.permute.xlu0 %1500
    %v1503 = vmul.f32 %v1491, %v1501
    %1505 = vrot.lane.b32.xlu0 %v1503, 64
    %v1506 = vpop.permute.xlu0 %1505
    %v1508 = vadd.f32 %v1498, %v1506
    %v1509 = vtanh.pop %v1508
    %1511 = vrot.lane.b32.xlu0 %v1509, 64
    %v1512 = vpop.permute.xlu0 %1511
    %v1514 = vmul.f32 %v1493, %v1512
    %1515 = vst.msk [vmem:[#allocation2 + $0x8] sm:$0xc] %vm1021, %v1514
    %1517 = vrot.lane.b32.xlu0 %v1514, 96
    %v1518 = vpop.permute.xlu0 %1517
    %1520 = vst.msk [vmem:[#allocation3 + $0x2] sm:$0xc] %vm1021, %v1518
    %v1521 = vrot.slane %v1514, 2
    %v1522 = vsel %vm787, %v1521, 0
    %1524 = vmatprep.subr.mxu0 0.0
    %1525 = vmatpush1.msra.mxu0 0.0
    %1526 = vmatprep.subr.mxu0 0.0
    %1527 = vmatpush1.msra.mxu0 0.0
    %1528 = vmatprep.subr.mxu0 0.0
    %1529 = vmatpush1.msra.mxu0 0.0
    %1530 = vmatprep.subr.mxu0 0.0
    %1531 = vmatpush1.msra.mxu0 0.0
    %1532 = vmatprep.subr.mxu0 0.0
    %1533 = vmatpush1.msra.mxu0 0.0
    %1534 = vmatprep.subr.mxu0 0.0
    %1535 = vmatpush1.msra.mxu0 0.0
    %1536 = vmatprep.subr.mxu0 0.0
    %1537 = vmatpush1.msra.mxu0 0.0
    %1538 = vmatprep.subr.mxu0 0.0
    %1539 = vmatpush1.msra.mxu0 0.0
    %1540 = vmatprep.subr.mxu0 %v671
    %1541 = vmatpush1.msra.mxu0 %v670
    %1542 = vmatprep.subr.mxu0 %v669
    %1543 = vmatpush1.msra.mxu0 %v668
    %1544 = vmatprep.subr.mxu0 %v667
    %1545 = vmatpush1.msra.mxu0 %v666
    %1546 = vmatprep.subr.mxu0 %v665
    %1547 = vmatpush1.msra.mxu0 %v664
    %1548 = vmatprep.subr.mxu0 %v663
    %1549 = vmatpush1.msra.mxu0 %v662
    %1550 = vmatprep.subr.mxu0 %v661
    %1551 = vmatpush1.msra.mxu0 %v660
    %1552 = vmatprep.subr.mxu0 %v659
    %1553 = vmatpush1.msra.mxu0 %v658
    %1554 = vmatprep.subr.mxu0 %v657
    %1555 = vmatpush1.msra.mxu0 %v656
    %1556 = vmatprep.subr.mxu0 0.0
    %1557 = vmatpush2.msra.mxu0 0.0
    %1558 = vmatprep.subr.mxu0 0.0
    %1559 = vmatpush2.msra.mxu0 0.0
    %1560 = vmatprep.subr.mxu0 0.0
    %1561 = vmatpush2.msra.mxu0 0.0
    %1562 = vmatprep.subr.mxu0 0.0
    %1563 = vmatpush2.msra.mxu0 0.0
    %1564 = vmatprep.subr.mxu0 0.0
    %1565 = vmatpush2.msra.mxu0 0.0
    %1566 = vmatprep.subr.mxu0 0.0
    %1567 = vmatpush2.msra.mxu0 0.0
    %1568 = vmatprep.subr.mxu0 0.0
    %1569 = vmatpush2.msra.mxu0 0.0
    %1570 = vmatprep.subr.mxu0 0.0
    %1571 = vmatpush2.msra.mxu0 0.0
    %1572 = vmatprep.subr.mxu0 0.0
    %1573 = vmatpush2.msra.mxu0 0.0
    %1574 = vmatprep.subr.mxu0 0.0
    %1575 = vmatpush2.msra.mxu0 0.0
    %1576 = vmatprep.subr.mxu0 0.0
    %1577 = vmatpush2.msra.mxu0 0.0
    %1578 = vmatprep.subr.mxu0 0.0
    %1579 = vmatpush2.msra.mxu0 0.0
    %1580 = vmatprep.subr.mxu0 0.0
    %1581 = vmatpush2.msra.mxu0 0.0
    %1582 = vmatprep.subr.mxu0 0.0
    %1583 = vmatpush2.msra.mxu0 0.0
    %1584 = vmatprep.subr.mxu0 0.0
    %1585 = vmatpush2.msra.mxu0 0.0
    %1586 = vmatprep.subr.mxu0 0.0
    %1587 = vmatpush2.msra.mxu0 0.0
    %1588 = vmatprep.mubr.f32.mxu0 0.0
    %1589 = vmatmul.mubr.f32.gmra.mxu0 %v1522
    %v1590 = vpop.f32.mrf.mxu0
    %v1591 = vadd.f32 0.0, %v1590
    %v1592 = vpop.f32.mrf.mxu0
    %v1593 = vadd.f32 0.0, %v1592
    %1594 = vdwg.mxu0
    %v1597 = vrot.slane %v1591, 4
    %v1598 = vrot.slane %v1593, 4
    %v1601 = vadd.f32 %v1278, %v1597
    %v1602 = vadd.f32 %v1279, %v1598
    %v1603 = vxor.u32 %v1601, 2147483648
    %v1604 = vxor.u32 %v1602, 2147483648
    %v1605 = vmul.f32 %v1603, 1.442695
    %v1606 = vpow.pop %v1605
    %v1607 = vmul.f32 %v1604, 1.442695
    %v1608 = vpow.pop %v1607
    %v1609 = vadd.f32 %v1606, 1.0
    %v1610 = vadd.f32 %v1608, 1.0
    %v1611 = vrcp.pop %v1609
    %v1612 = vmul.f32 1.0, %v1611
    %v1613 = vrcp.pop %v1610
    %v1614 = vmul.f32 1.0, %v1613
    %v1615 = vtanh.pop %v1602
    %v1617 = vrot.slane %v1508, 6
    %v1619 = vmul.f32 %v1612, %v1617
    %1621 = vrot.lane.b32.xlu0 %v1615, 64
    %v1622 = vpop.permute.xlu0 %1621
    %v1624 = vmul.f32 %v1612, %v1622
    %1626 = vrot.lane.b32.xlu0 %v1624, 64
    %v1627 = vpop.permute.xlu0 %1626
    %v1629 = vadd.f32 %v1619, %v1627
    %v1630 = vtanh.pop %v1629
    %1632 = vrot.lane.b32.xlu0 %v1630, 64
    %v1633 = vpop.permute.xlu0 %1632
    %v1635 = vmul.f32 %v1614, %v1633
    %1636 = vst.msk [vmem:[#allocation2 + $0x8] sm:$0x30] %vm1143, %v1635
    %1638 = vrot.lane.b32.xlu0 %v1635, 96
    %v1639 = vpop.permute.xlu0 %1638
    %1641 = vst.msk [vmem:[#allocation3 - $0x2] sm:$0x30] %vm1143, %v1639
    %v1642 = vrot.slane %v1635, 4
    %v1643 = vsel %vm787, %v1642, 0
    %1645 = vmatprep.subr.mxu0 0.0
    %1646 = vmatpush1.msra.mxu0 0.0
    %1647 = vmatprep.subr.mxu0 0.0
    %1648 = vmatpush1.msra.mxu0 0.0
    %1649 = vmatprep.subr.mxu0 0.0
    %1650 = vmatpush1.msra.mxu0 0.0
    %1651 = vmatprep.subr.mxu0 0.0
    %1652 = vmatpush1.msra.mxu0 0.0
    %1653 = vmatprep.subr.mxu0 0.0
    %1654 = vmatpush1.msra.mxu0 0.0
    %1655 = vmatprep.subr.mxu0 0.0
    %1656 = vmatpush1.msra.mxu0 0.0
    %1657 = vmatprep.subr.mxu0 0.0
    %1658 = vmatpush1.msra.mxu0 0.0
    %1659 = vmatprep.subr.mxu0 0.0
    %1660 = vmatpush1.msra.mxu0 0.0
    %1661 = vmatprep.subr.mxu0 %v671
    %1662 = vmatpush1.msra.mxu0 %v670
    %1663 = vmatprep.subr.mxu0 %v669
    %1664 = vmatpush1.msra.mxu0 %v668
    %1665 = vmatprep.subr.mxu0 %v667
    %1666 = vmatpush1.msra.mxu0 %v666
    %1667 = vmatprep.subr.mxu0 %v665
    %1668 = vmatpush1.msra.mxu0 %v664
    %1669 = vmatprep.subr.mxu0 %v663
    %1670 = vmatpush1.msra.mxu0 %v662
    %1671 = vmatprep.subr.mxu0 %v661
    %1672 = vmatpush1.msra.mxu0 %v660
    %1673 = vmatprep.subr.mxu0 %v659
    %1674 = vmatpush1.msra.mxu0 %v658
    %1675 = vmatprep.subr.mxu0 %v657
    %1676 = vmatpush1.msra.mxu0 %v656
    %1677 = vmatprep.subr.mxu0 0.0
    %1678 = vmatpush2.msra.mxu0 0.0
    %1679 = vmatprep.subr.mxu0 0.0
    %1680 = vmatpush2.msra.mxu0 0.0
    %1681 = vmatprep.subr.mxu0 0.0
    %1682 = vmatpush2.msra.mxu0 0.0
    %1683 = vmatprep.subr.mxu0 0.0
    %1684 = vmatpush2.msra.mxu0 0.0
    %1685 = vmatprep.subr.mxu0 0.0
    %1686 = vmatpush2.msra.mxu0 0.0
    %1687 = vmatprep.subr.mxu0 0.0
    %1688 = vmatpush2.msra.mxu0 0.0
    %1689 = vmatprep.subr.mxu0 0.0
    %1690 = vmatpush2.msra.mxu0 0.0
    %1691 = vmatprep.subr.mxu0 0.0
    %1692 = vmatpush2.msra.mxu0 0.0
    %1693 = vmatprep.subr.mxu0 0.0
    %1694 = vmatpush2.msra.mxu0 0.0
    %1695 = vmatprep.subr.mxu0 0.0
    %1696 = vmatpush2.msra.mxu0 0.0
    %1697 = vmatprep.subr.mxu0 0.0
    %1698 = vmatpush2.msra.mxu0 0.0
    %1699 = vmatprep.subr.mxu0 0.0
    %1700 = vmatpush2.msra.mxu0 0.0
    %1701 = vmatprep.subr.mxu0 0.0
    %1702 = vmatpush2.msra.mxu0 0.0
    %1703 = vmatprep.subr.mxu0 0.0
    %1704 = vmatpush2.msra.mxu0 0.0
    %1705 = vmatprep.subr.mxu0 0.0
    %1706 = vmatpush2.msra.mxu0 0.0
    %1707 = vmatprep.subr.mxu0 0.0
    %1708 = vmatpush2.msra.mxu0 0.0
    %1709 = vmatprep.mubr.f32.mxu0 0.0
    %1710 = vmatmul.mubr.f32.gmra.mxu0 %v1643
    %v1711 = vpop.f32.mrf.mxu0
    %v1712 = vadd.f32 0.0, %v1711
    %v1713 = vpop.f32.mrf.mxu0
    %v1714 = vadd.f32 0.0, %v1713
    %1715 = vdwg.mxu0
    %v1718 = vrot.slane %v1712, 2
    %v1719 = vrot.slane %v1714, 2
    %v1722 = vadd.f32 %v1399, %v1718
    %v1723 = vadd.f32 %v1400, %v1719
    %v1724 = vxor.u32 %v1722, 2147483648
    %v1725 = vxor.u32 %v1723, 2147483648
    %v1726 = vmul.f32 %v1724, 1.442695
    %v1727 = vpow.pop %v1726
    %v1728 = vmul.f32 %v1725, 1.442695
    %v1729 = vpow.pop %v1728
    %v1730 = vadd.f32 %v1727, 1.0
    %v1731 = vadd.f32 %v1729, 1.0
    %v1732 = vrcp.pop %v1730
    %v1733 = vmul.f32 1.0, %v1732
    %v1734 = vrcp.pop %v1731
    %v1735 = vmul.f32 1.0, %v1734
    %v1736 = vtanh.pop %v1723
    %v1738 = vrot.slane %v1629, 6
    %v1740 = vmul.f32 %v1733, %v1738
    %1742 = vrot.lane.b32.xlu0 %v1736, 64
    %v1743 = vpop.permute.xlu0 %1742
    %v1745 = vmul.f32 %v1733, %v1743
    %1747 = vrot.lane.b32.xlu0 %v1745, 64
    %v1748 = vpop.permute.xlu0 %1747
    %v1750 = vadd.f32 %v1740, %v1748
    %v1751 = vtanh.pop %v1750
    %1753 = vrot.lane.b32.xlu0 %v1751, 64
    %v1754 = vpop.permute.xlu0 %1753
    %v1756 = vmul.f32 %v1735, %v1754
    %1757 = vst.msk [vmem:[#allocation2 + $0x8] sm:$0xc0] %vm1265, %v1756
    %1759 = vrot.lane.b32.xlu0 %v1756, 96
    %v1760 = vpop.permute.xlu0 %1759
    %1762 = vst.msk [vmem:[#allocation3 - $0x6] sm:$0xc0] %vm1265, %v1760
    %v1763 = vld [vmem:[#allocation2] sm:$0xff]
    %v1764 = vld [vmem:[#allocation2 + $0x8] sm:$0xff]
    %v1765 = vld [vmem:[#allocation3] sm:$0xff]
    %v1766 = vld [vmem:[#allocation3 + $0x8] sm:$0xff]
    %1769 = vrot.lane.b32.xlu0 %v1765, 32
    %v1770 = vpop.permute.xlu0 %1769
    %1771 = vrot.lane.b32.xlu0 %v1766, 32
    %v1772 = vpop.permute.xlu0 %1771
    %v1775 = vsel %vm684, %v1763, %v1770
    %v1776 = vsel %vm684, %v1764, %v1772
    %v1777 = vld [vmem:[#allocation21] sm:$0xff]
    %v1778 = vld [vmem:[#allocation21 + $0x8] sm:$0xff]
    %v1779 = vld [vmem:[#allocation21 + $0x10] sm:$0xff]
    %v1780 = vld [vmem:[#allocation21 + $0x18] sm:$0xff]
    %v1781 = vld [vmem:[#allocation21 + $0x20] sm:$0xff]
    %v1782 = vld [vmem:[#allocation21 + $0x28] sm:$0xff]
    %v1783 = vld [vmem:[#allocation21 + $0x30] sm:$0xff]
    %v1784 = vld [vmem:[#allocation21 + $0x38] sm:$0xff]
    %v1785 = vld [vmem:[#allocation23] sm:$0x1]
    %v1786 = vld [vmem:[%s14] sm:$0xff]
    %v1787 = vld [vmem:[%s14 + $0x8] sm:$0xff]
    %v1788 = vld [vmem:[%s14 + $0x10] sm:$0xff]
    %v1789 = vld [vmem:[%s14 + $0x18] sm:$0xff]
    %v1790 = vld [vmem:[%s14 + $0x20] sm:$0xff]
    %v1791 = vld [vmem:[%s14 + $0x28] sm:$0xff]
    %v1792 = vld [vmem:[%s14 + $0x30] sm:$0xff]
    %v1793 = vld [vmem:[%s14 + $0x38] sm:$0xff]
    %v1794 = vld [vmem:[#allocation24] sm:$0xf]
    %v1795 = vld [vmem:[%s16] sm:$0xff]
    %v1796 = vld [vmem:[%s16 + $0x8] sm:$0xff]
    %v1797 = vld [vmem:[#allocation26] sm:$0xf]
    %v1799 = vlaneseq
    %v1800 = vshrl.u32 %v1799, 7
    %v1801 = vsub.s32 0, %v1800
    %v1802 = vrot.slane %v1785, %v1801
    %v1805 = vsel %vm787, %v1775, 0
    %v1808 = vsel %vm787, %v1776, 0
    %1810 = vmatprep.subr.mxu0 0.0
    %1811 = vmatpush1.msra.mxu0 0.0
    %1812 = vmatprep.subr.mxu0 0.0
    %1813 = vmatpush1.msra.mxu0 0.0
    %1814 = vmatprep.subr.mxu0 0.0
    %1815 = vmatpush1.msra.mxu0 0.0
    %1816 = vmatprep.subr.mxu0 0.0
    %1817 = vmatpush1.msra.mxu0 0.0
    %1818 = vmatprep.subr.mxu0 0.0
    %1819 = vmatpush1.msra.mxu0 0.0
    %1820 = vmatprep.subr.mxu0 0.0
    %1821 = vmatpush1.msra.mxu0 0.0
    %1822 = vmatprep.subr.mxu0 0.0
    %1823 = vmatpush1.msra.mxu0 0.0
    %1824 = vmatprep.subr.mxu0 0.0
    %1825 = vmatpush1.msra.mxu0 0.0
    %1826 = vmatprep.subr.mxu0 0.0
    %1827 = vmatpush1.msra.mxu0 %v1784
    %1828 = vmatprep.subr.mxu0 0.0
    %1829 = vmatpush1.msra.mxu0 %v1783
    %1830 = vmatprep.subr.mxu0 0.0
    %1831 = vmatpush1.msra.mxu0 %v1782
    %1832 = vmatprep.subr.mxu0 0.0
    %1833 = vmatpush1.msra.mxu0 %v1781
    %1834 = vmatprep.subr.mxu0 0.0
    %1835 = vmatpush1.msra.mxu0 %v1780
    %1836 = vmatprep.subr.mxu0 0.0
    %1837 = vmatpush1.msra.mxu0 %v1779
    %1838 = vmatprep.subr.mxu0 0.0
    %1839 = vmatpush1.msra.mxu0 %v1778
    %1840 = vmatprep.subr.mxu0 0.0
    %1841 = vmatpush1.msra.mxu0 %v1777
    %1842 = vmatprep.subr.mxu0 0.0
    %1843 = vmatpush2.msra.mxu0 0.0
    %1844 = vmatprep.subr.mxu0 0.0
    %1845 = vmatpush2.msra.mxu0 0.0
    %1846 = vmatprep.subr.mxu0 0.0
    %1847 = vmatpush2.msra.mxu0 0.0
    %1848 = vmatprep.subr.mxu0 0.0
    %1849 = vmatpush2.msra.mxu0 0.0
    %1850 = vmatprep.subr.mxu0 0.0
    %1851 = vmatpush2.msra.mxu0 0.0
    %1852 = vmatprep.subr.mxu0 0.0
    %1853 = vmatpush2.msra.mxu0 0.0
    %1854 = vmatprep.subr.mxu0 0.0
    %1855 = vmatpush2.msra.mxu0 0.0
    %1856 = vmatprep.subr.mxu0 0.0
    %1857 = vmatpush2.msra.mxu0 0.0
    %1858 = vmatprep.subr.mxu0 0.0
    %1859 = vmatpush2.msra.mxu0 0.0
    %1860 = vmatprep.subr.mxu0 0.0
    %1861 = vmatpush2.msra.mxu0 0.0
    %1862 = vmatprep.subr.mxu0 0.0
    %1863 = vmatpush2.msra.mxu0 0.0
    %1864 = vmatprep.subr.mxu0 0.0
    %1865 = vmatpush2.msra.mxu0 0.0
    %1866 = vmatprep.subr.mxu0 0.0
    %1867 = vmatpush2.msra.mxu0 0.0
    %1868 = vmatprep.subr.mxu0 0.0
    %1869 = vmatpush2.msra.mxu0 0.0
    %1870 = vmatprep.subr.mxu0 0.0
    %1871 = vmatpush2.msra.mxu0 0.0
    %1872 = vmatprep.subr.mxu0 0.0
    %1873 = vmatpush2.msra.mxu0 0.0
    %1874 = vmatprep.mubr.f32.mxu0 0.0
    %1875 = vmatmul.mubr.f32.gmra.mxu0 %v1805
    %v1876 = vpop.f32.mrf.mxu0
    %v1877 = vadd.f32 %v1802, %v1876
    %v1878 = vpop.f32.mrf.mxu0
    %1879 = vmatprep.mubr.f32.mxu0 0.0
    %1880 = vmatmul.mubr.f32.gmra.mxu0 %v1808
    %v1881 = vpop.f32.mrf.mxu0
    %v1882 = vadd.f32 %v1802, %v1881
    %v1883 = vpop.f32.mrf.mxu0
    %1884 = vdwg.mxu0
    %v1885 = vtanh.pop %v1877
    %v1886 = vtanh.pop %v1882
    %v1888 = vsel %vm787, %v1885, 0
    %v1891 = vsel %vm787, %v1886, 0
    %1893 = vmatprep.subr.mxu0 0.0
    %1894 = vmatpush1.msra.mxu0 0.0
    %1895 = vmatprep.subr.mxu0 0.0
    %1896 = vmatpush1.msra.mxu0 0.0
    %1897 = vmatprep.subr.mxu0 0.0
    %1898 = vmatpush1.msra.mxu0 0.0
    %1899 = vmatprep.subr.mxu0 0.0
    %1900 = vmatpush1.msra.mxu0 0.0
    %1901 = vmatprep.subr.mxu0 0.0
    %1902 = vmatpush1.msra.mxu0 0.0
    %1903 = vmatprep.subr.mxu0 0.0
    %1904 = vmatpush1.msra.mxu0 0.0
    %1905 = vmatprep.subr.mxu0 0.0
    %1906 = vmatpush1.msra.mxu0 0.0
    %1907 = vmatprep.subr.mxu0 0.0
    %1908 = vmatpush1.msra.mxu0 0.0
    %1909 = vmatprep.subr.mxu0 0.0
    %1910 = vmatpush1.msra.mxu0 %v1793
    %1911 = vmatprep.subr.mxu0 0.0
    %1912 = vmatpush1.msra.mxu0 %v1792
    %1913 = vmatprep.subr.mxu0 0.0
    %1914 = vmatpush1.msra.mxu0 %v1791
    %1915 = vmatprep.subr.mxu0 0.0
    %1916 = vmatpush1.msra.mxu0 %v1790
    %1917 = vmatprep.subr.mxu0 0.0
    %1918 = vmatpush1.msra.mxu0 %v1789
    %1919 = vmatprep.subr.mxu0 0.0
    %1920 = vmatpush1.msra.mxu0 %v1788
    %1921 = vmatprep.subr.mxu0 0.0
    %1922 = vmatpush1.msra.mxu0 %v1787
    %1923 = vmatprep.subr.mxu0 0.0
    %1924 = vmatpush1.msra.mxu0 %v1786
    %1925 = vmatprep.subr.mxu0 0.0
    %1926 = vmatpush2.msra.mxu0 0.0
    %1927 = vmatprep.subr.mxu0 0.0
    %1928 = vmatpush2.msra.mxu0 0.0
    %1929 = vmatprep.subr.mxu0 0.0
    %1930 = vmatpush2.msra.mxu0 0.0
    %1931 = vmatprep.subr.mxu0 0.0
    %1932 = vmatpush2.msra.mxu0 0.0
    %1933 = vmatprep.subr.mxu0 0.0
    %1934 = vmatpush2.msra.mxu0 0.0
    %1935 = vmatprep.subr.mxu0 0.0
    %1936 = vmatpush2.msra.mxu0 0.0
    %1937 = vmatprep.subr.mxu0 0.0
    %1938 = vmatpush2.msra.mxu0 0.0
    %1939 = vmatprep.subr.mxu0 0.0
    %1940 = vmatpush2.msra.mxu0 0.0
    %1941 = vmatprep.subr.mxu0 0.0
    %1942 = vmatpush2.msra.mxu0 0.0
    %1943 = vmatprep.subr.mxu0 0.0
    %1944 = vmatpush2.msra.mxu0 0.0
    %1945 = vmatprep.subr.mxu0 0.0
    %1946 = vmatpush2.msra.mxu0 0.0
    %1947 = vmatprep.subr.mxu0 0.0
    %1948 = vmatpush2.msra.mxu0 0.0
    %1949 = vmatprep.subr.mxu0 0.0
    %1950 = vmatpush2.msra.mxu0 0.0
    %1951 = vmatprep.subr.mxu0 0.0
    %1952 = vmatpush2.msra.mxu0 0.0
    %1953 = vmatprep.subr.mxu0 0.0
    %1954 = vmatpush2.msra.mxu0 0.0
    %1955 = vmatprep.subr.mxu0 0.0
    %1956 = vmatpush2.msra.mxu0 0.0
    %1957 = vmatprep.mubr.f32.mxu0 0.0
    %1958 = vmatmul.mubr.f32.gmra.mxu0 %v1888
    %v1959 = vpop.f32.mrf.mxu0
    %v1960 = vadd.f32 0.0, %v1959
    %v1961 = vpop.f32.mrf.mxu0
    %1962 = vmatprep.mubr.f32.mxu0 0.0
    %1963 = vmatmul.mubr.f32.gmra.mxu0 %v1891
    %v1964 = vpop.f32.mrf.mxu0
    %v1965 = vadd.f32 0.0, %v1964
    %v1966 = vpop.f32.mrf.mxu0
    %1967 = vdwg.mxu0
    %vm1968 = vcmask 31744
    %v1969 = vsel %vm1968, %v1960, -inf
    %v1970 = vsel %vm1968, %v1965, -inf
    %v1971 = vmax.f32 %v1969, %v1970
    %v1972 = vrot.slane %v1971, 4
    %v1973 = vmax.f32 %v1971, %v1972
    %v1974 = vrot.slane %v1973, 2
    %v1975 = vmax.f32 %v1973, %v1974
    %v1976 = vrot.slane %v1975, 1
    %v1977 = vmax.f32 %v1975, %v1976
    %v1978 = vsub.f32 %v1960, %v1977
    %v1979 = vsub.f32 %v1965, %v1977
    %v1980 = vmul.f32 %v1978, 1.442695
    %v1981 = vpow.pop %v1980
    %v1982 = vmul.f32 %v1979, 1.442695
    %v1983 = vpow.pop %v1982
    %v1985 = vsel %vm433, %v1797, 0
    %1987 = vmatprep.subr.mxu0 0.0
    %1988 = vmatpush1.msra.mxu0 0.0
    %1989 = vmatprep.subr.mxu0 0.0
    %1990 = vmatpush1.msra.mxu0 0.0
    %1991 = vmatprep.subr.mxu0 0.0
    %1992 = vmatpush1.msra.mxu0 0.0
    %1993 = vmatprep.subr.mxu0 0.0
    %1994 = vmatpush1.msra.mxu0 0.0
    %1995 = vmatprep.subr.mxu0 0.0
    %1996 = vmatpush1.msra.mxu0 0.0
    %1997 = vmatprep.subr.mxu0 0.0
    %1998 = vmatpush1.msra.mxu0 0.0
    %1999 = vmatprep.subr.mxu0 0.0
    %2000 = vmatpush1.msra.mxu0 0.0
    %2001 = vmatprep.subr.mxu0 0.0
    %2002 = vmatpush1.msra.mxu0 0.0
    %2003 = vmatprep.subr.mxu0 0.0
    %2004 = vmatpush1.msra.mxu0 0.0
    %2005 = vmatprep.subr.mxu0 0.0
    %2006 = vmatpush1.msra.mxu0 0.0
    %2007 = vmatprep.subr.mxu0 0.0
    %2008 = vmatpush1.msra.mxu0 0.0
    %2009 = vmatprep.subr.mxu0 0.0
    %2010 = vmatpush1.msra.mxu0 0.0
    %2011 = vmatprep.subr.mxu0 0.0
    %2012 = vmatpush1.msra.mxu0 0.0
    %2013 = vmatprep.subr.mxu0 0.0
    %2014 = vmatpush1.msra.mxu0 0.0
    %2015 = vmatprep.subr.mxu0 0.0
    %2016 = vmatpush1.msra.mxu0 %v1983
    %2017 = vmatprep.subr.mxu0 0.0
    %2018 = vmatpush1.msra.mxu0 %v1981
    %2019 = vmatprep.subr.mxu0 0.0
    %2020 = vmatpush2.msra.mxu0 0.0
    %2021 = vmatprep.subr.mxu0 0.0
    %2022 = vmatpush2.msra.mxu0 0.0
    %2023 = vmatprep.subr.mxu0 0.0
    %2024 = vmatpush2.msra.mxu0 0.0
    %2025 = vmatprep.subr.mxu0 0.0
    %2026 = vmatpush2.msra.mxu0 0.0
    %2027 = vmatprep.subr.mxu0 0.0
    %2028 = vmatpush2.msra.mxu0 0.0
    %2029 = vmatprep.subr.mxu0 0.0
    %2030 = vmatpush2.msra.mxu0 0.0
    %2031 = vmatprep.subr.mxu0 0.0
    %2032 = vmatpush2.msra.mxu0 0.0
    %2033 = vmatprep.subr.mxu0 0.0
    %2034 = vmatpush2.msra.mxu0 0.0
    %2035 = vmatprep.subr.mxu0 0.0
    %2036 = vmatpush2.msra.mxu0 0.0
    %2037 = vmatprep.subr.mxu0 0.0
    %2038 = vmatpush2.msra.mxu0 0.0
    %2039 = vmatprep.subr.mxu0 0.0
    %2040 = vmatpush2.msra.mxu0 0.0
    %2041 = vmatprep.subr.mxu0 0.0
    %2042 = vmatpush2.msra.mxu0 0.0
    %2043 = vmatprep.subr.mxu0 0.0
    %2044 = vmatpush2.msra.mxu0 0.0
    %2045 = vmatprep.subr.mxu0 0.0
    %2046 = vmatpush2.msra.mxu0 0.0
    %2047 = vmatprep.subr.mxu0 0.0
    %2048 = vmatpush2.msra.mxu0 0.0
    %2049 = vmatprep.subr.mxu0 0.0
    %2050 = vmatpush2.msra.mxu0 0.0
    %2051 = vmatprep.mubr.f32.mxu0 0.0
    %2052 = vmatmul.mubr.f32.gmra.mxu0 %v1985
    %v2053 = vpop.f32.mrf.mxu0
    %v2054 = vadd.f32 1e-30, %v2053
    %v2055 = vpop.f32.mrf.mxu0
    %2056 = vdwg.mxu0
    %v2057 = vrcp.pop %v2054
    %v2059 = vsel %vm1968, %v1795, 0
    %v2062 = vsel %vm1968, %v1796, 0
    %vm2064 = vcmask 1043456
    %v2066 = vsel %vm2064, %v2057, 0
    %2068 = vmatprep.subr.mxu0 0.0
    %2069 = vmatpush1.msra.mxu0 0.0
    %2070 = vmatprep.subr.mxu0 0.0
    %2071 = vmatpush1.msra.mxu0 0.0
    %2072 = vmatprep.subr.mxu0 0.0
    %2073 = vmatpush1.msra.mxu0 0.0
    %2074 = vmatprep.subr.mxu0 0.0
    %2075 = vmatpush1.msra.mxu0 0.0
    %2076 = vmatprep.subr.mxu0 0.0
    %2077 = vmatpush1.msra.mxu0 0.0
    %2078 = vmatprep.subr.mxu0 0.0
    %2079 = vmatpush1.msra.mxu0 0.0
    %2080 = vmatprep.subr.mxu0 0.0
    %2081 = vmatpush1.msra.mxu0 0.0
    %2082 = vmatprep.subr.mxu0 0.0
    %2083 = vmatpush1.msra.mxu0 0.0
    %2084 = vmatprep.subr.mxu0 0.0
    %2085 = vmatpush1.msra.mxu0 0.0
    %2086 = vmatprep.subr.mxu0 0.0
    %2087 = vmatpush1.msra.mxu0 0.0
    %2088 = vmatprep.subr.mxu0 0.0
    %2089 = vmatpush1.msra.mxu0 0.0
    %2090 = vmatprep.subr.mxu0 0.0
    %2091 = vmatpush1.msra.mxu0 0.0
    %2092 = vmatprep.subr.mxu0 0.0
    %2093 = vmatpush1.msra.mxu0 0.0
    %2094 = vmatprep.subr.mxu0 0.0
    %2095 = vmatpush1.msra.mxu0 0.0
    %2096 = vmatprep.subr.mxu0 0.0
    %2097 = vmatpush1.msra.mxu0 0.0
    %2098 = vmatprep.subr.mxu0 0.0
    %2099 = vmatpush1.msra.mxu0 %v2066
    %2100 = vmatprep.subr.mxu0 0.0
    %2101 = vmatpush2.msra.mxu0 0.0
    %2102 = vmatprep.subr.mxu0 0.0
    %2103 = vmatpush2.msra.mxu0 0.0
    %2104 = vmatprep.subr.mxu0 0.0
    %2105 = vmatpush2.msra.mxu0 0.0
    %2106 = vmatprep.subr.mxu0 0.0
    %2107 = vmatpush2.msra.mxu0 0.0
    %2108 = vmatprep.subr.mxu0 0.0
    %2109 = vmatpush2.msra.mxu0 0.0
    %2110 = vmatprep.subr.mxu0 0.0
    %2111 = vmatpush2.msra.mxu0 0.0
    %2112 = vmatprep.subr.mxu0 0.0
    %2113 = vmatpush2.msra.mxu0 0.0
    %2114 = vmatprep.subr.mxu0 0.0
    %2115 = vmatpush2.msra.mxu0 0.0
    %2116 = vmatprep.subr.mxu0 0.0
    %2117 = vmatpush2.msra.mxu0 0.0
    %2118 = vmatprep.subr.mxu0 0.0
    %2119 = vmatpush2.msra.mxu0 0.0
    %2120 = vmatprep.subr.mxu0 0.0
    %2121 = vmatpush2.msra.mxu0 0.0
    %2122 = vmatprep.subr.mxu0 0.0
    %2123 = vmatpush2.msra.mxu0 0.0
    %2124 = vmatprep.subr.mxu0 0.0
    %2125 = vmatpush2.msra.mxu0 0.0
    %2126 = vmatprep.subr.mxu0 0.0
    %2127 = vmatpush2.msra.mxu0 0.0
    %2128 = vmatprep.subr.mxu0 0.0
    %2129 = vmatpush2.msra.mxu0 0.0
    %2130 = vmatprep.subr.mxu0 0.0
    %2131 = vmatpush2.msra.mxu0 0.0
    %2132 = vmatprep.mubr.f32.mxu0 0.0
    %2133 = vmatmul.mubr.f32.gmra.mxu0 %v2059
    %v2134 = vpop.f32.mrf.mxu0
    %v2135 = vadd.f32 0.0, %v2134
    %v2136 = vpop.f32.mrf.mxu0
    %2137 = vmatprep.mubr.f32.mxu0 0.0
    %2138 = vmatmul.mubr.f32.gmra.mxu0 %v2062
    %v2139 = vpop.f32.mrf.mxu0
    %v2140 = vadd.f32 0.0, %v2139
    %v2141 = vpop.f32.mrf.mxu0
    %2142 = vdwg.mxu0
    %v2143 = vmul.f32 %v1981, %v2135
    %v2144 = vmul.f32 %v1983, %v2140
    %v2146 = vsel %vm1968, %v2143, 0
    %v2149 = vsel %vm1968, %v2144, 0
    %v2152 = vsel %vm2064, %v1794, 0
    %2154 = vmatprep.subr.mxu0 0.0
    %2155 = vmatpush1.msra.mxu0 0.0
    %2156 = vmatprep.subr.mxu0 0.0
    %2157 = vmatpush1.msra.mxu0 0.0
    %2158 = vmatprep.subr.mxu0 0.0
    %2159 = vmatpush1.msra.mxu0 0.0
    %2160 = vmatprep.subr.mxu0 0.0
    %2161 = vmatpush1.msra.mxu0 0.0
    %2162 = vmatprep.subr.mxu0 0.0
    %2163 = vmatpush1.msra.mxu0 0.0
    %2164 = vmatprep.subr.mxu0 0.0
    %2165 = vmatpush1.msra.mxu0 0.0
    %2166 = vmatprep.subr.mxu0 0.0
    %2167 = vmatpush1.msra.mxu0 0.0
    %2168 = vmatprep.subr.mxu0 0.0
    %2169 = vmatpush1.msra.mxu0 0.0
    %2170 = vmatprep.subr.mxu0 0.0
    %2171 = vmatpush1.msra.mxu0 0.0
    %2172 = vmatprep.subr.mxu0 0.0
    %2173 = vmatpush1.msra.mxu0 0.0
    %2174 = vmatprep.subr.mxu0 0.0
    %2175 = vmatpush1.msra.mxu0 0.0
    %2176 = vmatprep.subr.mxu0 0.0
    %2177 = vmatpush1.msra.mxu0 0.0
    %2178 = vmatprep.subr.mxu0 0.0
    %2179 = vmatpush1.msra.mxu0 0.0
    %2180 = vmatprep.subr.mxu0 0.0
    %2181 = vmatpush1.msra.mxu0 0.0
    %2182 = vmatprep.subr.mxu0 0.0
    %2183 = vmatpush1.msra.mxu0 0.0
    %2184 = vmatprep.subr.mxu0 0.0
    %2185 = vmatpush1.msra.mxu0 %v2152
    %2186 = vmatprep.subr.mxu0 0.0
    %2187 = vmatpush2.msra.mxu0 0.0
    %2188 = vmatprep.subr.mxu0 0.0
    %2189 = vmatpush2.msra.mxu0 0.0
    %2190 = vmatprep.subr.mxu0 0.0
    %2191 = vmatpush2.msra.mxu0 0.0
    %2192 = vmatprep.subr.mxu0 0.0
    %2193 = vmatpush2.msra.mxu0 0.0
    %2194 = vmatprep.subr.mxu0 0.0
    %2195 = vmatpush2.msra.mxu0 0.0
    %2196 = vmatprep.subr.mxu0 0.0
    %2197 = vmatpush2.msra.mxu0 0.0
    %2198 = vmatprep.subr.mxu0 0.0
    %2199 = vmatpush2.msra.mxu0 0.0
    %2200 = vmatprep.subr.mxu0 0.0
    %2201 = vmatpush2.msra.mxu0 0.0
    %2202 = vmatprep.subr.mxu0 0.0
    %2203 = vmatpush2.msra.mxu0 0.0
    %2204 = vmatprep.subr.mxu0 0.0
    %2205 = vmatpush2.msra.mxu0 0.0
    %2206 = vmatprep.subr.mxu0 0.0
    %2207 = vmatpush2.msra.mxu0 0.0
    %2208 = vmatprep.subr.mxu0 0.0
    %2209 = vmatpush2.msra.mxu0 0.0
    %2210 = vmatprep.subr.mxu0 0.0
    %2211 = vmatpush2.msra.mxu0 0.0
    %2212 = vmatprep.subr.mxu0 0.0
    %2213 = vmatpush2.msra.mxu0 0.0
    %2214 = vmatprep.subr.mxu0 0.0
    %2215 = vmatpush2.msra.mxu0 0.0
    %2216 = vmatprep.subr.mxu0 0.0
    %2217 = vmatpush2.msra.mxu0 0.0
    %2218 = vmatprep.mubr.f32.mxu0 0.0
    %2219 = vmatmul.mubr.f32.gmra.mxu0 %v2146
    %v2220 = vpop.f32.mrf.mxu0
    %v2221 = vadd.f32 0.0, %v2220
    %v2222 = vpop.f32.mrf.mxu0
    %2223 = vmatprep.mubr.f32.mxu0 0.0
    %2224 = vmatmul.mubr.f32.gmra.mxu0 %v2149
    %v2225 = vpop.f32.mrf.mxu0
    %v2226 = vadd.f32 0.0, %v2225
    %v2227 = vpop.f32.mrf.mxu0
    %2228 = vdwg.mxu0
    %v2229 = vmul.f32 %v2221, %v1775
    %v2230 = vmul.f32 %v2226, %v1776
    %2231 = vmatprep.subr.mxu0 0.0
    %2232 = vmatpush1.msra.mxu0 0.0
    %2233 = vmatprep.subr.mxu0 0.0
    %2234 = vmatpush1.msra.mxu0 0.0
    %2235 = vmatprep.subr.mxu0 0.0
    %2236 = vmatpush1.msra.mxu0 0.0
    %2237 = vmatprep.subr.mxu0 0.0
    %2238 = vmatpush1.msra.mxu0 0.0
    %2239 = vmatprep.subr.mxu0 0.0
    %2240 = vmatpush1.msra.mxu0 0.0
    %2241 = vmatprep.subr.mxu0 0.0
    %2242 = vmatpush1.msra.mxu0 0.0
    %2243 = vmatprep.subr.mxu0 0.0
    %2244 = vmatpush1.msra.mxu0 0.0
    %2245 = vmatprep.subr.mxu0 0.0
    %2246 = vmatpush1.msra.mxu0 0.0
    %2247 = vmatprep.subr.mxu0 0.0
    %2248 = vmatpush1.msra.mxu0 0.0
    %2249 = vmatprep.subr.mxu0 0.0
    %2250 = vmatpush1.msra.mxu0 0.0
    %2251 = vmatprep.subr.mxu0 0.0
    %2252 = vmatpush1.msra.mxu0 0.0
    %2253 = vmatprep.subr.mxu0 0.0
    %2254 = vmatpush1.msra.mxu0 0.0
    %2255 = vmatprep.subr.mxu0 0.0
    %2256 = vmatpush1.msra.mxu0 0.0
    %2257 = vmatprep.subr.mxu0 0.0
    %2258 = vmatpush1.msra.mxu0 0.0
    %2259 = vmatprep.subr.mxu0 0.0
    %2260 = vmatpush1.msra.mxu0 %v2230
    %2261 = vmatprep.subr.mxu0 0.0
    %2262 = vmatpush1.msra.mxu0 %v2229
    %2263 = vmatprep.subr.mxu0 0.0
    %2264 = vmatpush2.msra.mxu0 0.0
    %2265 = vmatprep.subr.mxu0 0.0
    %2266 = vmatpush2.msra.mxu0 0.0
    %2267 = vmatprep.subr.mxu0 0.0
    %2268 = vmatpush2.msra.mxu0 0.0
    %2269 = vmatprep.subr.mxu0 0.0
    %2270 = vmatpush2.msra.mxu0 0.0
    %2271 = vmatprep.subr.mxu0 0.0
    %2272 = vmatpush2.msra.mxu0 0.0
    %2273 = vmatprep.subr.mxu0 0.0
    %2274 = vmatpush2.msra.mxu0 0.0
    %2275 = vmatprep.subr.mxu0 0.0
    %2276 = vmatpush2.msra.mxu0 0.0
    %2277 = vmatprep.subr.mxu0 0.0
    %2278 = vmatpush2.msra.mxu0 0.0
    %2279 = vmatprep.subr.mxu0 0.0
    %2280 = vmatpush2.msra.mxu0 0.0
    %2281 = vmatprep.subr.mxu0 0.0
    %2282 = vmatpush2.msra.mxu0 0.0
    %2283 = vmatprep.subr.mxu0 0.0
    %2284 = vmatpush2.msra.mxu0 0.0
    %2285 = vmatprep.subr.mxu0 0.0
    %2286 = vmatpush2.msra.mxu0 0.0
    %2287 = vmatprep.subr.mxu0 0.0
    %2288 = vmatpush2.msra.mxu0 0.0
    %2289 = vmatprep.subr.mxu0 0.0
    %2290 = vmatpush2.msra.mxu0 0.0
    %2291 = vmatprep.subr.mxu0 0.0
    %2292 = vmatpush2.msra.mxu0 0.0
    %2293 = vmatprep.subr.mxu0 0.0
    %2294 = vmatpush2.msra.mxu0 0.0
    %2295 = vmatprep.mubr.f32.mxu0 0.0
    %2296 = vmatmul.mubr.f32.gmra.mxu0 %v1985
    %v2297 = vpop.f32.mrf.mxu0
    %v2298 = vadd.f32 0.0, %v2297
    %v2299 = vpop.f32.mrf.mxu0
    %2300 = vdwg.mxu0
    %v2301 = vld [vmem:[%s18] sm:$0xff]
    %v2302 = vld [vmem:[%s18 + $0x8] sm:$0xff]
    %v2303 = vld [vmem:[%s18 + $0x10] sm:$0xff]
    %v2304 = vld [vmem:[%s18 + $0x18] sm:$0xff]
    %v2305 = vld [vmem:[%s18 + $0x20] sm:$0xff]
    %v2306 = vld [vmem:[%s18 + $0x28] sm:$0xff]
    %v2307 = vld [vmem:[%s18 + $0x30] sm:$0xff]
    %v2308 = vld [vmem:[%s18 + $0x38] sm:$0xff]
    %v2309 = vld [vmem:[%s18 + $0x40] sm:$0xff]
    %v2310 = vld [vmem:[%s18 + $0x48] sm:$0xff]
    %v2311 = vld [vmem:[%s18 + $0x50] sm:$0xff]
    %v2312 = vld [vmem:[%s18 + $0x58] sm:$0xff]
    %v2313 = vld [vmem:[%s18 + $0x60] sm:$0xff]
    %v2314 = vld [vmem:[%s18 + $0x68] sm:$0xff]
    %v2315 = vld [vmem:[%s18 + $0x70] sm:$0xff]
    %v2316 = vld [vmem:[%s18 + $0x78] sm:$0xff]
    %v2317 = vld [vmem:[#allocation27] sm:$0xff]
    %v2318 = vld [vmem:[#allocation27 + $0x8] sm:$0xff]
    %v2319 = vld [vmem:[#allocation27 + $0x10] sm:$0xff]
    %v2320 = vld [vmem:[#allocation27 + $0x18] sm:$0xff]
    %v2321 = vld [vmem:[#allocation27 + $0x20] sm:$0xff]
    %v2322 = vld [vmem:[#allocation27 + $0x28] sm:$0xff]
    %v2323 = vld [vmem:[#allocation27 + $0x30] sm:$0xff]
    %v2324 = vld [vmem:[#allocation27 + $0x38] sm:$0xff]
    %v2325 = vld [vmem:[#allocation27 + $0x40] sm:$0xff]
    %v2326 = vld [vmem:[#allocation27 + $0x48] sm:$0xff]
    %v2327 = vld [vmem:[#allocation27 + $0x50] sm:$0xff]
    %v2328 = vld [vmem:[#allocation27 + $0x58] sm:$0xff]
    %v2329 = vld [vmem:[#allocation27 + $0x60] sm:$0xff]
    %v2330 = vld [vmem:[#allocation27 + $0x68] sm:$0xff]
    %v2331 = vld [vmem:[#allocation27 + $0x70] sm:$0xff]
    %v2332 = vld [vmem:[#allocation27 + $0x78] sm:$0xff]
    %v2333 = vld [vmem:[%s20] sm:$0x3]
    %v2335 = vlaneseq
    %v2336 = vshrl.u32 %v2335, 7
    %v2337 = vsub.s32 0, %v2336
    %v2338 = vrot.slane %v2333, %v2337
    %v2339 = vlaneseq
    %v2340 = vshrl.u32 %v2339, 7
    %v2341 = vsub.s32 1, %v2340
    %v2342 = vrot.slane %v2333, %v2341
    %v2346 = vsel %vm787, %v2298, 0
    %2348 = vmatprep.subr.mxu0 0.0
    %2349 = vmatpush1.msra.mxu0 0.0
    %2350 = vmatprep.subr.mxu0 0.0
    %2351 = vmatpush1.msra.mxu0 0.0
    %2352 = vmatprep.subr.mxu0 0.0
    %2353 = vmatpush1.msra.mxu0 0.0
    %2354 = vmatprep.subr.mxu0 0.0
    %2355 = vmatpush1.msra.mxu0 0.0
    %2356 = vmatprep.subr.mxu0 0.0
    %2357 = vmatpush1.msra.mxu0 0.0
    %2358 = vmatprep.subr.mxu0 0.0
    %2359 = vmatpush1.msra.mxu0 0.0
    %2360 = vmatprep.subr.mxu0 0.0
    %2361 = vmatpush1.msra.mxu0 0.0
    %2362 = vmatprep.subr.mxu0 0.0
    %2363 = vmatpush1.msra.mxu0 0.0
    %2364 = vmatprep.subr.mxu0 %v2316
    %2365 = vmatpush1.msra.mxu0 %v2315
    %2366 = vmatprep.subr.mxu0 %v2314
    %2367 = vmatpush1.msra.mxu0 %v2313
    %2368 = vmatprep.subr.mxu0 %v2312
    %2369 = vmatpush1.msra.mxu0 %v2311
    %2370 = vmatprep.subr.mxu0 %v2310
    %2371 = vmatpush1.msra.mxu0 %v2309
    %2372 = vmatprep.subr.mxu0 %v2308
    %2373 = vmatpush1.msra.mxu0 %v2307
    %2374 = vmatprep.subr.mxu0 %v2306
    %2375 = vmatpush1.msra.mxu0 %v2305
    %2376 = vmatprep.subr.mxu0 %v2304
    %2377 = vmatpush1.msra.mxu0 %v2303
    %2378 = vmatprep.subr.mxu0 %v2302
    %2379 = vmatpush1.msra.mxu0 %v2301
    %2380 = vmatprep.subr.mxu0 0.0
    %2381 = vmatpush2.msra.mxu0 0.0
    %2382 = vmatprep.subr.mxu0 0.0
    %2383 = vmatpush2.msra.mxu0 0.0
    %2384 = vmatprep.subr.mxu0 0.0
    %2385 = vmatpush2.msra.mxu0 0.0
    %2386 = vmatprep.subr.mxu0 0.0
    %2387 = vmatpush2.msra.mxu0 0.0
    %2388 = vmatprep.subr.mxu0 0.0
    %2389 = vmatpush2.msra.mxu0 0.0
    %2390 = vmatprep.subr.mxu0 0.0
    %2391 = vmatpush2.msra.mxu0 0.0
    %2392 = vmatprep.subr.mxu0 0.0
    %2393 = vmatpush2.msra.mxu0 0.0
    %2394 = vmatprep.subr.mxu0 0.0
    %2395 = vmatpush2.msra.mxu0 0.0
    %2396 = vmatprep.subr.mxu0 0.0
    %2397 = vmatpush2.msra.mxu0 0.0
    %2398 = vmatprep.subr.mxu0 0.0
    %2399 = vmatpush2.msra.mxu0 0.0
    %2400 = vmatprep.subr.mxu0 0.0
    %2401 = vmatpush2.msra.mxu0 0.0
    %2402 = vmatprep.subr.mxu0 0.0
    %2403 = vmatpush2.msra.mxu0 0.0
    %2404 = vmatprep.subr.mxu0 0.0
    %2405 = vmatpush2.msra.mxu0 0.0
    %2406 = vmatprep.subr.mxu0 0.0
    %2407 = vmatpush2.msra.mxu0 0.0
    %2408 = vmatprep.subr.mxu0 0.0
    %2409 = vmatpush2.msra.mxu0 0.0
    %2410 = vmatprep.subr.mxu0 0.0
    %2411 = vmatpush2.msra.mxu0 0.0
    %2412 = vmatprep.mubr.f32.mxu0 0.0
    %2413 = vmatmul.mubr.f32.gmra.mxu0 %v2346
    %v2414 = vpop.f32.mrf.mxu0
    %v2415 = vadd.f32 %v2338, %v2414
    %v2416 = vpop.f32.mrf.mxu0
    %v2417 = vadd.f32 %v2342, %v2416
    %2418 = vdwg.mxu0
    %v2421 = vrot.slane %v2415, 2
    %v2422 = vrot.slane %v2417, 2
    %v2425 = vsel %vm777, %v2415, %v2421
    %v2426 = vsel %vm778, %v2417, %v2422
    %2427 = vmatprep.subr.mxu0 0.0
    %2428 = vmatpush1.msra.mxu0 0.0
    %2429 = vmatprep.subr.mxu0 0.0
    %2430 = vmatpush1.msra.mxu0 0.0
    %2431 = vmatprep.subr.mxu0 0.0
    %2432 = vmatpush1.msra.mxu0 0.0
    %2433 = vmatprep.subr.mxu0 0.0
    %2434 = vmatpush1.msra.mxu0 0.0
    %2435 = vmatprep.subr.mxu0 0.0
    %2436 = vmatpush1.msra.mxu0 0.0
    %2437 = vmatprep.subr.mxu0 0.0
    %2438 = vmatpush1.msra.mxu0 0.0
    %2439 = vmatprep.subr.mxu0 0.0
    %2440 = vmatpush1.msra.mxu0 0.0
    %2441 = vmatprep.subr.mxu0 0.0
    %2442 = vmatpush1.msra.mxu0 0.0
    %2443 = vmatprep.subr.mxu0 %v2332
    %2444 = vmatpush1.msra.mxu0 %v2331
    %2445 = vmatprep.subr.mxu0 %v2330
    %2446 = vmatpush1.msra.mxu0 %v2329
    %2447 = vmatprep.subr.mxu0 %v2328
    %2448 = vmatpush1.msra.mxu0 %v2327
    %2449 = vmatprep.subr.mxu0 %v2326
    %2450 = vmatpush1.msra.mxu0 %v2325
    %2451 = vmatprep.subr.mxu0 %v2324
    %2452 = vmatpush1.msra.mxu0 %v2323
    %2453 = vmatprep.subr.mxu0 %v2322
    %2454 = vmatpush1.msra.mxu0 %v2321
    %2455 = vmatprep.subr.mxu0 %v2320
    %2456 = vmatpush1.msra.mxu0 %v2319
    %2457 = vmatprep.subr.mxu0 %v2318
    %2458 = vmatpush1.msra.mxu0 %v2317
    %2459 = vmatprep.subr.mxu0 0.0
    %2460 = vmatpush2.msra.mxu0 0.0
    %2461 = vmatprep.subr.mxu0 0.0
    %2462 = vmatpush2.msra.mxu0 0.0
    %2463 = vmatprep.subr.mxu0 0.0
    %2464 = vmatpush2.msra.mxu0 0.0
    %2465 = vmatprep.subr.mxu0 0.0
    %2466 = vmatpush2.msra.mxu0 0.0
    %2467 = vmatprep.subr.mxu0 0.0
    %2468 = vmatpush2.msra.mxu0 0.0
    %2469 = vmatprep.subr.mxu0 0.0
    %2470 = vmatpush2.msra.mxu0 0.0
    %2471 = vmatprep.subr.mxu0 0.0
    %2472 = vmatpush2.msra.mxu0 0.0
    %2473 = vmatprep.subr.mxu0 0.0
    %2474 = vmatpush2.msra.mxu0 0.0
    %2475 = vmatprep.subr.mxu0 0.0
    %2476 = vmatpush2.msra.mxu0 0.0
    %2477 = vmatprep.subr.mxu0 0.0
    %2478 = vmatpush2.msra.mxu0 0.0
    %2479 = vmatprep.subr.mxu0 0.0
    %2480 = vmatpush2.msra.mxu0 0.0
    %2481 = vmatprep.subr.mxu0 0.0
    %2482 = vmatpush2.msra.mxu0 0.0
    %2483 = vmatprep.subr.mxu0 0.0
    %2484 = vmatpush2.msra.mxu0 0.0
    %2485 = vmatprep.subr.mxu0 0.0
    %2486 = vmatpush2.msra.mxu0 0.0
    %2487 = vmatprep.subr.mxu0 0.0
    %2488 = vmatpush2.msra.mxu0 0.0
    %2489 = vmatprep.subr.mxu0 0.0
    %2490 = vmatpush2.msra.mxu0 0.0
    %2491 = vmatprep.mubr.f32.mxu0 0.0
    %2492 = vmatmul.mubr.f32.gmra.mxu0 %v789
    %v2493 = vpop.f32.mrf.mxu0
    %v2494 = vadd.f32 0.0, %v2493
    %v2495 = vpop.f32.mrf.mxu0
    %v2496 = vadd.f32 0.0, %v2495
    %2497 = vdwg.mxu0
    %v2498 = vadd.f32 %v2425, %v2494
    %v2499 = vadd.f32 %v2426, %v2496
    %v2500 = vxor.u32 %v2498, 2147483648
    %v2501 = vxor.u32 %v2499, 2147483648
    %v2502 = vmul.f32 %v2500, 1.442695
    %v2503 = vpow.pop %v2502
    %v2504 = vmul.f32 %v2501, 1.442695
    %v2505 = vpow.pop %v2504
    %v2506 = vadd.f32 %v2503, 1.0
    %v2507 = vadd.f32 %v2505, 1.0
    %v2508 = vrcp.pop %v2506
    %v2509 = vmul.f32 1.0, %v2508
    %v2510 = vrcp.pop %v2507
    %v2511 = vmul.f32 1.0, %v2510
    %v2512 = vtanh.pop %v2499
    %v2513 = vmul.f32 %v2509, 0.0
    %2515 = vrot.lane.b32.xlu0 %v2512, 64
    %v2516 = vpop.permute.xlu0 %2515
    %v2518 = vmul.f32 %v2509, %v2516
    %2520 = vrot.lane.b32.xlu0 %v2518, 64
    %v2521 = vpop.permute.xlu0 %2520
    %v2523 = vadd.f32 %v2513, %v2521
    %v2524 = vtanh.pop %v2523
    %2526 = vrot.lane.b32.xlu0 %v2524, 64
    %v2527 = vpop.permute.xlu0 %2526
    %v2529 = vmul.f32 %v2511, %v2527
    %2530 = vst.msk [vmem:[#allocation4] sm:$0x3] %vm894, %v2529
    %2532 = vrot.lane.b32.xlu0 %v2529, 96
    %v2533 = vpop.permute.xlu0 %2532
    %2535 = vst.msk [vmem:[#allocation5 + $0x2] sm:$0x3] %vm894, %v2533
    %v2536 = vrot.slane %v2415, 6
    %v2537 = vrot.slane %v2417, 6
    %v2540 = vsel %vm777, %v2415, %v2536
    %v2541 = vsel %vm778, %v2417, %v2537
    %v2542 = vsel %vm787, %v2529, 0
    %2544 = vmatprep.subr.mxu0 0.0
    %2545 = vmatpush1.msra.mxu0 0.0
    %2546 = vmatprep.subr.mxu0 0.0
    %2547 = vmatpush1.msra.mxu0 0.0
    %2548 = vmatprep.subr.mxu0 0.0
    %2549 = vmatpush1.msra.mxu0 0.0
    %2550 = vmatprep.subr.mxu0 0.0
    %2551 = vmatpush1.msra.mxu0 0.0
    %2552 = vmatprep.subr.mxu0 0.0
    %2553 = vmatpush1.msra.mxu0 0.0
    %2554 = vmatprep.subr.mxu0 0.0
    %2555 = vmatpush1.msra.mxu0 0.0
    %2556 = vmatprep.subr.mxu0 0.0
    %2557 = vmatpush1.msra.mxu0 0.0
    %2558 = vmatprep.subr.mxu0 0.0
    %2559 = vmatpush1.msra.mxu0 0.0
    %2560 = vmatprep.subr.mxu0 %v2332
    %2561 = vmatpush1.msra.mxu0 %v2331
    %2562 = vmatprep.subr.mxu0 %v2330
    %2563 = vmatpush1.msra.mxu0 %v2329
    %2564 = vmatprep.subr.mxu0 %v2328
    %2565 = vmatpush1.msra.mxu0 %v2327
    %2566 = vmatprep.subr.mxu0 %v2326
    %2567 = vmatpush1.msra.mxu0 %v2325
    %2568 = vmatprep.subr.mxu0 %v2324
    %2569 = vmatpush1.msra.mxu0 %v2323
    %2570 = vmatprep.subr.mxu0 %v2322
    %2571 = vmatpush1.msra.mxu0 %v2321
    %2572 = vmatprep.subr.mxu0 %v2320
    %2573 = vmatpush1.msra.mxu0 %v2319
    %2574 = vmatprep.subr.mxu0 %v2318
    %2575 = vmatpush1.msra.mxu0 %v2317
    %2576 = vmatprep.subr.mxu0 0.0
    %2577 = vmatpush2.msra.mxu0 0.0
    %2578 = vmatprep.subr.mxu0 0.0
    %2579 = vmatpush2.msra.mxu0 0.0
    %2580 = vmatprep.subr.mxu0 0.0
    %2581 = vmatpush2.msra.mxu0 0.0
    %2582 = vmatprep.subr.mxu0 0.0
    %2583 = vmatpush2.msra.mxu0 0.0
    %2584 = vmatprep.subr.mxu0 0.0
    %2585 = vmatpush2.msra.mxu0 0.0
    %2586 = vmatprep.subr.mxu0 0.0
    %2587 = vmatpush2.msra.mxu0 0.0
    %2588 = vmatprep.subr.mxu0 0.0
    %2589 = vmatpush2.msra.mxu0 0.0
    %2590 = vmatprep.subr.mxu0 0.0
    %2591 = vmatpush2.msra.mxu0 0.0
    %2592 = vmatprep.subr.mxu0 0.0
    %2593 = vmatpush2.msra.mxu0 0.0
    %2594 = vmatprep.subr.mxu0 0.0
    %2595 = vmatpush2.msra.mxu0 0.0
    %2596 = vmatprep.subr.mxu0 0.0
    %2597 = vmatpush2.msra.mxu0 0.0
    %2598 = vmatprep.subr.mxu0 0.0
    %2599 = vmatpush2.msra.mxu0 0.0
    %2600 = vmatprep.subr.mxu0 0.0
    %2601 = vmatpush2.msra.mxu0 0.0
    %2602 = vmatprep.subr.mxu0 0.0
    %2603 = vmatpush2.msra.mxu0 0.0
    %2604 = vmatprep.subr.mxu0 0.0
    %2605 = vmatpush2.msra.mxu0 0.0
    %2606 = vmatprep.subr.mxu0 0.0
    %2607 = vmatpush2.msra.mxu0 0.0
    %2608 = vmatprep.mubr.f32.mxu0 0.0
    %2609 = vmatmul.mubr.f32.gmra.mxu0 %v2542
    %v2610 = vpop.f32.mrf.mxu0
    %v2611 = vadd.f32 0.0, %v2610
    %v2612 = vpop.f32.mrf.mxu0
    %v2613 = vadd.f32 0.0, %v2612
    %2614 = vdwg.mxu0
    %v2617 = vrot.slane %v2611, 6
    %v2618 = vrot.slane %v2613, 6
    %v2621 = vadd.f32 %v2540, %v2617
    %v2622 = vadd.f32 %v2541, %v2618
    %v2623 = vxor.u32 %v2621, 2147483648
    %v2624 = vxor.u32 %v2622, 2147483648
    %v2625 = vmul.f32 %v2623, 1.442695
    %v2626 = vpow.pop %v2625
    %v2627 = vmul.f32 %v2624, 1.442695
    %v2628 = vpow.pop %v2627
    %v2629 = vadd.f32 %v2626, 1.0
    %v2630 = vadd.f32 %v2628, 1.0
    %v2631 = vrcp.pop %v2629
    %v2632 = vmul.f32 1.0, %v2631
    %v2633 = vrcp.pop %v2630
    %v2634 = vmul.f32 1.0, %v2633
    %v2635 = vtanh.pop %v2622
    %v2637 = vrot.slane %v2523, 6
    %v2639 = vmul.f32 %v2632, %v2637
    %2641 = vrot.lane.b32.xlu0 %v2635, 64
    %v2642 = vpop.permute.xlu0 %2641
    %v2644 = vmul.f32 %v2632, %v2642
    %2646 = vrot.lane.b32.xlu0 %v2644, 64
    %v2647 = vpop.permute.xlu0 %2646
    %v2649 = vadd.f32 %v2639, %v2647
    %v2650 = vtanh.pop %v2649
    %2652 = vrot.lane.b32.xlu0 %v2650, 64
    %v2653 = vpop.permute.xlu0 %2652
    %v2655 = vmul.f32 %v2634, %v2653
    %2656 = vst.msk [vmem:[#allocation4] sm:$0xc] %vm1021, %v2655
    %2658 = vrot.lane.b32.xlu0 %v2655, 96
    %v2659 = vpop.permute.xlu0 %2658
    %2661 = vst.msk [vmem:[#allocation5 - $0x2] sm:$0xc] %vm1021, %v2659
    %v2662 = vld [vmem:[#allocation4] sm:$0xf]
    %v2663 = vld [vmem:[#allocation5] sm:$0xf]
    %2665 = vrot.lane.b32.xlu0 %v2663, 32
    %v2666 = vpop.permute.xlu0 %2665
    %v2668 = vsel %vm684, %v2662, %v2666
    %v2669 = vld [vmem:[#allocation29] sm:$0xff]
    %v2670 = vld [vmem:[#allocation29 + $0x8] sm:$0xff]
    %v2671 = vld [vmem:[#allocation29 + $0x10] sm:$0xff]
    %v2672 = vld [vmem:[#allocation29 + $0x18] sm:$0xff]
    %v2673 = vld [vmem:[#allocation29 + $0x20] sm:$0xff]
    %v2674 = vld [vmem:[#allocation29 + $0x28] sm:$0xff]
    %v2675 = vld [vmem:[#allocation29 + $0x30] sm:$0xff]
    %v2676 = vld [vmem:[#allocation29 + $0x38] sm:$0xff]
    %v2677 = vld [vmem:[%s22] sm:$0x1]
    %v2678 = vld [vmem:[%s23] sm:$0xff]
    %v2679 = vld [vmem:[%s23 + $0x8] sm:$0xff]
    %v2680 = vld [vmem:[%s23 + $0x10] sm:$0xff]
    %v2681 = vld [vmem:[%s23 + $0x18] sm:$0xff]
    %v2682 = vld [vmem:[%s23 + $0x20] sm:$0xff]
    %v2683 = vld [vmem:[%s23 + $0x28] sm:$0xff]
    %v2684 = vld [vmem:[%s23 + $0x30] sm:$0xff]
    %v2685 = vld [vmem:[%s23 + $0x38] sm:$0xff]
    %v2686 = vld [vmem:[#allocation24] sm:$0xf]
    %v2687 = vld [vmem:[%s24] sm:$0xf]
    %v2688 = vld [vmem:[%s25] sm:$0x3]
    %v2690 = vlaneseq
    %v2691 = vshrl.u32 %v2690, 7
    %v2692 = vsub.s32 0, %v2691
    %v2693 = vrot.slane %v2677, %v2692
    %v2696 = vsel %vm787, %v2668, 0
    %2698 = vmatprep.subr.mxu0 0.0
    %2699 = vmatpush1.msra.mxu0 0.0
    %2700 = vmatprep.subr.mxu0 0.0
    %2701 = vmatpush1.msra.mxu0 0.0
    %2702 = vmatprep.subr.mxu0 0.0
    %2703 = vmatpush1.msra.mxu0 0.0
    %2704 = vmatprep.subr.mxu0 0.0
    %2705 = vmatpush1.msra.mxu0 0.0
    %2706 = vmatprep.subr.mxu0 0.0
    %2707 = vmatpush1.msra.mxu0 0.0
    %2708 = vmatprep.subr.mxu0 0.0
    %2709 = vmatpush1.msra.mxu0 0.0
    %2710 = vmatprep.subr.mxu0 0.0
    %2711 = vmatpush1.msra.mxu0 0.0
    %2712 = vmatprep.subr.mxu0 0.0
    %2713 = vmatpush1.msra.mxu0 0.0
    %2714 = vmatprep.subr.mxu0 0.0
    %2715 = vmatpush1.msra.mxu0 %v2676
    %2716 = vmatprep.subr.mxu0 0.0
    %2717 = vmatpush1.msra.mxu0 %v2675
    %2718 = vmatprep.subr.mxu0 0.0
    %2719 = vmatpush1.msra.mxu0 %v2674
    %2720 = vmatprep.subr.mxu0 0.0
    %2721 = vmatpush1.msra.mxu0 %v2673
    %2722 = vmatprep.subr.mxu0 0.0
    %2723 = vmatpush1.msra.mxu0 %v2672
    %2724 = vmatprep.subr.mxu0 0.0
    %2725 = vmatpush1.msra.mxu0 %v2671
    %2726 = vmatprep.subr.mxu0 0.0
    %2727 = vmatpush1.msra.mxu0 %v2670
    %2728 = vmatprep.subr.mxu0 0.0
    %2729 = vmatpush1.msra.mxu0 %v2669
    %2730 = vmatprep.subr.mxu0 0.0
    %2731 = vmatpush2.msra.mxu0 0.0
    %2732 = vmatprep.subr.mxu0 0.0
    %2733 = vmatpush2.msra.mxu0 0.0
    %2734 = vmatprep.subr.mxu0 0.0
    %2735 = vmatpush2.msra.mxu0 0.0
    %2736 = vmatprep.subr.mxu0 0.0
    %2737 = vmatpush2.msra.mxu0 0.0
    %2738 = vmatprep.subr.mxu0 0.0
    %2739 = vmatpush2.msra.mxu0 0.0
    %2740 = vmatprep.subr.mxu0 0.0
    %2741 = vmatpush2.msra.mxu0 0.0
    %2742 = vmatprep.subr.mxu0 0.0
    %2743 = vmatpush2.msra.mxu0 0.0
    %2744 = vmatprep.subr.mxu0 0.0
    %2745 = vmatpush2.msra.mxu0 0.0
    %2746 = vmatprep.subr.mxu0 0.0
    %2747 = vmatpush2.msra.mxu0 0.0
    %2748 = vmatprep.subr.mxu0 0.0
    %2749 = vmatpush2.msra.mxu0 0.0
    %2750 = vmatprep.subr.mxu0 0.0
    %2751 = vmatpush2.msra.mxu0 0.0
    %2752 = vmatprep.subr.mxu0 0.0
    %2753 = vmatpush2.msra.mxu0 0.0
    %2754 = vmatprep.subr.mxu0 0.0
    %2755 = vmatpush2.msra.mxu0 0.0
    %2756 = vmatprep.subr.mxu0 0.0
    %2757 = vmatpush2.msra.mxu0 0.0
    %2758 = vmatprep.subr.mxu0 0.0
    %2759 = vmatpush2.msra.mxu0 0.0
    %2760 = vmatprep.subr.mxu0 0.0
    %2761 = vmatpush2.msra.mxu0 0.0
    %2762 = vmatprep.mubr.f32.mxu0 0.0
    %2763 = vmatmul.mubr.f32.gmra.mxu0 %v2696
    %v2764 = vpop.f32.mrf.mxu0
    %v2765 = vadd.f32 %v2693, %v2764
    %v2766 = vpop.f32.mrf.mxu0
    %2767 = vdwg.mxu0
    %v2768 = vtanh.pop %v2765
    %v2770 = vsel %vm787, %v2768, 0
    %2772 = vmatprep.subr.mxu0 0.0
    %2773 = vmatpush1.msra.mxu0 0.0
    %2774 = vmatprep.subr.mxu0 0.0
    %2775 = vmatpush1.msra.mxu0 0.0
    %2776 = vmatprep.subr.mxu0 0.0
    %2777 = vmatpush1.msra.mxu0 0.0
    %2778 = vmatprep.subr.mxu0 0.0
    %2779 = vmatpush1.msra.mxu0 0.0
    %2780 = vmatprep.subr.mxu0 0.0
    %2781 = vmatpush1.msra.mxu0 0.0
    %2782 = vmatprep.subr.mxu0 0.0
    %2783 = vmatpush1.msra.mxu0 0.0
    %2784 = vmatprep.subr.mxu0 0.0
    %2785 = vmatpush1.msra.mxu0 0.0
    %2786 = vmatprep.subr.mxu0 0.0
    %2787 = vmatpush1.msra.mxu0 0.0
    %2788 = vmatprep.subr.mxu0 0.0
    %2789 = vmatpush1.msra.mxu0 %v2685
    %2790 = vmatprep.subr.mxu0 0.0
    %2791 = vmatpush1.msra.mxu0 %v2684
    %2792 = vmatprep.subr.mxu0 0.0
    %2793 = vmatpush1.msra.mxu0 %v2683
    %2794 = vmatprep.subr.mxu0 0.0
    %2795 = vmatpush1.msra.mxu0 %v2682
    %2796 = vmatprep.subr.mxu0 0.0
    %2797 = vmatpush1.msra.mxu0 %v2681
    %2798 = vmatprep.subr.mxu0 0.0
    %2799 = vmatpush1.msra.mxu0 %v2680
    %2800 = vmatprep.subr.mxu0 0.0
    %2801 = vmatpush1.msra.mxu0 %v2679
    %2802 = vmatprep.subr.mxu0 0.0
    %2803 = vmatpush1.msra.mxu0 %v2678
    %2804 = vmatprep.subr.mxu0 0.0
    %2805 = vmatpush2.msra.mxu0 0.0
    %2806 = vmatprep.subr.mxu0 0.0
    %2807 = vmatpush2.msra.mxu0 0.0
    %2808 = vmatprep.subr.mxu0 0.0
    %2809 = vmatpush2.msra.mxu0 0.0
    %2810 = vmatprep.subr.mxu0 0.0
    %2811 = vmatpush2.msra.mxu0 0.0
    %2812 = vmatprep.subr.mxu0 0.0
    %2813 = vmatpush2.msra.mxu0 0.0
    %2814 = vmatprep.subr.mxu0 0.0
    %2815 = vmatpush2.msra.mxu0 0.0
    %2816 = vmatprep.subr.mxu0 0.0
    %2817 = vmatpush2.msra.mxu0 0.0
    %2818 = vmatprep.subr.mxu0 0.0
    %2819 = vmatpush2.msra.mxu0 0.0
    %2820 = vmatprep.subr.mxu0 0.0
    %2821 = vmatpush2.msra.mxu0 0.0
    %2822 = vmatprep.subr.mxu0 0.0
    %2823 = vmatpush2.msra.mxu0 0.0
    %2824 = vmatprep.subr.mxu0 0.0
    %2825 = vmatpush2.msra.mxu0 0.0
    %2826 = vmatprep.subr.mxu0 0.0
    %2827 = vmatpush2.msra.mxu0 0.0
    %2828 = vmatprep.subr.mxu0 0.0
    %2829 = vmatpush2.msra.mxu0 0.0
    %2830 = vmatprep.subr.mxu0 0.0
    %2831 = vmatpush2.msra.mxu0 0.0
    %2832 = vmatprep.subr.mxu0 0.0
    %2833 = vmatpush2.msra.mxu0 0.0
    %2834 = vmatprep.subr.mxu0 0.0
    %2835 = vmatpush2.msra.mxu0 0.0
    %2836 = vmatprep.mubr.f32.mxu0 0.0
    %2837 = vmatmul.mubr.f32.gmra.mxu0 %v2770
    %v2838 = vpop.f32.mrf.mxu0
    %v2839 = vadd.f32 0.0, %v2838
    %v2840 = vpop.f32.mrf.mxu0
    %2841 = vdwg.mxu0
    %vm2842 = vcmask 27648
    %v2843 = vsel %vm2842, %v2839, -inf
    %v2844 = vrot.slane %v2843, 4
    %v2845 = vmax.f32 %v2843, %v2844
    %v2846 = vrot.slane %v2845, 2
    %v2847 = vmax.f32 %v2845, %v2846
    %v2848 = vrot.slane %v2847, 1
    %v2849 = vmax.f32 %v2847, %v2848
    %v2850 = vsub.f32 %v2839, %v2849
    %v2851 = vmul.f32 %v2850, 1.442695
    %v2852 = vpow.pop %v2851
    %v2854 = vsel %vm1968, %v2688, 0
    %v2857 = vsel %vm2064, %v2852, 0
    %2859 = vmatprep.subr.mxu0 0.0
    %2860 = vmatpush1.msra.mxu0 0.0
    %2861 = vmatprep.subr.mxu0 0.0
    %2862 = vmatpush1.msra.mxu0 0.0
    %2863 = vmatprep.subr.mxu0 0.0
    %2864 = vmatpush1.msra.mxu0 0.0
    %2865 = vmatprep.subr.mxu0 0.0
    %2866 = vmatpush1.msra.mxu0 0.0
    %2867 = vmatprep.subr.mxu0 0.0
    %2868 = vmatpush1.msra.mxu0 0.0
    %2869 = vmatprep.subr.mxu0 0.0
    %2870 = vmatpush1.msra.mxu0 0.0
    %2871 = vmatprep.subr.mxu0 0.0
    %2872 = vmatpush1.msra.mxu0 0.0
    %2873 = vmatprep.subr.mxu0 0.0
    %2874 = vmatpush1.msra.mxu0 0.0
    %2875 = vmatprep.subr.mxu0 0.0
    %2876 = vmatpush1.msra.mxu0 0.0
    %2877 = vmatprep.subr.mxu0 0.0
    %2878 = vmatpush1.msra.mxu0 0.0
    %2879 = vmatprep.subr.mxu0 0.0
    %2880 = vmatpush1.msra.mxu0 0.0
    %2881 = vmatprep.subr.mxu0 0.0
    %2882 = vmatpush1.msra.mxu0 0.0
    %2883 = vmatprep.subr.mxu0 0.0
    %2884 = vmatpush1.msra.mxu0 0.0
    %2885 = vmatprep.subr.mxu0 0.0
    %2886 = vmatpush1.msra.mxu0 0.0
    %2887 = vmatprep.subr.mxu0 0.0
    %2888 = vmatpush1.msra.mxu0 0.0
    %2889 = vmatprep.subr.mxu0 0.0
    %2890 = vmatpush1.msra.mxu0 %v2857
    %2891 = vmatprep.subr.mxu0 0.0
    %2892 = vmatpush2.msra.mxu0 0.0
    %2893 = vmatprep.subr.mxu0 0.0
    %2894 = vmatpush2.msra.mxu0 0.0
    %2895 = vmatprep.subr.mxu0 0.0
    %2896 = vmatpush2.msra.mxu0 0.0
    %2897 = vmatprep.subr.mxu0 0.0
    %2898 = vmatpush2.msra.mxu0 0.0
    %2899 = vmatprep.subr.mxu0 0.0
    %2900 = vmatpush2.msra.mxu0 0.0
    %2901 = vmatprep.subr.mxu0 0.0
    %2902 = vmatpush2.msra.mxu0 0.0
    %2903 = vmatprep.subr.mxu0 0.0
    %2904 = vmatpush2.msra.mxu0 0.0
    %2905 = vmatprep.subr.mxu0 0.0
    %2906 = vmatpush2.msra.mxu0 0.0
    %2907 = vmatprep.subr.mxu0 0.0
    %2908 = vmatpush2.msra.mxu0 0.0
    %2909 = vmatprep.subr.mxu0 0.0
    %2910 = vmatpush2.msra.mxu0 0.0
    %2911 = vmatprep.subr.mxu0 0.0
    %2912 = vmatpush2.msra.mxu0 0.0
    %2913 = vmatprep.subr.mxu0 0.0
    %2914 = vmatpush2.msra.mxu0 0.0
    %2915 = vmatprep.subr.mxu0 0.0
    %2916 = vmatpush2.msra.mxu0 0.0
    %2917 = vmatprep.subr.mxu0 0.0
    %2918 = vmatpush2.msra.mxu0 0.0
    %2919 = vmatprep.subr.mxu0 0.0
    %2920 = vmatpush2.msra.mxu0 0.0
    %2921 = vmatprep.subr.mxu0 0.0
    %2922 = vmatpush2.msra.mxu0 0.0
    %2923 = vmatprep.mubr.f32.mxu0 0.0
    %2924 = vmatmul.mubr.f32.gmra.mxu0 %v2854
    %v2925 = vpop.f32.mrf.mxu0
    %v2926 = vadd.f32 1e-30, %v2925
    %v2927 = vpop.f32.mrf.mxu0
    %2928 = vdwg.mxu0
    %v2929 = vrcp.pop %v2926
    %vm2930 = vcmask 15360
    %v2932 = vsel %vm2930, %v2687, 0
    %vm2934 = vcmask 1041408
    %v2936 = vsel %vm2934, %v2929, 0
    %2938 = vmatprep.subr.mxu0 0.0
    %2939 = vmatpush1.msra.mxu0 0.0
    %2940 = vmatprep.subr.mxu0 0.0
    %2941 = vmatpush1.msra.mxu0 0.0
    %2942 = vmatprep.subr.mxu0 0.0
    %2943 = vmatpush1.msra.mxu0 0.0
    %2944 = vmatprep.subr.mxu0 0.0
    %2945 = vmatpush1.msra.mxu0 0.0
    %2946 = vmatprep.subr.mxu0 0.0
    %2947 = vmatpush1.msra.mxu0 0.0
    %2948 = vmatprep.subr.mxu0 0.0
    %2949 = vmatpush1.msra.mxu0 0.0
    %2950 = vmatprep.subr.mxu0 0.0
    %2951 = vmatpush1.msra.mxu0 0.0
    %2952 = vmatprep.subr.mxu0 0.0
    %2953 = vmatpush1.msra.mxu0 0.0
    %2954 = vmatprep.subr.mxu0 0.0
    %2955 = vmatpush1.msra.mxu0 0.0
    %2956 = vmatprep.subr.mxu0 0.0
    %2957 = vmatpush1.msra.mxu0 0.0
    %2958 = vmatprep.subr.mxu0 0.0
    %2959 = vmatpush1.msra.mxu0 0.0
    %2960 = vmatprep.subr.mxu0 0.0
    %2961 = vmatpush1.msra.mxu0 0.0
    %2962 = vmatprep.subr.mxu0 0.0
    %2963 = vmatpush1.msra.mxu0 0.0
    %2964 = vmatprep.subr.mxu0 0.0
    %2965 = vmatpush1.msra.mxu0 0.0
    %2966 = vmatprep.subr.mxu0 0.0
    %2967 = vmatpush1.msra.mxu0 0.0
    %2968 = vmatprep.subr.mxu0 0.0
    %2969 = vmatpush1.msra.mxu0 %v2936
    %2970 = vmatprep.subr.mxu0 0.0
    %2971 = vmatpush2.msra.mxu0 0.0
    %2972 = vmatprep.subr.mxu0 0.0
    %2973 = vmatpush2.msra.mxu0 0.0
    %2974 = vmatprep.subr.mxu0 0.0
    %2975 = vmatpush2.msra.mxu0 0.0
    %2976 = vmatprep.subr.mxu0 0.0
    %2977 = vmatpush2.msra.mxu0 0.0
    %2978 = vmatprep.subr.mxu0 0.0
    %2979 = vmatpush2.msra.mxu0 0.0
    %2980 = vmatprep.subr.mxu0 0.0
    %2981 = vmatpush2.msra.mxu0 0.0
    %2982 = vmatprep.subr.mxu0 0.0
    %2983 = vmatpush2.msra.mxu0 0.0
    %2984 = vmatprep.subr.mxu0 0.0
    %2985 = vmatpush2.msra.mxu0 0.0
    %2986 = vmatprep.subr.mxu0 0.0
    %2987 = vmatpush2.msra.mxu0 0.0
    %2988 = vmatprep.subr.mxu0 0.0
    %2989 = vmatpush2.msra.mxu0 0.0
    %2990 = vmatprep.subr.mxu0 0.0
    %2991 = vmatpush2.msra.mxu0 0.0
    %2992 = vmatprep.subr.mxu0 0.0
    %2993 = vmatpush2.msra.mxu0 0.0
    %2994 = vmatprep.subr.mxu0 0.0
    %2995 = vmatpush2.msra.mxu0 0.0
    %2996 = vmatprep.subr.mxu0 0.0
    %2997 = vmatpush2.msra.mxu0 0.0
    %2998 = vmatprep.subr.mxu0 0.0
    %2999 = vmatpush2.msra.mxu0 0.0
    %3000 = vmatprep.subr.mxu0 0.0
    %3001 = vmatpush2.msra.mxu0 0.0
    %3002 = vmatprep.mubr.f32.mxu0 0.0
    %3003 = vmatmul.mubr.f32.gmra.mxu0 %v2932
    %v3004 = vpop.f32.mrf.mxu0
    %v3005 = vadd.f32 0.0, %v3004
    %v3006 = vpop.f32.mrf.mxu0
    %3007 = vdwg.mxu0
    %v3008 = vmul.f32 %v2852, %v3005
    %v3010 = vsel %vm1968, %v3008, 0
    %v3013 = vsel %vm2064, %v2686, 0
    %3015 = vmatprep.subr.mxu0 0.0
    %3016 = vmatpush1.msra.mxu0 0.0
    %3017 = vmatprep.subr.mxu0 0.0
    %3018 = vmatpush1.msra.mxu0 0.0
    %3019 = vmatprep.subr.mxu0 0.0
    %3020 = vmatpush1.msra.mxu0 0.0
    %3021 = vmatprep.subr.mxu0 0.0
    %3022 = vmatpush1.msra.mxu0 0.0
    %3023 = vmatprep.subr.mxu0 0.0
    %3024 = vmatpush1.msra.mxu0 0.0
    %3025 = vmatprep.subr.mxu0 0.0
    %3026 = vmatpush1.msra.mxu0 0.0
    %3027 = vmatprep.subr.mxu0 0.0
    %3028 = vmatpush1.msra.mxu0 0.0
    %3029 = vmatprep.subr.mxu0 0.0
    %3030 = vmatpush1.msra.mxu0 0.0
    %3031 = vmatprep.subr.mxu0 0.0
    %3032 = vmatpush1.msra.mxu0 0.0
    %3033 = vmatprep.subr.mxu0 0.0
    %3034 = vmatpush1.msra.mxu0 0.0
    %3035 = vmatprep.subr.mxu0 0.0
    %3036 = vmatpush1.msra.mxu0 0.0
    %3037 = vmatprep.subr.mxu0 0.0
    %3038 = vmatpush1.msra.mxu0 0.0
    %3039 = vmatprep.subr.mxu0 0.0
    %3040 = vmatpush1.msra.mxu0 0.0
    %3041 = vmatprep.subr.mxu0 0.0
    %3042 = vmatpush1.msra.mxu0 0.0
    %3043 = vmatprep.subr.mxu0 0.0
    %3044 = vmatpush1.msra.mxu0 0.0
    %3045 = vmatprep.subr.mxu0 0.0
    %3046 = vmatpush1.msra.mxu0 %v3013
    %3047 = vmatprep.subr.mxu0 0.0
    %3048 = vmatpush2.msra.mxu0 0.0
    %3049 = vmatprep.subr.mxu0 0.0
    %3050 = vmatpush2.msra.mxu0 0.0
    %3051 = vmatprep.subr.mxu0 0.0
    %3052 = vmatpush2.msra.mxu0 0.0
    %3053 = vmatprep.subr.mxu0 0.0
    %3054 = vmatpush2.msra.mxu0 0.0
    %3055 = vmatprep.subr.mxu0 0.0
    %3056 = vmatpush2.msra.mxu0 0.0
    %3057 = vmatprep.subr.mxu0 0.0
    %3058 = vmatpush2.msra.mxu0 0.0
    %3059 = vmatprep.subr.mxu0 0.0
    %3060 = vmatpush2.msra.mxu0 0.0
    %3061 = vmatprep.subr.mxu0 0.0
    %3062 = vmatpush2.msra.mxu0 0.0
    %3063 = vmatprep.subr.mxu0 0.0
    %3064 = vmatpush2.msra.mxu0 0.0
    %3065 = vmatprep.subr.mxu0 0.0
    %3066 = vmatpush2.msra.mxu0 0.0
    %3067 = vmatprep.subr.mxu0 0.0
    %3068 = vmatpush2.msra.mxu0 0.0
    %3069 = vmatprep.subr.mxu0 0.0
    %3070 = vmatpush2.msra.mxu0 0.0
    %3071 = vmatprep.subr.mxu0 0.0
    %3072 = vmatpush2.msra.mxu0 0.0
    %3073 = vmatprep.subr.mxu0 0.0
    %3074 = vmatpush2.msra.mxu0 0.0
    %3075 = vmatprep.subr.mxu0 0.0
    %3076 = vmatpush2.msra.mxu0 0.0
    %3077 = vmatprep.subr.mxu0 0.0
    %3078 = vmatpush2.msra.mxu0 0.0
    %3079 = vmatprep.mubr.f32.mxu0 0.0
    %3080 = vmatmul.mubr.f32.gmra.mxu0 %v3010
    %v3081 = vpop.f32.mrf.mxu0
    %v3082 = vadd.f32 0.0, %v3081
    %v3083 = vpop.f32.mrf.mxu0
    %3084 = vdwg.mxu0
    %v3085 = vmul.f32 %v3082, %v2668
    %v3087 = vsel %vm2064, %v3085, 0
    %3089 = vmatprep.subr.mxu0 0.0
    %3090 = vmatpush1.msra.mxu0 0.0
    %3091 = vmatprep.subr.mxu0 0.0
    %3092 = vmatpush1.msra.mxu0 0.0
    %3093 = vmatprep.subr.mxu0 0.0
    %3094 = vmatpush1.msra.mxu0 0.0
    %3095 = vmatprep.subr.mxu0 0.0
    %3096 = vmatpush1.msra.mxu0 0.0
    %3097 = vmatprep.subr.mxu0 0.0
    %3098 = vmatpush1.msra.mxu0 0.0
    %3099 = vmatprep.subr.mxu0 0.0
    %3100 = vmatpush1.msra.mxu0 0.0
    %3101 = vmatprep.subr.mxu0 0.0
    %3102 = vmatpush1.msra.mxu0 0.0
    %3103 = vmatprep.subr.mxu0 0.0
    %3104 = vmatpush1.msra.mxu0 0.0
    %3105 = vmatprep.subr.mxu0 0.0
    %3106 = vmatpush1.msra.mxu0 0.0
    %3107 = vmatprep.subr.mxu0 0.0
    %3108 = vmatpush1.msra.mxu0 0.0
    %3109 = vmatprep.subr.mxu0 0.0
    %3110 = vmatpush1.msra.mxu0 0.0
    %3111 = vmatprep.subr.mxu0 0.0
    %3112 = vmatpush1.msra.mxu0 0.0
    %3113 = vmatprep.subr.mxu0 0.0
    %3114 = vmatpush1.msra.mxu0 0.0
    %3115 = vmatprep.subr.mxu0 0.0
    %3116 = vmatpush1.msra.mxu0 0.0
    %3117 = vmatprep.subr.mxu0 0.0
    %3118 = vmatpush1.msra.mxu0 0.0
    %3119 = vmatprep.subr.mxu0 0.0
    %3120 = vmatpush1.msra.mxu0 %v3087
    %3121 = vmatprep.subr.mxu0 0.0
    %3122 = vmatpush2.msra.mxu0 0.0
    %3123 = vmatprep.subr.mxu0 0.0
    %3124 = vmatpush2.msra.mxu0 0.0
    %3125 = vmatprep.subr.mxu0 0.0
    %3126 = vmatpush2.msra.mxu0 0.0
    %3127 = vmatprep.subr.mxu0 0.0
    %3128 = vmatpush2.msra.mxu0 0.0
    %3129 = vmatprep.subr.mxu0 0.0
    %3130 = vmatpush2.msra.mxu0 0.0
    %3131 = vmatprep.subr.mxu0 0.0
    %3132 = vmatpush2.msra.mxu0 0.0
    %3133 = vmatprep.subr.mxu0 0.0
    %3134 = vmatpush2.msra.mxu0 0.0
    %3135 = vmatprep.subr.mxu0 0.0
    %3136 = vmatpush2.msra.mxu0 0.0
    %3137 = vmatprep.subr.mxu0 0.0
    %3138 = vmatpush2.msra.mxu0 0.0
    %3139 = vmatprep.subr.mxu0 0.0
    %3140 = vmatpush2.msra.mxu0 0.0
    %3141 = vmatprep.subr.mxu0 0.0
    %3142 = vmatpush2.msra.mxu0 0.0
    %3143 = vmatprep.subr.mxu0 0.0
    %3144 = vmatpush2.msra.mxu0 0.0
    %3145 = vmatprep.subr.mxu0 0.0
    %3146 = vmatpush2.msra.mxu0 0.0
    %3147 = vmatprep.subr.mxu0 0.0
    %3148 = vmatpush2.msra.mxu0 0.0
    %3149 = vmatprep.subr.mxu0 0.0
    %3150 = vmatpush2.msra.mxu0 0.0
    %3151 = vmatprep.subr.mxu0 0.0
    %3152 = vmatpush2.msra.mxu0 0.0
    %3153 = vmatprep.mubr.f32.mxu0 0.0
    %3154 = vmatmul.mubr.f32.gmra.mxu0 %v2854
    %v3155 = vpop.f32.mrf.mxu0
    %v3156 = vadd.f32 0.0, %v3155
    %v3157 = vpop.f32.mrf.mxu0
    %3158 = vdwg.mxu0
    %v3159 = vld [vmem:[%s26] sm:$0xff]
    %v3160 = vld [vmem:[%s26 + $0x8] sm:$0xff]
    %v3161 = vld [vmem:[%s26 + $0x10] sm:$0xff]
    %v3162 = vld [vmem:[%s26 + $0x18] sm:$0xff]
    %v3163 = vld [vmem:[%s26 + $0x20] sm:$0xff]
    %v3164 = vld [vmem:[%s26 + $0x28] sm:$0xff]
    %v3165 = vld [vmem:[%s26 + $0x30] sm:$0xff]
    %v3166 = vld [vmem:[%s26 + $0x38] sm:$0xff]
    %v3167 = vld [vmem:[%s27] sm:$0x1]
    %v3169 = vlaneseq
    %v3170 = vshrl.u32 %v3169, 7
    %v3171 = vsub.s32 0, %v3170
    %v3172 = vrot.slane %v3167, %v3171
    %v3175 = vsel %vm787, %v3156, 0
    %3177 = vmatprep.subr.mxu0 0.0
    %3178 = vmatpush1.msra.mxu0 0.0
    %3179 = vmatprep.subr.mxu0 0.0
    %3180 = vmatpush1.msra.mxu0 0.0
    %3181 = vmatprep.subr.mxu0 0.0
    %3182 = vmatpush1.msra.mxu0 0.0
    %3183 = vmatprep.subr.mxu0 0.0
    %3184 = vmatpush1.msra.mxu0 0.0
    %3185 = vmatprep.subr.mxu0 0.0
    %3186 = vmatpush1.msra.mxu0 0.0
    %3187 = vmatprep.subr.mxu0 0.0
    %3188 = vmatpush1.msra.mxu0 0.0
    %3189 = vmatprep.subr.mxu0 0.0
    %3190 = vmatpush1.msra.mxu0 0.0
    %3191 = vmatprep.subr.mxu0 0.0
    %3192 = vmatpush1.msra.mxu0 0.0
    %3193 = vmatprep.subr.mxu0 0.0
    %3194 = vmatpush1.msra.mxu0 %v3166
    %3195 = vmatprep.subr.mxu0 0.0
    %3196 = vmatpush1.msra.mxu0 %v3165
    %3197 = vmatprep.subr.mxu0 0.0
    %3198 = vmatpush1.msra.mxu0 %v3164
    %3199 = vmatprep.subr.mxu0 0.0
    %3200 = vmatpush1.msra.mxu0 %v3163
    %3201 = vmatprep.subr.mxu0 0.0
    %3202 = vmatpush1.msra.mxu0 %v3162
    %3203 = vmatprep.subr.mxu0 0.0
    %3204 = vmatpush1.msra.mxu0 %v3161
    %3205 = vmatprep.subr.mxu0 0.0
    %3206 = vmatpush1.msra.mxu0 %v3160
    %3207 = vmatprep.subr.mxu0 0.0
    %3208 = vmatpush1.msra.mxu0 %v3159
    %3209 = vmatprep.subr.mxu0 0.0
    %3210 = vmatpush2.msra.mxu0 0.0
    %3211 = vmatprep.subr.mxu0 0.0
    %3212 = vmatpush2.msra.mxu0 0.0
    %3213 = vmatprep.subr.mxu0 0.0
    %3214 = vmatpush2.msra.mxu0 0.0
    %3215 = vmatprep.subr.mxu0 0.0
    %3216 = vmatpush2.msra.mxu0 0.0
    %3217 = vmatprep.subr.mxu0 0.0
    %3218 = vmatpush2.msra.mxu0 0.0
    %3219 = vmatprep.subr.mxu0 0.0
    %3220 = vmatpush2.msra.mxu0 0.0
    %3221 = vmatprep.subr.mxu0 0.0
    %3222 = vmatpush2.msra.mxu0 0.0
    %3223 = vmatprep.subr.mxu0 0.0
    %3224 = vmatpush2.msra.mxu0 0.0
    %3225 = vmatprep.subr.mxu0 0.0
    %3226 = vmatpush2.msra.mxu0 0.0
    %3227 = vmatprep.subr.mxu0 0.0
    %3228 = vmatpush2.msra.mxu0 0.0
    %3229 = vmatprep.subr.mxu0 0.0
    %3230 = vmatpush2.msra.mxu0 0.0
    %3231 = vmatprep.subr.mxu0 0.0
    %3232 = vmatpush2.msra.mxu0 0.0
    %3233 = vmatprep.subr.mxu0 0.0
    %3234 = vmatpush2.msra.mxu0 0.0
    %3235 = vmatprep.subr.mxu0 0.0
    %3236 = vmatpush2.msra.mxu0 0.0
    %3237 = vmatprep.subr.mxu0 0.0
    %3238 = vmatpush2.msra.mxu0 0.0
    %3239 = vmatprep.subr.mxu0 0.0
    %3240 = vmatpush2.msra.mxu0 0.0
    %3241 = vmatprep.mubr.f32.mxu0 0.0
    %3242 = vmatmul.mubr.f32.gmra.mxu0 %v3175
    %v3243 = vpop.f32.mrf.mxu0
    %v3244 = vadd.f32 %v3172, %v3243
    %v3245 = vpop.f32.mrf.mxu0
    %3246 = vdwg.mxu0
    %v3247 = vld [vmem:[#allocation11] sm:$0x3]
    %v3248 = vmul.f32 %v3244, 0.5
    %v3249 = vmul.f32 %v3248, 1.442695
    %v3250 = vpow.pop %v3249
    %3252 = vrot.lane.b32.xlu0 %v3250, 112
    %v3253 = vpop.permute.xlu0 %3252
    %v3255 = vmul.f32 %v3247, %v3253
    %v3256 = vadd.f32 %v3244, %v3255
    %3258 = vrot.lane.b32.xlu0 %v3244, 16
    %v3259 = vpop.permute.xlu0 %3258
    %v3261 = vsel %vm433, %v3256, %v3259
    %vm3262 = vcmask 386048
    %3263 = vst.msk [vmem:[#allocation30] sm:$0x3] %vm3262, %v3261
    // Predicated region
    $region174: #{tpu_custom_call.1} parent=1 // pred_check
      _
    $region175: #{tpu_custom_call.1} parent=1 // pred_check_branch
      %3265 = sbr.rel (0) target = $region177
    $region176: #{tpu_custom_call.1} parent=1 // pred_region
      %s3267 = ssub.s32 32, 32
      %3268 = vsyncadd [#allocation8], %s3267
      %s3270 = sshll.u32 [#allocation30], 4
      %s3271 = int_to_ptr.vmem [resolvable:$true] %s3270
      %3273 = dma.vmem_to_hbm [thread:$0]  %s3271, 32, %s28, [#allocation8]
    $region177: #{tpu_custom_call.1} parent=1 // pred_fallthru
      _
    // Predicated region
    $region178: #{tpu_custom_call.1} parent=1 // pred_check
      _
    $region179: #{tpu_custom_call.1} parent=1 // pred_check_branch
      %3275 = sbr.rel (0) target = $region181
    $region180: #{tpu_custom_call.1} parent=1 // pred_region
      %3276 = dma.done [#allocation8], 32
    $region181: #{tpu_custom_call.1} parent=1 // pred_fallthru
      _
    %3277 = vsyncpa [#allocation7], 1
    %3278 = vsyncpa [#allocation10], 1
    %3279 = vsyncpa [#allocation13], 1
    %3280 = vsyncpa [#allocation16], 1
    %3281 = vsyncpa [#allocation19], 1
    %3282 = vsyncpa [#allocation22], 1
    %3283 = vsyncpa [#allocation25], 1
    %3284 = vsyncpa [#allocation28], 1
    %3285 = vsyncpa [#allocation8], 1

</llo_original>
